<compile_context>
chip_gen: v7x
topology: tpu7x:2x2x1
jax: 0.10.0
libtpu: 0.0.40
codegen_flags: <defaults>
</compile_context>

<pallas_src>
import jax
import jax.numpy as jnp
from jax import lax
from jax.experimental import pallas as pl
from jax.experimental.pallas import tpu as pltpu

_EPS = 1e-5


# ---------------------------------------------------------------------------
# Fused forward kernel: one grid step == one batch element.
# All intermediates are values (vregs / VMEM); nothing goes back to HBM until
# the final (1, 1) output scalar.
# ---------------------------------------------------------------------------
def _fused_forward_kernel(
    xcc_ref, xf_ref,
    A_cf, A_fp, A_pp0, A_pp1, A_pp2, A_pp3, P1, P2, P3,
    w_cf, b_cf, w_fp, b_fp,
    wn1, ws1, b1,
    wn2a, ws2a, b2a, wn2b, ws2b, b2b,
    wn3a, ws3a, b3a, wn3b, ws3b, b3b,
    wn4a, ws4a, b4a, wn4b, ws4b, b4b, wn4c, ws4c, b4c, wn4d, ws4d, b4d,
    wf1, bf1, wf2, bf2,
    o_ref,
):
    def inorm(x):                                        # InstanceNorm1d over nodes
        m = jnp.mean(x, axis=0, keepdims=True)
        v = jnp.mean((x - m) ** 2, axis=0, keepdims=True)
        return (x - m) * lax.rsqrt(v + _EPS)

    def conv_bi(a_ref, x, w_ref, bias_ref):              # relu(A @ (X @ W) + b)
        h = jnp.dot(x, w_ref[...], preferred_element_type=jnp.float32)
        m = jnp.dot(a_ref[...], h, preferred_element_type=jnp.float32)
        return jnp.maximum(m + bias_ref[...], 0.0)

    def conv_pp(a_ref, x, wn_ref, ws_ref, bias_ref):      # relu(A @ (X@Wn) + X@Ws + b)
        h = jnp.dot(x, wn_ref[...], preferred_element_type=jnp.float32)
        m = jnp.dot(a_ref[...], h, preferred_element_type=jnp.float32)
        s = jnp.dot(x, ws_ref[...], preferred_element_type=jnp.float32)
        return jnp.maximum(m + s + bias_ref[...], 0.0)

    def pool(p_ref, x):                                   # add-pooling: P @ X
        return jnp.dot(p_ref[...], x, preferred_element_type=jnp.float32)

    xcc = inorm(xcc_ref[0])                               # (Nc, 2)   input norm
    xf = inorm(xf_ref[0])                                 # (Nf, 3)   input norm

    # --- _ConvBlock1 ------------------------------------------------------
    # centerFace conv has Cin == 2: compute X @ W on the VPU via broadcast
    # multiply-adds (K=2 would use ~0% of the MXU and pay push/pop latency).
    w = w_cf[...]                                          # (2, 13)
    xw = xcc[:, 0:1] * w[0:1, :] + xcc[:, 1:2] * w[1:2, :]  # (Nc, 13)
    h = jnp.dot(A_cf[...], xw, preferred_element_type=jnp.float32)
    h = jnp.maximum(h + b_cf[...], 0.0)                    # (Nf, 13)

    h = jnp.concatenate([h, xf], axis=-1)                  # (Nf, 16)  fused concat
    h = conv_bi(A_fp, h, w_fp, b_fp)                       # (Np, 16)
    h = conv_pp(A_pp0, h, wn1, ws1, b1)                    # (Np, 16)
    h = inorm(h)                                           # in1

    # --- _ConvBlock2 ------------------------------------------------------
    h = pool(P1, h)                                        # (Np1, 16)
    h = conv_pp(A_pp1, h, wn2a, ws2a, b2a)
    h = conv_pp(A_pp1, h, wn2b, ws2b, b2b)
    h = inorm(h)                                           # in2

    # --- _ConvBlock3 ------------------------------------------------------
    h = pool(P2, h)                                        # (Np2, 16)
    h = conv_pp(A_pp2, h, wn3a, ws3a, b3a)
    h = conv_pp(A_pp2, h, wn3b, ws3b, b3b)
    h = inorm(h)                                           # in3

    # --- _ConvBlock4LessLayers -------------------------------------------
    h = pool(P3, h)                                        # (Np3, 16)
    h = conv_pp(A_pp3, h, wn4a, ws4a, b4a)                 # 16 -> 32
    h = conv_pp(A_pp3, h, wn4b, ws4b, b4b)
    h = inorm(h)                                           # in4 (block-internal)
    h = conv_pp(A_pp3, h, wn4c, ws4c, b4c)
    h = conv_pp(A_pp3, h, wn4d, ws4d, b4d)
    h = inorm(h)                                           # in42

    # --- std over nodes (unbiased, like torch.std(dim=1)) + _ConvBlock10 ---
    n = h.shape[0]
    m = jnp.mean(h, axis=0, keepdims=True)
    var = jnp.sum((h - m) ** 2, axis=0, keepdims=True) / (n - 1)
    std = jnp.sqrt(var)                                    # (1, 32)
    g = jnp.dot(std, wf1[...], preferred_element_type=jnp.float32) + bf1[...]
    g = jnp.maximum(g, 0.0)                                # (1, 96)
    o_ref[0] = jnp.dot(g, wf2[...], preferred_element_type=jnp.float32) + bf2[...]


_PARAM_ORDER = (
    "A_cf", "A_fp", "A_pp0", "A_pp1", "A_pp2", "A_pp3", "P1", "P2", "P3",
    "w_cf", "b_cf", "w_fp", "b_fp",
    "wn1", "ws1", "b1",
    "wn2a", "ws2a", "b2a", "wn2b", "ws2b", "b2b",
    "wn3a", "ws3a", "b3a", "wn3b", "ws3b", "b3b",
    "wn4a", "ws4a", "b4a", "wn4b", "ws4b", "b4b",
    "wn4c", "ws4c", "b4c", "wn4d", "ws4d", "b4d",
    "wf1", "bf1", "wf2", "bf2",
)


# ---------------------------------------------------------------------------
# Full forward pass (mirrors Small.forward) — a single pallas_call.
# ---------------------------------------------------------------------------
@jax.jit
def small_forward(p, x_cell_centers, x_face):
    B, Nc, Ccc = x_cell_centers.shape
    _, Nf, Cf = x_face.shape
    param_vals = [p[k] for k in _PARAM_ORDER]

    in_specs = [
        pl.BlockSpec((1, Nc, Ccc), lambda b: (b, 0, 0)),   # per-batch activations
        pl.BlockSpec((1, Nf, Cf), lambda b: (b, 0, 0)),
    ]
    # All adjacencies / pooling matrices / weights / biases are 2-D and
    # batch-shared: constant index map -> fetched once, VMEM-resident across
    # the (tiny) batch grid; total static operand footprint is < 200 KB.
    in_specs += [pl.BlockSpec(v.shape, lambda b: (0, 0)) for v in param_vals]

    out = pl.pallas_call(
        _fused_forward_kernel,
        out_shape=jax.ShapeDtypeStruct((B, 1, 1), jnp.float32),
        grid=(B,),
        in_specs=in_specs,
        out_specs=pl.BlockSpec((1, 1, 1), lambda b: (b, 0, 0)),
        compiler_params=pltpu.CompilerParams(
            # independent batches: on v7x the two grid steps split across the
            # two TensorCores; on v5e/v6e this is just a 2-step serial loop.
            dimension_semantics=("parallel",),
        ),
    )(x_cell_centers, x_face, *param_vals)
    return out.reshape(B, 1)


# ---------------------------------------------------------------------------
# Pure-JAX reference (for correctness check)
# ---------------------------------------------------------------------------
def _ref_in(x):
    m = x.mean(axis=1, keepdims=True)
    v = ((x - m) ** 2).mean(axis=1, keepdims=True)
    return (x - m) / jnp.sqrt(v + _EPS)


def _ref_bi(A, x, w, b):
    return jax.nn.relu(jnp.einsum("ds,bsc->bdc", A, x @ w) + b)


def _ref_pp(A, x, wn, ws, b):
    return jax.nn.relu(jnp.einsum("ds,bsc->bdc", A, x @ wn) + x @ ws + b)


def _ref_pool(P, x):
    return jnp.einsum("ds,bsc->bdc", P, x)


def small_forward_ref(p, xcc, xf):
    xcc = _ref_in(xcc)
    xf = _ref_in(xf)
    h = _ref_bi(p["A_cf"], xcc, p["w_cf"], p["b_cf"])
    h = jnp.concatenate([h, xf], axis=-1)
    h = _ref_bi(p["A_fp"], h, p["w_fp"], p["b_fp"])
    h = _ref_pp(p["A_pp0"], h, p["wn1"], p["ws1"], p["b1"])
    h = _ref_in(h)
    h = _ref_pool(p["P1"], h)
    h = _ref_pp(p["A_pp1"], h, p["wn2a"], p["ws2a"], p["b2a"])
    h = _ref_pp(p["A_pp1"], h, p["wn2b"], p["ws2b"], p["b2b"])
    h = _ref_in(h)
    h = _ref_pool(p["P2"], h)
    h = _ref_pp(p["A_pp2"], h, p["wn3a"], p["ws3a"], p["b3a"])
    h = _ref_pp(p["A_pp2"], h, p["wn3b"], p["ws3b"], p["b3b"])
    h = _ref_in(h)
    h = _ref_pool(p["P3"], h)
    h = _ref_pp(p["A_pp3"], h, p["wn4a"], p["ws4a"], p["b4a"])
    h = _ref_pp(p["A_pp3"], h, p["wn4b"], p["ws4b"], p["b4b"])
    h = _ref_in(h)
    h = _ref_pp(p["A_pp3"], h, p["wn4c"], p["ws4c"], p["b4c"])
    h = _ref_pp(p["A_pp3"], h, p["wn4d"], p["ws4d"], p["b4d"])
    h = _ref_in(h)
    std = jnp.std(h, axis=1, ddof=1)                    # torch.std(dim=1), unbiased
    g = jax.nn.relu(std @ p["wf1"] + p["bf1"])
    return g @ p["wf2"] + p["bf2"]


# ---------------------------------------------------------------------------
# Deterministic parameter / graph construction
# ---------------------------------------------------------------------------
def make_params(key, sizes):
    Nc, Nf, Np, Np1, Np2, Np3 = sizes
    keys = iter(jax.random.split(key, 64))

    def glorot(shape):
        fan_in, fan_out = shape
        lim = (6.0 / (fan_in + fan_out)) ** 0.5
        return jax.random.uniform(next(keys), shape, jnp.float32, -lim, lim)

    def adj(nd, ns):
        return jax.random.normal(next(keys), (nd, ns), jnp.float32) / (ns ** 0.5)

    p = {}
    # dense edge-weighted adjacencies (edge_index + edge_attr of each graph)
    p["A_cf"] = adj(Nf, Nc)     # centerFace
    p["A_fp"] = adj(Np, Nf)     # facePoint
    p["A_pp0"] = adj(Np, Np)    # pointPoint lvl0
    p["A_pp1"] = adj(Np1, Np1)
    p["A_pp2"] = adj(Np2, Np2)
    p["A_pp3"] = adj(Np3, Np3)
    p["P1"] = adj(Np1, Np)      # pooling matrices (add aggregation)
    p["P2"] = adj(Np2, Np1)
    p["P3"] = adj(Np3, Np2)

    def conv(prefix, cin, cout, pp=True):
        p["wn" + prefix if pp else "w_" + prefix] = glorot((cin, cout))
        if pp:
            p["ws" + prefix] = glorot((cin, cout))
            p["b" + prefix] = jnp.zeros((1, cout), jnp.float32) + 0.01
        else:
            p["b_" + prefix] = jnp.zeros((1, cout), jnp.float32) + 0.01

    conv("cf", 2, 13, pp=False)          # CustomGraphConv(2, 13)
    conv("fp", 16, 16, pp=False)         # CustomGraphConv(13+3, 16)
    conv("1", 16, 16)                    # PointPoint(16, 16)
    conv("2a", 16, 16); conv("2b", 16, 16)
    conv("3a", 16, 16); conv("3b", 16, 16)
    conv("4a", 16, 32); conv("4b", 32, 32)
    conv("4c", 32, 32); conv("4d", 32, 32)
    # _ConvBlock10: SelfLoopLayer(32, 96), SelfLoopLayer(96, 1)
    p["wf1"] = glorot((32, 96)); p["bf1"] = jnp.zeros((1, 96), jnp.float32) + 0.01
    p["wf2"] = glorot((96, 1));  p["bf2"] = jnp.zeros((1, 1), jnp.float32) + 0.01
    return p


# ---------------------------------------------------------------------------
if __name__ == "__main__":
    B = 2
    N_CELLS, N_FACES, N_POINTS = 32, 48, 64
    N_P1, N_P2, N_P3 = 32, 16, 8

    root = jax.random.PRNGKey(0)
    k_param, k_cc, k_f = jax.random.split(root, 3)
    params = make_params(k_param, (N_CELLS, N_FACES, N_POINTS, N_P1, N_P2, N_P3))

    x_cell_centers = jax.random.normal(k_cc, (B, N_CELLS, 2), jnp.float32)
    x_face = jax.random.normal(k_f, (B, N_FACES, 3), jnp.float32)

    out = small_forward(params, x_cell_centers, x_face)
    out = jax.block_until_ready(out)

    ref = small_forward_ref(params, x_cell_centers, x_face)
    assert out.shape == (B, 1), out.shape
    assert bool(jnp.all(jnp.isfinite(out)))
    assert bool(jnp.allclose(out, ref, rtol=1e-4, atol=1e-4)), (out, ref)

    print("KERNEL_OK")
</pallas_src>

<mosaic_0001>
module attributes {stable_mosaic.version = 11 : i64} {
  func.func @_fused_forward_kernel(%arg0: i32, %arg1: memref<1x32x2xf32, #tpu.memory_space<vmem>>, %arg2: memref<1x48x3xf32, #tpu.memory_space<vmem>>, %arg3: memref<48x32xf32, #tpu.memory_space<vmem>>, %arg4: memref<64x48xf32, #tpu.memory_space<vmem>>, %arg5: memref<64x64xf32, #tpu.memory_space<vmem>>, %arg6: memref<32x32xf32, #tpu.memory_space<vmem>>, %arg7: memref<16x16xf32, #tpu.memory_space<vmem>>, %arg8: memref<8x8xf32, #tpu.memory_space<vmem>>, %arg9: memref<32x64xf32, #tpu.memory_space<vmem>>, %arg10: memref<16x32xf32, #tpu.memory_space<vmem>>, %arg11: memref<8x16xf32, #tpu.memory_space<vmem>>, %arg12: memref<2x13xf32, #tpu.memory_space<vmem>>, %arg13: memref<1x13xf32, #tpu.memory_space<vmem>>, %arg14: memref<16x16xf32, #tpu.memory_space<vmem>>, %arg15: memref<1x16xf32, #tpu.memory_space<vmem>>, %arg16: memref<16x16xf32, #tpu.memory_space<vmem>>, %arg17: memref<16x16xf32, #tpu.memory_space<vmem>>, %arg18: memref<1x16xf32, #tpu.memory_space<vmem>>, %arg19: memref<16x16xf32, #tpu.memory_space<vmem>>, %arg20: memref<16x16xf32, #tpu.memory_space<vmem>>, %arg21: memref<1x16xf32, #tpu.memory_space<vmem>>, %arg22: memref<16x16xf32, #tpu.memory_space<vmem>>, %arg23: memref<16x16xf32, #tpu.memory_space<vmem>>, %arg24: memref<1x16xf32, #tpu.memory_space<vmem>>, %arg25: memref<16x16xf32, #tpu.memory_space<vmem>>, %arg26: memref<16x16xf32, #tpu.memory_space<vmem>>, %arg27: memref<1x16xf32, #tpu.memory_space<vmem>>, %arg28: memref<16x16xf32, #tpu.memory_space<vmem>>, %arg29: memref<16x16xf32, #tpu.memory_space<vmem>>, %arg30: memref<1x16xf32, #tpu.memory_space<vmem>>, %arg31: memref<16x32xf32, #tpu.memory_space<vmem>>, %arg32: memref<16x32xf32, #tpu.memory_space<vmem>>, %arg33: memref<1x32xf32, #tpu.memory_space<vmem>>, %arg34: memref<32x32xf32, #tpu.memory_space<vmem>>, %arg35: memref<32x32xf32, #tpu.memory_space<vmem>>, %arg36: memref<1x32xf32, #tpu.memory_space<vmem>>, %arg37: memref<32x32xf32, #tpu.memory_space<vmem>>, %arg38: memref<32x32xf32, #tpu.memory_space<vmem>>, %arg39: memref<1x32xf32, #tpu.memory_space<vmem>>, %arg40: memref<32x32xf32, #tpu.memory_space<vmem>>, %arg41: memref<32x32xf32, #tpu.memory_space<vmem>>, %arg42: memref<1x32xf32, #tpu.memory_space<vmem>>, %arg43: memref<32x96xf32, #tpu.memory_space<vmem>>, %arg44: memref<1x96xf32, #tpu.memory_space<vmem>>, %arg45: memref<96x1xf32, #tpu.memory_space<vmem>>, %arg46: memref<1x1xf32, #tpu.memory_space<vmem>>, %arg47: memref<1x1x1xf32, #tpu.memory_space<vmem>>) attributes {dimension_semantics = [#tpu.dimension_semantics<parallel>], iteration_bounds = array<i64: 2>, scalar_prefetch = 0 : i64, scratch_operands = 0 : i64, tpu.core_type = #tpu.core_type<tc>, window_params = [{transform_indices = @transform_0, window_bounds = array<i64: 1, 32, 2>}, {transform_indices = @transform_1, window_bounds = array<i64: 1, 48, 3>}, {pipeline_mode = #tpu.pipeline_mode<synchronous>, transform_indices = @transform_2, window_bounds = array<i64: 48, 32>}, {pipeline_mode = #tpu.pipeline_mode<synchronous>, transform_indices = @transform_3, window_bounds = array<i64: 64, 48>}, {pipeline_mode = #tpu.pipeline_mode<synchronous>, transform_indices = @transform_4, window_bounds = array<i64: 64, 64>}, {pipeline_mode = #tpu.pipeline_mode<synchronous>, transform_indices = @transform_5, window_bounds = array<i64: 32, 32>}, {pipeline_mode = #tpu.pipeline_mode<synchronous>, transform_indices = @transform_6, window_bounds = array<i64: 16, 16>}, {pipeline_mode = #tpu.pipeline_mode<synchronous>, transform_indices = @transform_7, window_bounds = array<i64: 8, 8>}, {pipeline_mode = #tpu.pipeline_mode<synchronous>, transform_indices = @transform_8, window_bounds = array<i64: 32, 64>}, {pipeline_mode = #tpu.pipeline_mode<synchronous>, transform_indices = @transform_9, window_bounds = array<i64: 16, 32>}, {pipeline_mode = #tpu.pipeline_mode<synchronous>, transform_indices = @transform_10, window_bounds = array<i64: 8, 16>}, {pipeline_mode = #tpu.pipeline_mode<synchronous>, transform_indices = @transform_11, window_bounds = array<i64: 2, 13>}, {pipeline_mode = #tpu.pipeline_mode<synchronous>, transform_indices = @transform_12, window_bounds = array<i64: 1, 13>}, {pipeline_mode = #tpu.pipeline_mode<synchronous>, transform_indices = @transform_13, window_bounds = array<i64: 16, 16>}, {pipeline_mode = #tpu.pipeline_mode<synchronous>, transform_indices = @transform_14, window_bounds = array<i64: 1, 16>}, {pipeline_mode = #tpu.pipeline_mode<synchronous>, transform_indices = @transform_15, window_bounds = array<i64: 16, 16>}, {pipeline_mode = #tpu.pipeline_mode<synchronous>, transform_indices = @transform_16, window_bounds = array<i64: 16, 16>}, {pipeline_mode = #tpu.pipeline_mode<synchronous>, transform_indices = @transform_17, window_bounds = array<i64: 1, 16>}, {pipeline_mode = #tpu.pipeline_mode<synchronous>, transform_indices = @transform_18, window_bounds = array<i64: 16, 16>}, {pipeline_mode = #tpu.pipeline_mode<synchronous>, transform_indices = @transform_19, window_bounds = array<i64: 16, 16>}, {pipeline_mode = #tpu.pipeline_mode<synchronous>, transform_indices = @transform_20, window_bounds = array<i64: 1, 16>}, {pipeline_mode = #tpu.pipeline_mode<synchronous>, transform_indices = @transform_21, window_bounds = array<i64: 16, 16>}, {pipeline_mode = #tpu.pipeline_mode<synchronous>, transform_indices = @transform_22, window_bounds = array<i64: 16, 16>}, {pipeline_mode = #tpu.pipeline_mode<synchronous>, transform_indices = @transform_23, window_bounds = array<i64: 1, 16>}, {pipeline_mode = #tpu.pipeline_mode<synchronous>, transform_indices = @transform_24, window_bounds = array<i64: 16, 16>}, {pipeline_mode = #tpu.pipeline_mode<synchronous>, transform_indices = @transform_25, window_bounds = array<i64: 16, 16>}, {pipeline_mode = #tpu.pipeline_mode<synchronous>, transform_indices = @transform_26, window_bounds = array<i64: 1, 16>}, {pipeline_mode = #tpu.pipeline_mode<synchronous>, transform_indices = @transform_27, window_bounds = array<i64: 16, 16>}, {pipeline_mode = #tpu.pipeline_mode<synchronous>, transform_indices = @transform_28, window_bounds = array<i64: 16, 16>}, {pipeline_mode = #tpu.pipeline_mode<synchronous>, transform_indices = @transform_29, window_bounds = array<i64: 1, 16>}, {pipeline_mode = #tpu.pipeline_mode<synchronous>, transform_indices = @transform_30, window_bounds = array<i64: 16, 32>}, {pipeline_mode = #tpu.pipeline_mode<synchronous>, transform_indices = @transform_31, window_bounds = array<i64: 16, 32>}, {pipeline_mode = #tpu.pipeline_mode<synchronous>, transform_indices = @transform_32, window_bounds = array<i64: 1, 32>}, {pipeline_mode = #tpu.pipeline_mode<synchronous>, transform_indices = @transform_33, window_bounds = array<i64: 32, 32>}, {pipeline_mode = #tpu.pipeline_mode<synchronous>, transform_indices = @transform_34, window_bounds = array<i64: 32, 32>}, {pipeline_mode = #tpu.pipeline_mode<synchronous>, transform_indices = @transform_35, window_bounds = array<i64: 1, 32>}, {pipeline_mode = #tpu.pipeline_mode<synchronous>, transform_indices = @transform_36, window_bounds = array<i64: 32, 32>}, {pipeline_mode = #tpu.pipeline_mode<synchronous>, transform_indices = @transform_37, window_bounds = array<i64: 32, 32>}, {pipeline_mode = #tpu.pipeline_mode<synchronous>, transform_indices = @transform_38, window_bounds = array<i64: 1, 32>}, {pipeline_mode = #tpu.pipeline_mode<synchronous>, transform_indices = @transform_39, window_bounds = array<i64: 32, 32>}, {pipeline_mode = #tpu.pipeline_mode<synchronous>, transform_indices = @transform_40, window_bounds = array<i64: 32, 32>}, {pipeline_mode = #tpu.pipeline_mode<synchronous>, transform_indices = @transform_41, window_bounds = array<i64: 1, 32>}, {pipeline_mode = #tpu.pipeline_mode<synchronous>, transform_indices = @transform_42, window_bounds = array<i64: 32, 96>}, {pipeline_mode = #tpu.pipeline_mode<synchronous>, transform_indices = @transform_43, window_bounds = array<i64: 1, 96>}, {pipeline_mode = #tpu.pipeline_mode<synchronous>, transform_indices = @transform_44, window_bounds = array<i64: 96, 1>}, {pipeline_mode = #tpu.pipeline_mode<synchronous>, transform_indices = @transform_45, window_bounds = array<i64: 1, 1>}, {transform_indices = @transform_46, window_bounds = array<i64: 1, 1, 1>}]} {
    %c0 = arith.constant 0 : index
    %c0_0 = arith.constant 0 : index
    %c0_1 = arith.constant 0 : index
    %0 = vector.load %arg1[%c0, %c0_0, %c0_1] : memref<1x32x2xf32, #tpu.memory_space<vmem>>, vector<1x32x2xf32>
    %1 = vector.shape_cast %0 : vector<1x32x2xf32> to vector<32x2xf32>
    %cst = arith.constant dense<0.000000e+00> : vector<2xf32>
    %2 = vector.multi_reduction <add>, %1, %cst [0] : vector<32x2xf32> to vector<2xf32>
    %3 = vector.shape_cast %2 : vector<2xf32> to vector<1x2xf32>
    %cst_2 = arith.constant 3.200000e+01 : f32
    %4 = vector.broadcast %cst_2 : f32 to vector<1x2xf32>
    %5 = arith.divf %3, %4 : vector<1x2xf32>
    %6 = vector.broadcast %5 : vector<1x2xf32> to vector<32x2xf32>
    %7 = arith.subf %1, %6 : vector<32x2xf32>
    %8 = arith.mulf %7, %7 : vector<32x2xf32>
    %cst_3 = arith.constant dense<0.000000e+00> : vector<2xf32>
    %9 = vector.multi_reduction <add>, %8, %cst_3 [0] : vector<32x2xf32> to vector<2xf32>
    %10 = vector.shape_cast %9 : vector<2xf32> to vector<1x2xf32>
    %cst_4 = arith.constant 3.200000e+01 : f32
    %11 = vector.broadcast %cst_4 : f32 to vector<1x2xf32>
    %12 = arith.divf %10, %11 : vector<1x2xf32>
    %13 = vector.broadcast %5 : vector<1x2xf32> to vector<32x2xf32>
    %14 = arith.subf %1, %13 : vector<32x2xf32>
    %cst_5 = arith.constant 9.99999974E-6 : f32
    %15 = vector.broadcast %cst_5 : f32 to vector<1x2xf32>
    %16 = arith.addf %12, %15 : vector<1x2xf32>
    %17 = math.rsqrt %16 : vector<1x2xf32>
    %18 = vector.broadcast %17 : vector<1x2xf32> to vector<32x2xf32>
    %19 = arith.mulf %14, %18 : vector<32x2xf32>
    %c0_6 = arith.constant 0 : index
    %c0_7 = arith.constant 0 : index
    %c0_8 = arith.constant 0 : index
    %20 = vector.load %arg2[%c0_6, %c0_7, %c0_8] : memref<1x48x3xf32, #tpu.memory_space<vmem>>, vector<1x48x3xf32>
    %21 = vector.shape_cast %20 : vector<1x48x3xf32> to vector<48x3xf32>
    %cst_9 = arith.constant dense<0.000000e+00> : vector<3xf32>
    %22 = vector.multi_reduction <add>, %21, %cst_9 [0] : vector<48x3xf32> to vector<3xf32>
    %23 = vector.shape_cast %22 : vector<3xf32> to vector<1x3xf32>
    %cst_10 = arith.constant 4.800000e+01 : f32
    %24 = vector.broadcast %cst_10 : f32 to vector<1x3xf32>
    %25 = arith.divf %23, %24 : vector<1x3xf32>
    %26 = vector.broadcast %25 : vector<1x3xf32> to vector<48x3xf32>
    %27 = arith.subf %21, %26 : vector<48x3xf32>
    %28 = arith.mulf %27, %27 : vector<48x3xf32>
    %cst_11 = arith.constant dense<0.000000e+00> : vector<3xf32>
    %29 = vector.multi_reduction <add>, %28, %cst_11 [0] : vector<48x3xf32> to vector<3xf32>
    %30 = vector.shape_cast %29 : vector<3xf32> to vector<1x3xf32>
    %cst_12 = arith.constant 4.800000e+01 : f32
    %31 = vector.broadcast %cst_12 : f32 to vector<1x3xf32>
    %32 = arith.divf %30, %31 : vector<1x3xf32>
    %33 = vector.broadcast %25 : vector<1x3xf32> to vector<48x3xf32>
    %34 = arith.subf %21, %33 : vector<48x3xf32>
    %cst_13 = arith.constant 9.99999974E-6 : f32
    %35 = vector.broadcast %cst_13 : f32 to vector<1x3xf32>
    %36 = arith.addf %32, %35 : vector<1x3xf32>
    %37 = math.rsqrt %36 : vector<1x3xf32>
    %38 = vector.broadcast %37 : vector<1x3xf32> to vector<48x3xf32>
    %39 = arith.mulf %34, %38 : vector<48x3xf32>
    %c0_14 = arith.constant 0 : index
    %c0_15 = arith.constant 0 : index
    %40 = vector.load %arg12[%c0_14, %c0_15] : memref<2x13xf32, #tpu.memory_space<vmem>>, vector<2x13xf32>
    %41 = vector.extract_strided_slice %19 {offsets = [0, 0], sizes = [32, 1], strides = [1, 1]} : vector<32x2xf32> to vector<32x1xf32>
    %42 = vector.extract_strided_slice %40 {offsets = [0, 0], sizes = [1, 13], strides = [1, 1]} : vector<2x13xf32> to vector<1x13xf32>
    %43 = vector.broadcast %41 : vector<32x1xf32> to vector<32x13xf32>
    %44 = vector.broadcast %42 : vector<1x13xf32> to vector<32x13xf32>
    %45 = arith.mulf %43, %44 : vector<32x13xf32>
    %46 = vector.extract_strided_slice %19 {offsets = [0, 1], sizes = [32, 1], strides = [1, 1]} : vector<32x2xf32> to vector<32x1xf32>
    %47 = vector.extract_strided_slice %40 {offsets = [1, 0], sizes = [1, 13], strides = [1, 1]} : vector<2x13xf32> to vector<1x13xf32>
    %48 = vector.broadcast %46 : vector<32x1xf32> to vector<32x13xf32>
    %49 = vector.broadcast %47 : vector<1x13xf32> to vector<32x13xf32>
    %50 = arith.mulf %48, %49 : vector<32x13xf32>
    %51 = arith.addf %45, %50 : vector<32x13xf32>
    %c0_16 = arith.constant 0 : index
    %c0_17 = arith.constant 0 : index
    %52 = vector.load %arg3[%c0_16, %c0_17] : memref<48x32xf32, #tpu.memory_space<vmem>>, vector<48x32xf32>
    %cst_18 = arith.constant dense<0.000000e+00> : vector<48x13xf32>
    %53 = tpu.matmul %52, %51, %cst_18 {dimension_numbers = #tpu.dot_dimension_numbers<[1], [0], [0], [1], [0, 0, 1, 1], [], []>} : vector<48x32xf32>, vector<32x13xf32>, vector<48x13xf32> -> vector<48x13xf32>
    %c0_19 = arith.constant 0 : index
    %c0_20 = arith.constant 0 : index
    %54 = vector.load %arg13[%c0_19, %c0_20] : memref<1x13xf32, #tpu.memory_space<vmem>>, vector<1x13xf32>
    %55 = vector.broadcast %54 : vector<1x13xf32> to vector<48x13xf32>
    %56 = arith.addf %53, %55 : vector<48x13xf32>
    %cst_21 = arith.constant 0.000000e+00 : f32
    %57 = vector.broadcast %cst_21 : f32 to vector<48x13xf32>
    %58 = arith.maximumf %56, %57 : vector<48x13xf32>
    %59 = tpu.concatenate %58, %39 in 1 : vector<48x13xf32>, vector<48x3xf32> -> vector<48x16xf32>
    %c0_22 = arith.constant 0 : index
    %c0_23 = arith.constant 0 : index
    %60 = vector.load %arg14[%c0_22, %c0_23] : memref<16x16xf32, #tpu.memory_space<vmem>>, vector<16x16xf32>
    %cst_24 = arith.constant dense<0.000000e+00> : vector<48x16xf32>
    %61 = tpu.matmul %59, %60, %cst_24 {dimension_numbers = #tpu.dot_dimension_numbers<[1], [0], [0], [1], [0, 0, 1, 1], [], []>} : vector<48x16xf32>, vector<16x16xf32>, vector<48x16xf32> -> vector<48x16xf32>
    %c0_25 = arith.constant 0 : index
    %c0_26 = arith.constant 0 : index
    %62 = vector.load %arg4[%c0_25, %c0_26] : memref<64x48xf32, #tpu.memory_space<vmem>>, vector<64x48xf32>
    %cst_27 = arith.constant dense<0.000000e+00> : vector<64x16xf32>
    %63 = tpu.matmul %62, %61, %cst_27 {dimension_numbers = #tpu.dot_dimension_numbers<[1], [0], [0], [1], [0, 0, 1, 1], [], []>} : vector<64x48xf32>, vector<48x16xf32>, vector<64x16xf32> -> vector<64x16xf32>
    %c0_28 = arith.constant 0 : index
    %c0_29 = arith.constant 0 : index
    %64 = vector.load %arg15[%c0_28, %c0_29] : memref<1x16xf32, #tpu.memory_space<vmem>>, vector<1x16xf32>
    %65 = vector.broadcast %64 : vector<1x16xf32> to vector<64x16xf32>
    %66 = arith.addf %63, %65 : vector<64x16xf32>
    %cst_30 = arith.constant 0.000000e+00 : f32
    %67 = vector.broadcast %cst_30 : f32 to vector<64x16xf32>
    %68 = arith.maximumf %66, %67 : vector<64x16xf32>
    %c0_31 = arith.constant 0 : index
    %c0_32 = arith.constant 0 : index
    %69 = vector.load %arg16[%c0_31, %c0_32] : memref<16x16xf32, #tpu.memory_space<vmem>>, vector<16x16xf32>
    %cst_33 = arith.constant dense<0.000000e+00> : vector<64x16xf32>
    %70 = tpu.matmul %68, %69, %cst_33 {dimension_numbers = #tpu.dot_dimension_numbers<[1], [0], [0], [1], [0, 0, 1, 1], [], []>} : vector<64x16xf32>, vector<16x16xf32>, vector<64x16xf32> -> vector<64x16xf32>
    %c0_34 = arith.constant 0 : index
    %c0_35 = arith.constant 0 : index
    %71 = vector.load %arg5[%c0_34, %c0_35] : memref<64x64xf32, #tpu.memory_space<vmem>>, vector<64x64xf32>
    %cst_36 = arith.constant dense<0.000000e+00> : vector<64x16xf32>
    %72 = tpu.matmul %71, %70, %cst_36 {dimension_numbers = #tpu.dot_dimension_numbers<[1], [0], [0], [1], [0, 0, 1, 1], [], []>} : vector<64x64xf32>, vector<64x16xf32>, vector<64x16xf32> -> vector<64x16xf32>
    %c0_37 = arith.constant 0 : index
    %c0_38 = arith.constant 0 : index
    %73 = vector.load %arg17[%c0_37, %c0_38] : memref<16x16xf32, #tpu.memory_space<vmem>>, vector<16x16xf32>
    %cst_39 = arith.constant dense<0.000000e+00> : vector<64x16xf32>
    %74 = tpu.matmul %68, %73, %cst_39 {dimension_numbers = #tpu.dot_dimension_numbers<[1], [0], [0], [1], [0, 0, 1, 1], [], []>} : vector<64x16xf32>, vector<16x16xf32>, vector<64x16xf32> -> vector<64x16xf32>
    %75 = arith.addf %72, %74 : vector<64x16xf32>
    %c0_40 = arith.constant 0 : index
    %c0_41 = arith.constant 0 : index
    %76 = vector.load %arg18[%c0_40, %c0_41] : memref<1x16xf32, #tpu.memory_space<vmem>>, vector<1x16xf32>
    %77 = vector.broadcast %76 : vector<1x16xf32> to vector<64x16xf32>
    %78 = arith.addf %75, %77 : vector<64x16xf32>
    %cst_42 = arith.constant 0.000000e+00 : f32
    %79 = vector.broadcast %cst_42 : f32 to vector<64x16xf32>
    %80 = arith.maximumf %78, %79 : vector<64x16xf32>
    %cst_43 = arith.constant dense<0.000000e+00> : vector<16xf32>
    %81 = vector.multi_reduction <add>, %80, %cst_43 [0] : vector<64x16xf32> to vector<16xf32>
    %82 = vector.shape_cast %81 : vector<16xf32> to vector<1x16xf32>
    %cst_44 = arith.constant 6.400000e+01 : f32
    %83 = vector.broadcast %cst_44 : f32 to vector<1x16xf32>
    %84 = arith.divf %82, %83 : vector<1x16xf32>
    %85 = vector.broadcast %84 : vector<1x16xf32> to vector<64x16xf32>
    %86 = arith.subf %80, %85 : vector<64x16xf32>
    %87 = arith.mulf %86, %86 : vector<64x16xf32>
    %cst_45 = arith.constant dense<0.000000e+00> : vector<16xf32>
    %88 = vector.multi_reduction <add>, %87, %cst_45 [0] : vector<64x16xf32> to vector<16xf32>
    %89 = vector.shape_cast %88 : vector<16xf32> to vector<1x16xf32>
    %cst_46 = arith.constant 6.400000e+01 : f32
    %90 = vector.broadcast %cst_46 : f32 to vector<1x16xf32>
    %91 = arith.divf %89, %90 : vector<1x16xf32>
    %92 = vector.broadcast %84 : vector<1x16xf32> to vector<64x16xf32>
    %93 = arith.subf %80, %92 : vector<64x16xf32>
    %cst_47 = arith.constant 9.99999974E-6 : f32
    %94 = vector.broadcast %cst_47 : f32 to vector<1x16xf32>
    %95 = arith.addf %91, %94 : vector<1x16xf32>
    %96 = math.rsqrt %95 : vector<1x16xf32>
    %97 = vector.broadcast %96 : vector<1x16xf32> to vector<64x16xf32>
    %98 = arith.mulf %93, %97 : vector<64x16xf32>
    %c0_48 = arith.constant 0 : index
    %c0_49 = arith.constant 0 : index
    %99 = vector.load %arg9[%c0_48, %c0_49] : memref<32x64xf32, #tpu.memory_space<vmem>>, vector<32x64xf32>
    %cst_50 = arith.constant dense<0.000000e+00> : vector<32x16xf32>
    %100 = tpu.matmul %99, %98, %cst_50 {dimension_numbers = #tpu.dot_dimension_numbers<[1], [0], [0], [1], [0, 0, 1, 1], [], []>} : vector<32x64xf32>, vector<64x16xf32>, vector<32x16xf32> -> vector<32x16xf32>
    %c0_51 = arith.constant 0 : index
    %c0_52 = arith.constant 0 : index
    %101 = vector.load %arg19[%c0_51, %c0_52] : memref<16x16xf32, #tpu.memory_space<vmem>>, vector<16x16xf32>
    %cst_53 = arith.constant dense<0.000000e+00> : vector<32x16xf32>
    %102 = tpu.matmul %100, %101, %cst_53 {dimension_numbers = #tpu.dot_dimension_numbers<[1], [0], [0], [1], [0, 0, 1, 1], [], []>} : vector<32x16xf32>, vector<16x16xf32>, vector<32x16xf32> -> vector<32x16xf32>
    %c0_54 = arith.constant 0 : index
    %c0_55 = arith.constant 0 : index
    %103 = vector.load %arg6[%c0_54, %c0_55] : memref<32x32xf32, #tpu.memory_space<vmem>>, vector<32x32xf32>
    %cst_56 = arith.constant dense<0.000000e+00> : vector<32x16xf32>
    %104 = tpu.matmul %103, %102, %cst_56 {dimension_numbers = #tpu.dot_dimension_numbers<[1], [0], [0], [1], [0, 0, 1, 1], [], []>} : vector<32x32xf32>, vector<32x16xf32>, vector<32x16xf32> -> vector<32x16xf32>
    %c0_57 = arith.constant 0 : index
    %c0_58 = arith.constant 0 : index
    %105 = vector.load %arg20[%c0_57, %c0_58] : memref<16x16xf32, #tpu.memory_space<vmem>>, vector<16x16xf32>
    %cst_59 = arith.constant dense<0.000000e+00> : vector<32x16xf32>
    %106 = tpu.matmul %100, %105, %cst_59 {dimension_numbers = #tpu.dot_dimension_numbers<[1], [0], [0], [1], [0, 0, 1, 1], [], []>} : vector<32x16xf32>, vector<16x16xf32>, vector<32x16xf32> -> vector<32x16xf32>
    %107 = arith.addf %104, %106 : vector<32x16xf32>
    %c0_60 = arith.constant 0 : index
    %c0_61 = arith.constant 0 : index
    %108 = vector.load %arg21[%c0_60, %c0_61] : memref<1x16xf32, #tpu.memory_space<vmem>>, vector<1x16xf32>
    %109 = vector.broadcast %108 : vector<1x16xf32> to vector<32x16xf32>
    %110 = arith.addf %107, %109 : vector<32x16xf32>
    %cst_62 = arith.constant 0.000000e+00 : f32
    %111 = vector.broadcast %cst_62 : f32 to vector<32x16xf32>
    %112 = arith.maximumf %110, %111 : vector<32x16xf32>
    %c0_63 = arith.constant 0 : index
    %c0_64 = arith.constant 0 : index
    %113 = vector.load %arg22[%c0_63, %c0_64] : memref<16x16xf32, #tpu.memory_space<vmem>>, vector<16x16xf32>
    %cst_65 = arith.constant dense<0.000000e+00> : vector<32x16xf32>
    %114 = tpu.matmul %112, %113, %cst_65 {dimension_numbers = #tpu.dot_dimension_numbers<[1], [0], [0], [1], [0, 0, 1, 1], [], []>} : vector<32x16xf32>, vector<16x16xf32>, vector<32x16xf32> -> vector<32x16xf32>
    %c0_66 = arith.constant 0 : index
    %c0_67 = arith.constant 0 : index
    %115 = vector.load %arg6[%c0_66, %c0_67] : memref<32x32xf32, #tpu.memory_space<vmem>>, vector<32x32xf32>
    %cst_68 = arith.constant dense<0.000000e+00> : vector<32x16xf32>
    %116 = tpu.matmul %115, %114, %cst_68 {dimension_numbers = #tpu.dot_dimension_numbers<[1], [0], [0], [1], [0, 0, 1, 1], [], []>} : vector<32x32xf32>, vector<32x16xf32>, vector<32x16xf32> -> vector<32x16xf32>
    %c0_69 = arith.constant 0 : index
    %c0_70 = arith.constant 0 : index
    %117 = vector.load %arg23[%c0_69, %c0_70] : memref<16x16xf32, #tpu.memory_space<vmem>>, vector<16x16xf32>
    %cst_71 = arith.constant dense<0.000000e+00> : vector<32x16xf32>
    %118 = tpu.matmul %112, %117, %cst_71 {dimension_numbers = #tpu.dot_dimension_numbers<[1], [0], [0], [1], [0, 0, 1, 1], [], []>} : vector<32x16xf32>, vector<16x16xf32>, vector<32x16xf32> -> vector<32x16xf32>
    %119 = arith.addf %116, %118 : vector<32x16xf32>
    %c0_72 = arith.constant 0 : index
    %c0_73 = arith.constant 0 : index
    %120 = vector.load %arg24[%c0_72, %c0_73] : memref<1x16xf32, #tpu.memory_space<vmem>>, vector<1x16xf32>
    %121 = vector.broadcast %120 : vector<1x16xf32> to vector<32x16xf32>
    %122 = arith.addf %119, %121 : vector<32x16xf32>
    %cst_74 = arith.constant 0.000000e+00 : f32
    %123 = vector.broadcast %cst_74 : f32 to vector<32x16xf32>
    %124 = arith.maximumf %122, %123 : vector<32x16xf32>
    %cst_75 = arith.constant dense<0.000000e+00> : vector<16xf32>
    %125 = vector.multi_reduction <add>, %124, %cst_75 [0] : vector<32x16xf32> to vector<16xf32>
    %126 = vector.shape_cast %125 : vector<16xf32> to vector<1x16xf32>
    %cst_76 = arith.constant 3.200000e+01 : f32
    %127 = vector.broadcast %cst_76 : f32 to vector<1x16xf32>
    %128 = arith.divf %126, %127 : vector<1x16xf32>
    %129 = vector.broadcast %128 : vector<1x16xf32> to vector<32x16xf32>
    %130 = arith.subf %124, %129 : vector<32x16xf32>
    %131 = arith.mulf %130, %130 : vector<32x16xf32>
    %cst_77 = arith.constant dense<0.000000e+00> : vector<16xf32>
    %132 = vector.multi_reduction <add>, %131, %cst_77 [0] : vector<32x16xf32> to vector<16xf32>
    %133 = vector.shape_cast %132 : vector<16xf32> to vector<1x16xf32>
    %cst_78 = arith.constant 3.200000e+01 : f32
    %134 = vector.broadcast %cst_78 : f32 to vector<1x16xf32>
    %135 = arith.divf %133, %134 : vector<1x16xf32>
    %136 = vector.broadcast %128 : vector<1x16xf32> to vector<32x16xf32>
    %137 = arith.subf %124, %136 : vector<32x16xf32>
    %cst_79 = arith.constant 9.99999974E-6 : f32
    %138 = vector.broadcast %cst_79 : f32 to vector<1x16xf32>
    %139 = arith.addf %135, %138 : vector<1x16xf32>
    %140 = math.rsqrt %139 : vector<1x16xf32>
    %141 = vector.broadcast %140 : vector<1x16xf32> to vector<32x16xf32>
    %142 = arith.mulf %137, %141 : vector<32x16xf32>
    %c0_80 = arith.constant 0 : index
    %c0_81 = arith.constant 0 : index
    %143 = vector.load %arg10[%c0_80, %c0_81] : memref<16x32xf32, #tpu.memory_space<vmem>>, vector<16x32xf32>
    %cst_82 = arith.constant dense<0.000000e+00> : vector<16x16xf32>
    %144 = tpu.matmul %143, %142, %cst_82 {dimension_numbers = #tpu.dot_dimension_numbers<[1], [0], [0], [1], [0, 0, 1, 1], [], []>} : vector<16x32xf32>, vector<32x16xf32>, vector<16x16xf32> -> vector<16x16xf32>
    %c0_83 = arith.constant 0 : index
    %c0_84 = arith.constant 0 : index
    %145 = vector.load %arg25[%c0_83, %c0_84] : memref<16x16xf32, #tpu.memory_space<vmem>>, vector<16x16xf32>
    %cst_85 = arith.constant dense<0.000000e+00> : vector<16x16xf32>
    %146 = tpu.matmul %144, %145, %cst_85 {dimension_numbers = #tpu.dot_dimension_numbers<[1], [0], [0], [1], [0, 0, 1, 1], [], []>} : vector<16x16xf32>, vector<16x16xf32>, vector<16x16xf32> -> vector<16x16xf32>
    %c0_86 = arith.constant 0 : index
    %c0_87 = arith.constant 0 : index
    %147 = vector.load %arg7[%c0_86, %c0_87] : memref<16x16xf32, #tpu.memory_space<vmem>>, vector<16x16xf32>
    %cst_88 = arith.constant dense<0.000000e+00> : vector<16x16xf32>
    %148 = tpu.matmul %147, %146, %cst_88 {dimension_numbers = #tpu.dot_dimension_numbers<[1], [0], [0], [1], [0, 0, 1, 1], [], []>} : vector<16x16xf32>, vector<16x16xf32>, vector<16x16xf32> -> vector<16x16xf32>
    %c0_89 = arith.constant 0 : index
    %c0_90 = arith.constant 0 : index
    %149 = vector.load %arg26[%c0_89, %c0_90] : memref<16x16xf32, #tpu.memory_space<vmem>>, vector<16x16xf32>
    %cst_91 = arith.constant dense<0.000000e+00> : vector<16x16xf32>
    %150 = tpu.matmul %144, %149, %cst_91 {dimension_numbers = #tpu.dot_dimension_numbers<[1], [0], [0], [1], [0, 0, 1, 1], [], []>} : vector<16x16xf32>, vector<16x16xf32>, vector<16x16xf32> -> vector<16x16xf32>
    %151 = arith.addf %148, %150 : vector<16x16xf32>
    %c0_92 = arith.constant 0 : index
    %c0_93 = arith.constant 0 : index
    %152 = vector.load %arg27[%c0_92, %c0_93] : memref<1x16xf32, #tpu.memory_space<vmem>>, vector<1x16xf32>
    %153 = vector.broadcast %152 : vector<1x16xf32> to vector<16x16xf32>
    %154 = arith.addf %151, %153 : vector<16x16xf32>
    %cst_94 = arith.constant 0.000000e+00 : f32
    %155 = vector.broadcast %cst_94 : f32 to vector<16x16xf32>
    %156 = arith.maximumf %154, %155 : vector<16x16xf32>
    %c0_95 = arith.constant 0 : index
    %c0_96 = arith.constant 0 : index
    %157 = vector.load %arg28[%c0_95, %c0_96] : memref<16x16xf32, #tpu.memory_space<vmem>>, vector<16x16xf32>
    %cst_97 = arith.constant dense<0.000000e+00> : vector<16x16xf32>
    %158 = tpu.matmul %156, %157, %cst_97 {dimension_numbers = #tpu.dot_dimension_numbers<[1], [0], [0], [1], [0, 0, 1, 1], [], []>} : vector<16x16xf32>, vector<16x16xf32>, vector<16x16xf32> -> vector<16x16xf32>
    %c0_98 = arith.constant 0 : index
    %c0_99 = arith.constant 0 : index
    %159 = vector.load %arg7[%c0_98, %c0_99] : memref<16x16xf32, #tpu.memory_space<vmem>>, vector<16x16xf32>
    %cst_100 = arith.constant dense<0.000000e+00> : vector<16x16xf32>
    %160 = tpu.matmul %159, %158, %cst_100 {dimension_numbers = #tpu.dot_dimension_numbers<[1], [0], [0], [1], [0, 0, 1, 1], [], []>} : vector<16x16xf32>, vector<16x16xf32>, vector<16x16xf32> -> vector<16x16xf32>
    %c0_101 = arith.constant 0 : index
    %c0_102 = arith.constant 0 : index
    %161 = vector.load %arg29[%c0_101, %c0_102] : memref<16x16xf32, #tpu.memory_space<vmem>>, vector<16x16xf32>
    %cst_103 = arith.constant dense<0.000000e+00> : vector<16x16xf32>
    %162 = tpu.matmul %156, %161, %cst_103 {dimension_numbers = #tpu.dot_dimension_numbers<[1], [0], [0], [1], [0, 0, 1, 1], [], []>} : vector<16x16xf32>, vector<16x16xf32>, vector<16x16xf32> -> vector<16x16xf32>
    %163 = arith.addf %160, %162 : vector<16x16xf32>
    %c0_104 = arith.constant 0 : index
    %c0_105 = arith.constant 0 : index
    %164 = vector.load %arg30[%c0_104, %c0_105] : memref<1x16xf32, #tpu.memory_space<vmem>>, vector<1x16xf32>
    %165 = vector.broadcast %164 : vector<1x16xf32> to vector<16x16xf32>
    %166 = arith.addf %163, %165 : vector<16x16xf32>
    %cst_106 = arith.constant 0.000000e+00 : f32
    %167 = vector.broadcast %cst_106 : f32 to vector<16x16xf32>
    %168 = arith.maximumf %166, %167 : vector<16x16xf32>
    %cst_107 = arith.constant dense<0.000000e+00> : vector<16xf32>
    %169 = vector.multi_reduction <add>, %168, %cst_107 [0] : vector<16x16xf32> to vector<16xf32>
    %170 = vector.shape_cast %169 : vector<16xf32> to vector<1x16xf32>
    %cst_108 = arith.constant 1.600000e+01 : f32
    %171 = vector.broadcast %cst_108 : f32 to vector<1x16xf32>
    %172 = arith.divf %170, %171 : vector<1x16xf32>
    %173 = vector.broadcast %172 : vector<1x16xf32> to vector<16x16xf32>
    %174 = arith.subf %168, %173 : vector<16x16xf32>
    %175 = arith.mulf %174, %174 : vector<16x16xf32>
    %cst_109 = arith.constant dense<0.000000e+00> : vector<16xf32>
    %176 = vector.multi_reduction <add>, %175, %cst_109 [0] : vector<16x16xf32> to vector<16xf32>
    %177 = vector.shape_cast %176 : vector<16xf32> to vector<1x16xf32>
    %cst_110 = arith.constant 1.600000e+01 : f32
    %178 = vector.broadcast %cst_110 : f32 to vector<1x16xf32>
    %179 = arith.divf %177, %178 : vector<1x16xf32>
    %180 = vector.broadcast %172 : vector<1x16xf32> to vector<16x16xf32>
    %181 = arith.subf %168, %180 : vector<16x16xf32>
    %cst_111 = arith.constant 9.99999974E-6 : f32
    %182 = vector.broadcast %cst_111 : f32 to vector<1x16xf32>
    %183 = arith.addf %179, %182 : vector<1x16xf32>
    %184 = math.rsqrt %183 : vector<1x16xf32>
    %185 = vector.broadcast %184 : vector<1x16xf32> to vector<16x16xf32>
    %186 = arith.mulf %181, %185 : vector<16x16xf32>
    %c0_112 = arith.constant 0 : index
    %c0_113 = arith.constant 0 : index
    %187 = vector.load %arg11[%c0_112, %c0_113] : memref<8x16xf32, #tpu.memory_space<vmem>>, vector<8x16xf32>
    %cst_114 = arith.constant dense<0.000000e+00> : vector<8x16xf32>
    %188 = tpu.matmul %187, %186, %cst_114 {dimension_numbers = #tpu.dot_dimension_numbers<[1], [0], [0], [1], [0, 0, 1, 1], [], []>} : vector<8x16xf32>, vector<16x16xf32>, vector<8x16xf32> -> vector<8x16xf32>
    %c0_115 = arith.constant 0 : index
    %c0_116 = arith.constant 0 : index
    %189 = vector.load %arg31[%c0_115, %c0_116] : memref<16x32xf32, #tpu.memory_space<vmem>>, vector<16x32xf32>
    %cst_117 = arith.constant dense<0.000000e+00> : vector<8x32xf32>
    %190 = tpu.matmul %188, %189, %cst_117 {dimension_numbers = #tpu.dot_dimension_numbers<[1], [0], [0], [1], [0, 0, 1, 1], [], []>} : vector<8x16xf32>, vector<16x32xf32>, vector<8x32xf32> -> vector<8x32xf32>
    %c0_118 = arith.constant 0 : index
    %c0_119 = arith.constant 0 : index
    %191 = vector.load %arg8[%c0_118, %c0_119] : memref<8x8xf32, #tpu.memory_space<vmem>>, vector<8x8xf32>
    %cst_120 = arith.constant dense<0.000000e+00> : vector<8x32xf32>
    %192 = tpu.matmul %191, %190, %cst_120 {dimension_numbers = #tpu.dot_dimension_numbers<[1], [0], [0], [1], [0, 0, 1, 1], [], []>} : vector<8x8xf32>, vector<8x32xf32>, vector<8x32xf32> -> vector<8x32xf32>
    %c0_121 = arith.constant 0 : index
    %c0_122 = arith.constant 0 : index
    %193 = vector.load %arg32[%c0_121, %c0_122] : memref<16x32xf32, #tpu.memory_space<vmem>>, vector<16x32xf32>
    %cst_123 = arith.constant dense<0.000000e+00> : vector<8x32xf32>
    %194 = tpu.matmul %188, %193, %cst_123 {dimension_numbers = #tpu.dot_dimension_numbers<[1], [0], [0], [1], [0, 0, 1, 1], [], []>} : vector<8x16xf32>, vector<16x32xf32>, vector<8x32xf32> -> vector<8x32xf32>
    %195 = arith.addf %192, %194 : vector<8x32xf32>
    %c0_124 = arith.constant 0 : index
    %c0_125 = arith.constant 0 : index
    %196 = vector.load %arg33[%c0_124, %c0_125] : memref<1x32xf32, #tpu.memory_space<vmem>>, vector<1x32xf32>
    %197 = vector.broadcast %196 : vector<1x32xf32> to vector<8x32xf32>
    %198 = arith.addf %195, %197 : vector<8x32xf32>
    %cst_126 = arith.constant 0.000000e+00 : f32
    %199 = vector.broadcast %cst_126 : f32 to vector<8x32xf32>
    %200 = arith.maximumf %198, %199 : vector<8x32xf32>
    %c0_127 = arith.constant 0 : index
    %c0_128 = arith.constant 0 : index
    %201 = vector.load %arg34[%c0_127, %c0_128] : memref<32x32xf32, #tpu.memory_space<vmem>>, vector<32x32xf32>
    %cst_129 = arith.constant dense<0.000000e+00> : vector<8x32xf32>
    %202 = tpu.matmul %200, %201, %cst_129 {dimension_numbers = #tpu.dot_dimension_numbers<[1], [0], [0], [1], [0, 0, 1, 1], [], []>} : vector<8x32xf32>, vector<32x32xf32>, vector<8x32xf32> -> vector<8x32xf32>
    %c0_130 = arith.constant 0 : index
    %c0_131 = arith.constant 0 : index
    %203 = vector.load %arg8[%c0_130, %c0_131] : memref<8x8xf32, #tpu.memory_space<vmem>>, vector<8x8xf32>
    %cst_132 = arith.constant dense<0.000000e+00> : vector<8x32xf32>
    %204 = tpu.matmul %203, %202, %cst_132 {dimension_numbers = #tpu.dot_dimension_numbers<[1], [0], [0], [1], [0, 0, 1, 1], [], []>} : vector<8x8xf32>, vector<8x32xf32>, vector<8x32xf32> -> vector<8x32xf32>
    %c0_133 = arith.constant 0 : index
    %c0_134 = arith.constant 0 : index
    %205 = vector.load %arg35[%c0_133, %c0_134] : memref<32x32xf32, #tpu.memory_space<vmem>>, vector<32x32xf32>
    %cst_135 = arith.constant dense<0.000000e+00> : vector<8x32xf32>
    %206 = tpu.matmul %200, %205, %cst_135 {dimension_numbers = #tpu.dot_dimension_numbers<[1], [0], [0], [1], [0, 0, 1, 1], [], []>} : vector<8x32xf32>, vector<32x32xf32>, vector<8x32xf32> -> vector<8x32xf32>
    %207 = arith.addf %204, %206 : vector<8x32xf32>
    %c0_136 = arith.constant 0 : index
    %c0_137 = arith.constant 0 : index
    %208 = vector.load %arg36[%c0_136, %c0_137] : memref<1x32xf32, #tpu.memory_space<vmem>>, vector<1x32xf32>
    %209 = vector.broadcast %208 : vector<1x32xf32> to vector<8x32xf32>
    %210 = arith.addf %207, %209 : vector<8x32xf32>
    %cst_138 = arith.constant 0.000000e+00 : f32
    %211 = vector.broadcast %cst_138 : f32 to vector<8x32xf32>
    %212 = arith.maximumf %210, %211 : vector<8x32xf32>
    %cst_139 = arith.constant dense<0.000000e+00> : vector<32xf32>
    %213 = vector.multi_reduction <add>, %212, %cst_139 [0] : vector<8x32xf32> to vector<32xf32>
    %214 = vector.shape_cast %213 : vector<32xf32> to vector<1x32xf32>
    %cst_140 = arith.constant 8.000000e+00 : f32
    %215 = vector.broadcast %cst_140 : f32 to vector<1x32xf32>
    %216 = arith.divf %214, %215 : vector<1x32xf32>
    %217 = vector.broadcast %216 : vector<1x32xf32> to vector<8x32xf32>
    %218 = arith.subf %212, %217 : vector<8x32xf32>
    %219 = arith.mulf %218, %218 : vector<8x32xf32>
    %cst_141 = arith.constant dense<0.000000e+00> : vector<32xf32>
    %220 = vector.multi_reduction <add>, %219, %cst_141 [0] : vector<8x32xf32> to vector<32xf32>
    %221 = vector.shape_cast %220 : vector<32xf32> to vector<1x32xf32>
    %cst_142 = arith.constant 8.000000e+00 : f32
    %222 = vector.broadcast %cst_142 : f32 to vector<1x32xf32>
    %223 = arith.divf %221, %222 : vector<1x32xf32>
    %224 = vector.broadcast %216 : vector<1x32xf32> to vector<8x32xf32>
    %225 = arith.subf %212, %224 : vector<8x32xf32>
    %cst_143 = arith.constant 9.99999974E-6 : f32
    %226 = vector.broadcast %cst_143 : f32 to vector<1x32xf32>
    %227 = arith.addf %223, %226 : vector<1x32xf32>
    %228 = math.rsqrt %227 : vector<1x32xf32>
    %229 = vector.broadcast %228 : vector<1x32xf32> to vector<8x32xf32>
    %230 = arith.mulf %225, %229 : vector<8x32xf32>
    %c0_144 = arith.constant 0 : index
    %c0_145 = arith.constant 0 : index
    %231 = vector.load %arg37[%c0_144, %c0_145] : memref<32x32xf32, #tpu.memory_space<vmem>>, vector<32x32xf32>
    %cst_146 = arith.constant dense<0.000000e+00> : vector<8x32xf32>
    %232 = tpu.matmul %230, %231, %cst_146 {dimension_numbers = #tpu.dot_dimension_numbers<[1], [0], [0], [1], [0, 0, 1, 1], [], []>} : vector<8x32xf32>, vector<32x32xf32>, vector<8x32xf32> -> vector<8x32xf32>
    %c0_147 = arith.constant 0 : index
    %c0_148 = arith.constant 0 : index
    %233 = vector.load %arg8[%c0_147, %c0_148] : memref<8x8xf32, #tpu.memory_space<vmem>>, vector<8x8xf32>
    %cst_149 = arith.constant dense<0.000000e+00> : vector<8x32xf32>
    %234 = tpu.matmul %233, %232, %cst_149 {dimension_numbers = #tpu.dot_dimension_numbers<[1], [0], [0], [1], [0, 0, 1, 1], [], []>} : vector<8x8xf32>, vector<8x32xf32>, vector<8x32xf32> -> vector<8x32xf32>
    %c0_150 = arith.constant 0 : index
    %c0_151 = arith.constant 0 : index
    %235 = vector.load %arg38[%c0_150, %c0_151] : memref<32x32xf32, #tpu.memory_space<vmem>>, vector<32x32xf32>
    %cst_152 = arith.constant dense<0.000000e+00> : vector<8x32xf32>
    %236 = tpu.matmul %230, %235, %cst_152 {dimension_numbers = #tpu.dot_dimension_numbers<[1], [0], [0], [1], [0, 0, 1, 1], [], []>} : vector<8x32xf32>, vector<32x32xf32>, vector<8x32xf32> -> vector<8x32xf32>
    %237 = arith.addf %234, %236 : vector<8x32xf32>
    %c0_153 = arith.constant 0 : index
    %c0_154 = arith.constant 0 : index
    %238 = vector.load %arg39[%c0_153, %c0_154] : memref<1x32xf32, #tpu.memory_space<vmem>>, vector<1x32xf32>
    %239 = vector.broadcast %238 : vector<1x32xf32> to vector<8x32xf32>
    %240 = arith.addf %237, %239 : vector<8x32xf32>
    %cst_155 = arith.constant 0.000000e+00 : f32
    %241 = vector.broadcast %cst_155 : f32 to vector<8x32xf32>
    %242 = arith.maximumf %240, %241 : vector<8x32xf32>
    %c0_156 = arith.constant 0 : index
    %c0_157 = arith.constant 0 : index
    %243 = vector.load %arg40[%c0_156, %c0_157] : memref<32x32xf32, #tpu.memory_space<vmem>>, vector<32x32xf32>
    %cst_158 = arith.constant dense<0.000000e+00> : vector<8x32xf32>
    %244 = tpu.matmul %242, %243, %cst_158 {dimension_numbers = #tpu.dot_dimension_numbers<[1], [0], [0], [1], [0, 0, 1, 1], [], []>} : vector<8x32xf32>, vector<32x32xf32>, vector<8x32xf32> -> vector<8x32xf32>
    %c0_159 = arith.constant 0 : index
    %c0_160 = arith.constant 0 : index
    %245 = vector.load %arg8[%c0_159, %c0_160] : memref<8x8xf32, #tpu.memory_space<vmem>>, vector<8x8xf32>
    %cst_161 = arith.constant dense<0.000000e+00> : vector<8x32xf32>
    %246 = tpu.matmul %245, %244, %cst_161 {dimension_numbers = #tpu.dot_dimension_numbers<[1], [0], [0], [1], [0, 0, 1, 1], [], []>} : vector<8x8xf32>, vector<8x32xf32>, vector<8x32xf32> -> vector<8x32xf32>
    %c0_162 = arith.constant 0 : index
    %c0_163 = arith.constant 0 : index
    %247 = vector.load %arg41[%c0_162, %c0_163] : memref<32x32xf32, #tpu.memory_space<vmem>>, vector<32x32xf32>
    %cst_164 = arith.constant dense<0.000000e+00> : vector<8x32xf32>
    %248 = tpu.matmul %242, %247, %cst_164 {dimension_numbers = #tpu.dot_dimension_numbers<[1], [0], [0], [1], [0, 0, 1, 1], [], []>} : vector<8x32xf32>, vector<32x32xf32>, vector<8x32xf32> -> vector<8x32xf32>
    %249 = arith.addf %246, %248 : vector<8x32xf32>
    %c0_165 = arith.constant 0 : index
    %c0_166 = arith.constant 0 : index
    %250 = vector.load %arg42[%c0_165, %c0_166] : memref<1x32xf32, #tpu.memory_space<vmem>>, vector<1x32xf32>
    %251 = vector.broadcast %250 : vector<1x32xf32> to vector<8x32xf32>
    %252 = arith.addf %249, %251 : vector<8x32xf32>
    %cst_167 = arith.constant 0.000000e+00 : f32
    %253 = vector.broadcast %cst_167 : f32 to vector<8x32xf32>
    %254 = arith.maximumf %252, %253 : vector<8x32xf32>
    %cst_168 = arith.constant dense<0.000000e+00> : vector<32xf32>
    %255 = vector.multi_reduction <add>, %254, %cst_168 [0] : vector<8x32xf32> to vector<32xf32>
    %256 = vector.shape_cast %255 : vector<32xf32> to vector<1x32xf32>
    %cst_169 = arith.constant 8.000000e+00 : f32
    %257 = vector.broadcast %cst_169 : f32 to vector<1x32xf32>
    %258 = arith.divf %256, %257 : vector<1x32xf32>
    %259 = vector.broadcast %258 : vector<1x32xf32> to vector<8x32xf32>
    %260 = arith.subf %254, %259 : vector<8x32xf32>
    %261 = arith.mulf %260, %260 : vector<8x32xf32>
    %cst_170 = arith.constant dense<0.000000e+00> : vector<32xf32>
    %262 = vector.multi_reduction <add>, %261, %cst_170 [0] : vector<8x32xf32> to vector<32xf32>
    %263 = vector.shape_cast %262 : vector<32xf32> to vector<1x32xf32>
    %cst_171 = arith.constant 8.000000e+00 : f32
    %264 = vector.broadcast %cst_171 : f32 to vector<1x32xf32>
    %265 = arith.divf %263, %264 : vector<1x32xf32>
    %266 = vector.broadcast %258 : vector<1x32xf32> to vector<8x32xf32>
    %267 = arith.subf %254, %266 : vector<8x32xf32>
    %cst_172 = arith.constant 9.99999974E-6 : f32
    %268 = vector.broadcast %cst_172 : f32 to vector<1x32xf32>
    %269 = arith.addf %265, %268 : vector<1x32xf32>
    %270 = math.rsqrt %269 : vector<1x32xf32>
    %271 = vector.broadcast %270 : vector<1x32xf32> to vector<8x32xf32>
    %272 = arith.mulf %267, %271 : vector<8x32xf32>
    %cst_173 = arith.constant dense<0.000000e+00> : vector<32xf32>
    %273 = vector.multi_reduction <add>, %272, %cst_173 [0] : vector<8x32xf32> to vector<32xf32>
    %274 = vector.shape_cast %273 : vector<32xf32> to vector<1x32xf32>
    %cst_174 = arith.constant 8.000000e+00 : f32
    %275 = vector.broadcast %cst_174 : f32 to vector<1x32xf32>
    %276 = arith.divf %274, %275 : vector<1x32xf32>
    %277 = vector.broadcast %276 : vector<1x32xf32> to vector<8x32xf32>
    %278 = arith.subf %272, %277 : vector<8x32xf32>
    %279 = arith.mulf %278, %278 : vector<8x32xf32>
    %cst_175 = arith.constant dense<0.000000e+00> : vector<32xf32>
    %280 = vector.multi_reduction <add>, %279, %cst_175 [0] : vector<8x32xf32> to vector<32xf32>
    %281 = vector.shape_cast %280 : vector<32xf32> to vector<1x32xf32>
    %cst_176 = arith.constant 7.000000e+00 : f32
    %282 = vector.broadcast %cst_176 : f32 to vector<1x32xf32>
    %283 = arith.divf %281, %282 : vector<1x32xf32>
    %284 = math.sqrt %283 : vector<1x32xf32>
    %c0_177 = arith.constant 0 : index
    %c0_178 = arith.constant 0 : index
    %285 = vector.load %arg43[%c0_177, %c0_178] : memref<32x96xf32, #tpu.memory_space<vmem>>, vector<32x96xf32>
    %cst_179 = arith.constant dense<0.000000e+00> : vector<1x96xf32>
    %286 = tpu.matmul %284, %285, %cst_179 {dimension_numbers = #tpu.dot_dimension_numbers<[1], [0], [0], [1], [0, 0, 1, 1], [], []>} : vector<1x32xf32>, vector<32x96xf32>, vector<1x96xf32> -> vector<1x96xf32>
    %c0_180 = arith.constant 0 : index
    %c0_181 = arith.constant 0 : index
    %287 = vector.load %arg44[%c0_180, %c0_181] : memref<1x96xf32, #tpu.memory_space<vmem>>, vector<1x96xf32>
    %288 = arith.addf %286, %287 : vector<1x96xf32>
    %cst_182 = arith.constant 0.000000e+00 : f32
    %289 = vector.broadcast %cst_182 : f32 to vector<1x96xf32>
    %290 = arith.maximumf %288, %289 : vector<1x96xf32>
    %c0_183 = arith.constant 0 : index
    %c0_184 = arith.constant 0 : index
    %291 = vector.load %arg45[%c0_183, %c0_184] : memref<96x1xf32, #tpu.memory_space<vmem>>, vector<96x1xf32>
    %cst_185 = arith.constant dense<0.000000e+00> : vector<1x1xf32>
    %292 = tpu.matmul %290, %291, %cst_185 {dimension_numbers = #tpu.dot_dimension_numbers<[1], [0], [0], [1], [0, 0, 1, 1], [], []>} : vector<1x96xf32>, vector<96x1xf32>, vector<1x1xf32> -> vector<1x1xf32>
    %c0_186 = arith.constant 0 : index
    %c0_187 = arith.constant 0 : index
    %293 = vector.load %arg46[%c0_186, %c0_187] : memref<1x1xf32, #tpu.memory_space<vmem>>, vector<1x1xf32>
    %294 = arith.addf %292, %293 : vector<1x1xf32>
    %c0_188 = arith.constant 0 : index
    %c0_189 = arith.constant 0 : index
    %c0_190 = arith.constant 0 : index
    %295 = vector.load %arg47[%c0_188, %c0_189, %c0_190] : memref<1x1x1xf32, #tpu.memory_space<vmem>>, vector<1x1x1xf32>
    %296 = vector.shape_cast %295 : vector<1x1x1xf32> to vector<1x1xf32>
    %297 = vector.shape_cast %294 : vector<1x1xf32> to vector<1x1x1xf32>
    tpu.vector_store %arg47[%c0_188, %c0_189, %c0_190], %297 {strides = array<i32>} : memref<1x1x1xf32, #tpu.memory_space<vmem>>, vector<1x1x1xf32>,
    return
  }
  func.func @transform_0(%arg0: i32) -> (i32, i32, i32) {
    %c0_i32 = arith.constant 0 : i32
    %c0_i32_0 = arith.constant 0 : i32
    %c0_i32_1 = arith.constant 0 : i32
    return %arg0, %c0_i32, %c0_i32_0 : i32, i32, i32
  }
  func.func @transform_1(%arg0: i32) -> (i32, i32, i32) {
    %c0_i32 = arith.constant 0 : i32
    %c0_i32_0 = arith.constant 0 : i32
    %c0_i32_1 = arith.constant 0 : i32
    return %arg0, %c0_i32, %c0_i32_0 : i32, i32, i32
  }
  func.func @transform_2(%arg0: i32) -> (i32, i32) {
    %c0_i32 = arith.constant 0 : i32
    %c0_i32_0 = arith.constant 0 : i32
    %c0_i32_1 = arith.constant 0 : i32
    return %c0_i32, %c0_i32_0 : i32, i32
  }
  func.func @transform_3(%arg0: i32) -> (i32, i32) {
    %c0_i32 = arith.constant 0 : i32
    %c0_i32_0 = arith.constant 0 : i32
    %c0_i32_1 = arith.constant 0 : i32
    return %c0_i32, %c0_i32_0 : i32, i32
  }
  func.func @transform_4(%arg0: i32) -> (i32, i32) {
    %c0_i32 = arith.constant 0 : i32
    %c0_i32_0 = arith.constant 0 : i32
    %c0_i32_1 = arith.constant 0 : i32
    return %c0_i32, %c0_i32_0 : i32, i32
  }
  func.func @transform_5(%arg0: i32) -> (i32, i32) {
    %c0_i32 = arith.constant 0 : i32
    %c0_i32_0 = arith.constant 0 : i32
    %c0_i32_1 = arith.constant 0 : i32
    return %c0_i32, %c0_i32_0 : i32, i32
  }
  func.func @transform_6(%arg0: i32) -> (i32, i32) {
    %c0_i32 = arith.constant 0 : i32
    %c0_i32_0 = arith.constant 0 : i32
    %c0_i32_1 = arith.constant 0 : i32
    return %c0_i32, %c0_i32_0 : i32, i32
  }
  func.func @transform_7(%arg0: i32) -> (i32, i32) {
    %c0_i32 = arith.constant 0 : i32
    %c0_i32_0 = arith.constant 0 : i32
    %c0_i32_1 = arith.constant 0 : i32
    return %c0_i32, %c0_i32_0 : i32, i32
  }
  func.func @transform_8(%arg0: i32) -> (i32, i32) {
    %c0_i32 = arith.constant 0 : i32
    %c0_i32_0 = arith.constant 0 : i32
    %c0_i32_1 = arith.constant 0 : i32
    return %c0_i32, %c0_i32_0 : i32, i32
  }
  func.func @transform_9(%arg0: i32) -> (i32, i32) {
    %c0_i32 = arith.constant 0 : i32
    %c0_i32_0 = arith.constant 0 : i32
    %c0_i32_1 = arith.constant 0 : i32
    return %c0_i32, %c0_i32_0 : i32, i32
  }
  func.func @transform_10(%arg0: i32) -> (i32, i32) {
    %c0_i32 = arith.constant 0 : i32
    %c0_i32_0 = arith.constant 0 : i32
    %c0_i32_1 = arith.constant 0 : i32
    return %c0_i32, %c0_i32_0 : i32, i32
  }
  func.func @transform_11(%arg0: i32) -> (i32, i32) {
    %c0_i32 = arith.constant 0 : i32
    %c0_i32_0 = arith.constant 0 : i32
    %c0_i32_1 = arith.constant 0 : i32
    return %c0_i32, %c0_i32_0 : i32, i32
  }
  func.func @transform_12(%arg0: i32) -> (i32, i32) {
    %c0_i32 = arith.constant 0 : i32
    %c0_i32_0 = arith.constant 0 : i32
    %c0_i32_1 = arith.constant 0 : i32
    return %c0_i32, %c0_i32_0 : i32, i32
  }
  func.func @transform_13(%arg0: i32) -> (i32, i32) {
    %c0_i32 = arith.constant 0 : i32
    %c0_i32_0 = arith.constant 0 : i32
    %c0_i32_1 = arith.constant 0 : i32
    return %c0_i32, %c0_i32_0 : i32, i32
  }
  func.func @transform_14(%arg0: i32) -> (i32, i32) {
    %c0_i32 = arith.constant 0 : i32
    %c0_i32_0 = arith.constant 0 : i32
    %c0_i32_1 = arith.constant 0 : i32
    return %c0_i32, %c0_i32_0 : i32, i32
  }
  func.func @transform_15(%arg0: i32) -> (i32, i32) {
    %c0_i32 = arith.constant 0 : i32
    %c0_i32_0 = arith.constant 0 : i32
    %c0_i32_1 = arith.constant 0 : i32
    return %c0_i32, %c0_i32_0 : i32, i32
  }
  func.func @transform_16(%arg0: i32) -> (i32, i32) {
    %c0_i32 = arith.constant 0 : i32
    %c0_i32_0 = arith.constant 0 : i32
    %c0_i32_1 = arith.constant 0 : i32
    return %c0_i32, %c0_i32_0 : i32, i32
  }
  func.func @transform_17(%arg0: i32) -> (i32, i32) {
    %c0_i32 = arith.constant 0 : i32
    %c0_i32_0 = arith.constant 0 : i32
    %c0_i32_1 = arith.constant 0 : i32
    return %c0_i32, %c0_i32_0 : i32, i32
  }
  func.func @transform_18(%arg0: i32) -> (i32, i32) {
    %c0_i32 = arith.constant 0 : i32
    %c0_i32_0 = arith.constant 0 : i32
    %c0_i32_1 = arith.constant 0 : i32
    return %c0_i32, %c0_i32_0 : i32, i32
  }
  func.func @transform_19(%arg0: i32) -> (i32, i32) {
    %c0_i32 = arith.constant 0 : i32
    %c0_i32_0 = arith.constant 0 : i32
    %c0_i32_1 = arith.constant 0 : i32
    return %c0_i32, %c0_i32_0 : i32, i32
  }
  func.func @transform_20(%arg0: i32) -> (i32, i32) {
    %c0_i32 = arith.constant 0 : i32
    %c0_i32_0 = arith.constant 0 : i32
    %c0_i32_1 = arith.constant 0 : i32
    return %c0_i32, %c0_i32_0 : i32, i32
  }
  func.func @transform_21(%arg0: i32) -> (i32, i32) {
    %c0_i32 = arith.constant 0 : i32
    %c0_i32_0 = arith.constant 0 : i32
    %c0_i32_1 = arith.constant 0 : i32
    return %c0_i32, %c0_i32_0 : i32, i32
  }
  func.func @transform_22(%arg0: i32) -> (i32, i32) {
    %c0_i32 = arith.constant 0 : i32
    %c0_i32_0 = arith.constant 0 : i32
    %c0_i32_1 = arith.constant 0 : i32
    return %c0_i32, %c0_i32_0 : i32, i32
  }
  func.func @transform_23(%arg0: i32) -> (i32, i32) {
    %c0_i32 = arith.constant 0 : i32
    %c0_i32_0 = arith.constant 0 : i32
    %c0_i32_1 = arith.constant 0 : i32
    return %c0_i32, %c0_i32_0 : i32, i32
  }
  func.func @transform_24(%arg0: i32) -> (i32, i32) {
    %c0_i32 = arith.constant 0 : i32
    %c0_i32_0 = arith.constant 0 : i32
    %c0_i32_1 = arith.constant 0 : i32
    return %c0_i32, %c0_i32_0 : i32, i32
  }
  func.func @transform_25(%arg0: i32) -> (i32, i32) {
    %c0_i32 = arith.constant 0 : i32
    %c0_i32_0 = arith.constant 0 : i32
    %c0_i32_1 = arith.constant 0 : i32
    return %c0_i32, %c0_i32_0 : i32, i32
  }
  func.func @transform_26(%arg0: i32) -> (i32, i32) {
    %c0_i32 = arith.constant 0 : i32
    %c0_i32_0 = arith.constant 0 : i32
    %c0_i32_1 = arith.constant 0 : i32
    return %c0_i32, %c0_i32_0 : i32, i32
  }
  func.func @transform_27(%arg0: i32) -> (i32, i32) {
    %c0_i32 = arith.constant 0 : i32
    %c0_i32_0 = arith.constant 0 : i32
    %c0_i32_1 = arith.constant 0 : i32
    return %c0_i32, %c0_i32_0 : i32, i32
  }
  func.func @transform_28(%arg0: i32) -> (i32, i32) {
    %c0_i32 = arith.constant 0 : i32
    %c0_i32_0 = arith.constant 0 : i32
    %c0_i32_1 = arith.constant 0 : i32
    return %c0_i32, %c0_i32_0 : i32, i32
  }
  func.func @transform_29(%arg0: i32) -> (i32, i32) {
    %c0_i32 = arith.constant 0 : i32
    %c0_i32_0 = arith.constant 0 : i32
    %c0_i32_1 = arith.constant 0 : i32
    return %c0_i32, %c0_i32_0 : i32, i32
  }
  func.func @transform_30(%arg0: i32) -> (i32, i32) {
    %c0_i32 = arith.constant 0 : i32
    %c0_i32_0 = arith.constant 0 : i32
    %c0_i32_1 = arith.constant 0 : i32
    return %c0_i32, %c0_i32_0 : i32, i32
  }
  func.func @transform_31(%arg0: i32) -> (i32, i32) {
    %c0_i32 = arith.constant 0 : i32
    %c0_i32_0 = arith.constant 0 : i32
    %c0_i32_1 = arith.constant 0 : i32
    return %c0_i32, %c0_i32_0 : i32, i32
  }
  func.func @transform_32(%arg0: i32) -> (i32, i32) {
    %c0_i32 = arith.constant 0 : i32
    %c0_i32_0 = arith.constant 0 : i32
    %c0_i32_1 = arith.constant 0 : i32
    return %c0_i32, %c0_i32_0 : i32, i32
  }
  func.func @transform_33(%arg0: i32) -> (i32, i32) {
    %c0_i32 = arith.constant 0 : i32
    %c0_i32_0 = arith.constant 0 : i32
    %c0_i32_1 = arith.constant 0 : i32
    return %c0_i32, %c0_i32_0 : i32, i32
  }
  func.func @transform_34(%arg0: i32) -> (i32, i32) {
    %c0_i32 = arith.constant 0 : i32
    %c0_i32_0 = arith.constant 0 : i32
    %c0_i32_1 = arith.constant 0 : i32
    return %c0_i32, %c0_i32_0 : i32, i32
  }
  func.func @transform_35(%arg0: i32) -> (i32, i32) {
    %c0_i32 = arith.constant 0 : i32
    %c0_i32_0 = arith.constant 0 : i32
    %c0_i32_1 = arith.constant 0 : i32
    return %c0_i32, %c0_i32_0 : i32, i32
  }
  func.func @transform_36(%arg0: i32) -> (i32, i32) {
    %c0_i32 = arith.constant 0 : i32
    %c0_i32_0 = arith.constant 0 : i32
    %c0_i32_1 = arith.constant 0 : i32
    return %c0_i32, %c0_i32_0 : i32, i32
  }
  func.func @transform_37(%arg0: i32) -> (i32, i32) {
    %c0_i32 = arith.constant 0 : i32
    %c0_i32_0 = arith.constant 0 : i32
    %c0_i32_1 = arith.constant 0 : i32
    return %c0_i32, %c0_i32_0 : i32, i32
  }
  func.func @transform_38(%arg0: i32) -> (i32, i32) {
    %c0_i32 = arith.constant 0 : i32
    %c0_i32_0 = arith.constant 0 : i32
    %c0_i32_1 = arith.constant 0 : i32
    return %c0_i32, %c0_i32_0 : i32, i32
  }
  func.func @transform_39(%arg0: i32) -> (i32, i32) {
    %c0_i32 = arith.constant 0 : i32
    %c0_i32_0 = arith.constant 0 : i32
    %c0_i32_1 = arith.constant 0 : i32
    return %c0_i32, %c0_i32_0 : i32, i32
  }
  func.func @transform_40(%arg0: i32) -> (i32, i32) {
    %c0_i32 = arith.constant 0 : i32
    %c0_i32_0 = arith.constant 0 : i32
    %c0_i32_1 = arith.constant 0 : i32
    return %c0_i32, %c0_i32_0 : i32, i32
  }
  func.func @transform_41(%arg0: i32) -> (i32, i32) {
    %c0_i32 = arith.constant 0 : i32
    %c0_i32_0 = arith.constant 0 : i32
    %c0_i32_1 = arith.constant 0 : i32
    return %c0_i32, %c0_i32_0 : i32, i32
  }
  func.func @transform_42(%arg0: i32) -> (i32, i32) {
    %c0_i32 = arith.constant 0 : i32
    %c0_i32_0 = arith.constant 0 : i32
    %c0_i32_1 = arith.constant 0 : i32
    return %c0_i32, %c0_i32_0 : i32, i32
  }
  func.func @transform_43(%arg0: i32) -> (i32, i32) {
    %c0_i32 = arith.constant 0 : i32
    %c0_i32_0 = arith.constant 0 : i32
    %c0_i32_1 = arith.constant 0 : i32
    return %c0_i32, %c0_i32_0 : i32, i32
  }
  func.func @transform_44(%arg0: i32) -> (i32, i32) {
    %c0_i32 = arith.constant 0 : i32
    %c0_i32_0 = arith.constant 0 : i32
    %c0_i32_1 = arith.constant 0 : i32
    return %c0_i32, %c0_i32_0 : i32, i32
  }
  func.func @transform_45(%arg0: i32) -> (i32, i32) {
    %c0_i32 = arith.constant 0 : i32
    %c0_i32_0 = arith.constant 0 : i32
    %c0_i32_1 = arith.constant 0 : i32
    return %c0_i32, %c0_i32_0 : i32, i32
  }
  func.func @transform_46(%arg0: i32) -> (i32, i32, i32) {
    %c0_i32 = arith.constant 0 : i32
    %c0_i32_0 = arith.constant 0 : i32
    %c0_i32_1 = arith.constant 0 : i32
    return %arg0, %c0_i32, %c0_i32_0 : i32, i32, i32
  }
}

</mosaic_0001>

<llo_original>
// kernel: small_forward.1
$region0: #{small_forward.1}
  #allocation0 [shape = 'u32[]', space=smem, size = 0x4, offset = 0x4, fixed_abs, tag = 'smem constant byte address 0x4 - core index']
  #allocation1 [shape = 'u32[144,128]{1,0:T(1,128)}', space=vmem, size = 0x12000, scoped, tag = 'internal scratch']
  #allocation2 [shape = 'f32[1,1]{1,0:T(1,128)S(1)}', space=vmem, size = 0x200, scoped, tag = 'scoped memory for small_forward.1']
  %s0 = inlined_call_operand.smem [shape: u32[47], index: -1, kind: input, shape index: {}]
  %s1 = sld [smem:[%s0]]
  %s2 = scalar_lea.smem %s0, 1
  %s3 = sld [smem:[%s2]]
  %s4 = scalar_lea.smem %s0, 2
  %s5 = sld [smem:[%s4]]
  %s6 = scalar_lea.smem %s0, 3
  %s7 = sld [smem:[%s6]]
  %s8 = scalar_lea.smem %s0, 4
  %s9 = sld [smem:[%s8]]
  %s10 = scalar_lea.smem %s0, 5
  %s11 = sld [smem:[%s10]]
  %s12 = scalar_lea.smem %s0, 6
  %s13 = sld [smem:[%s12]]
  %s14 = scalar_lea.smem %s0, 7
  %s15 = sld [smem:[%s14]]
  %s16 = scalar_lea.smem %s0, 8
  %s17 = sld [smem:[%s16]]
  %s18 = scalar_lea.smem %s0, 9
  %s19 = sld [smem:[%s18]]
  %s20 = scalar_lea.smem %s0, 10
  %s21 = sld [smem:[%s20]]
  %s22 = scalar_lea.smem %s0, 11
  %s23 = sld [smem:[%s22]]
  %s24 = scalar_lea.smem %s0, 12
  %s25 = sld [smem:[%s24]]
  %s26 = scalar_lea.smem %s0, 13
  %s27 = sld [smem:[%s26]]
  %s28 = scalar_lea.smem %s0, 14
  %s29 = sld [smem:[%s28]]
  %s30 = scalar_lea.smem %s0, 15
  %s31 = sld [smem:[%s30]]
  %s32 = scalar_lea.smem %s0, 16
  %s33 = sld [smem:[%s32]]
  %s34 = scalar_lea.smem %s0, 17
  %s35 = sld [smem:[%s34]]
  %s36 = scalar_lea.smem %s0, 18
  %s37 = sld [smem:[%s36]]
  %s38 = scalar_lea.smem %s0, 19
  %s39 = sld [smem:[%s38]]
  %s40 = scalar_lea.smem %s0, 20
  %s41 = sld [smem:[%s40]]
  %s42 = scalar_lea.smem %s0, 21
  %s43 = sld [smem:[%s42]]
  %s44 = scalar_lea.smem %s0, 22
  %s45 = sld [smem:[%s44]]
  %s46 = scalar_lea.smem %s0, 23
  %s47 = sld [smem:[%s46]]
  %s48 = scalar_lea.smem %s0, 24
  %s49 = sld [smem:[%s48]]
  %s50 = scalar_lea.smem %s0, 25
  %s51 = sld [smem:[%s50]]
  %s52 = scalar_lea.smem %s0, 26
  %s53 = sld [smem:[%s52]]
  %s54 = scalar_lea.smem %s0, 27
  %s55 = sld [smem:[%s54]]
  %s56 = scalar_lea.smem %s0, 28
  %s57 = sld [smem:[%s56]]
  %s58 = scalar_lea.smem %s0, 29
  %s59 = sld [smem:[%s58]]
  %s60 = scalar_lea.smem %s0, 30
  %s61 = sld [smem:[%s60]]
  %s62 = scalar_lea.smem %s0, 31
  %s63 = sld [smem:[%s62]]
  %s64 = scalar_lea.smem %s0, 32
  %s65 = sld [smem:[%s64]]
  %s66 = scalar_lea.smem %s0, 33
  %s67 = sld [smem:[%s66]]
  %s68 = scalar_lea.smem %s0, 34
  %s69 = sld [smem:[%s68]]
  %s70 = scalar_lea.smem %s0, 35
  %s71 = sld [smem:[%s70]]
  %s72 = scalar_lea.smem %s0, 36
  %s73 = sld [smem:[%s72]]
  %s74 = scalar_lea.smem %s0, 37
  %s75 = sld [smem:[%s74]]
  %s76 = scalar_lea.smem %s0, 38
  %s77 = sld [smem:[%s76]]
  %s78 = scalar_lea.smem %s0, 39
  %s79 = sld [smem:[%s78]]
  %s80 = scalar_lea.smem %s0, 40
  %s81 = sld [smem:[%s80]]
  %s82 = scalar_lea.smem %s0, 41
  %s83 = sld [smem:[%s82]]
  %s84 = scalar_lea.smem %s0, 42
  %s85 = sld [smem:[%s84]]
  %s86 = scalar_lea.smem %s0, 43
  %s87 = sld [smem:[%s86]]
  %s88 = scalar_lea.smem %s0, 44
  %s89 = sld [smem:[%s88]]
  %s90 = scalar_lea.smem %s0, 45
  %s91 = sld [smem:[%s90]]
  %s92 = scalar_lea.smem %s0, 46
  %s93 = sld [smem:[%s92]]
  %s94 = sld [smem:[#allocation0]]
  $region285: #{small_forward.1} parent=0
    _
  %s96 = ssub.s32 1, %s94
  %s97 = scalar_select 0, %s96, %s94
  %v98 = vstv %s91
  %99 = vst [vmem:[#allocation2] sm:$0x1] %v98
  $region1: #{small_forward.1} parent=0
    #allocation3 [shape = 'u8[4096]{0}', space=vmem, size = 0x1000, scoped, tag = 'input window, operand 7, single buffered']
    #allocation4 [shape = 's32[2]{0}', space=sflag, size = 0x8, scoped, tag = 'scoped memory for small_forward.1']
    #allocation5 [shape = 'u8[4096]{0}', space=vmem, size = 0x1000, scoped, tag = 'input window, operand 10, single buffered']
    #allocation6 [shape = 's32[1]{0}', space=sflag, size = 0x4, scoped, tag = 'scoped memory for small_forward.1']
    #allocation7 [shape = 'u8[1024]{0}', space=vmem, size = 0x400, scoped, tag = 'input window, operand 11, single buffered']
    #allocation8 [shape = 'u8[512]{0}', space=vmem, size = 0x400, scoped, tag = 'input window, operand 12, single buffered']
    #allocation9 [shape = 's32[1]{0}', space=sflag, size = 0x4, scoped, tag = 'scoped memory for small_forward.1']
    #allocation10 [shape = 'u8[512]{0}', space=vmem, size = 0x400, scoped, tag = 'input window, operand 14, single buffered']
    #allocation11 [shape = 'u8[512]{0}', space=vmem, size = 0x400, scoped, tag = 'input window, operand 17, single buffered']
    #allocation12 [shape = 's32[1]{0}', space=sflag, size = 0x4, scoped, tag = 'scoped memory for small_forward.1']
    #allocation13 [shape = 'u8[512]{0}', space=vmem, size = 0x400, scoped, tag = 'input window, operand 20, single buffered']
    #allocation14 [shape = 'u8[512]{0}', space=vmem, size = 0x400, scoped, tag = 'input window, operand 23, single buffered']
    #allocation15 [shape = 's32[1]{0}', space=sflag, size = 0x4, scoped, tag = 'scoped memory for small_forward.1']
    #allocation16 [shape = 'u8[512]{0}', space=vmem, size = 0x400, scoped, tag = 'input window, operand 26, single buffered']
    #allocation17 [shape = 'u8[8192]{0}', space=vmem, size = 0x2000, scoped, tag = 'input window, operand 27, single buffered']
    #allocation18 [shape = 's32[1]{0}', space=sflag, size = 0x4, scoped, tag = 'scoped memory for small_forward.1']
    #allocation19 [shape = 'u8[512]{0}', space=vmem, size = 0x400, scoped, tag = 'input window, operand 29, single buffered']
    #allocation20 [shape = 'u8[8192]{0}', space=vmem, size = 0x2000, scoped, tag = 'input window, operand 30, single buffered']
    #allocation21 [shape = 's32[1]{0}', space=sflag, size = 0x4, scoped, tag = 'scoped memory for small_forward.1']
    #allocation22 [shape = 'u8[512]{0}', space=vmem, size = 0x400, scoped, tag = 'input window, operand 32, single buffered']
    #allocation23 [shape = 'u8[512]{0}', space=vmem, size = 0x400, scoped, tag = 'input window, operand 35, single buffered']
    #allocation24 [shape = 's32[1]{0}', space=sflag, size = 0x4, scoped, tag = 'scoped memory for small_forward.1']
    #allocation25 [shape = 'u8[512]{0}', space=vmem, size = 0x400, scoped, tag = 'input window, operand 38, single buffered']
    #allocation26 [shape = 'u8[512]{0}', space=vmem, size = 0x400, scoped, tag = 'input window, operand 41, single buffered']
    #allocation27 [shape = 's32[1]{0}', space=sflag, size = 0x4, scoped, tag = 'scoped memory for small_forward.1']
    #allocation28 [shape = 'u8[512]{0}', space=vmem, size = 0x400, scoped, tag = 'input window, operand 43, single buffered']
    %100 = vsyncpa [#allocation4], 0
    %101 = vsyncpa [#allocation6], 0
    %102 = vsyncpa [#allocation9], 0
    %103 = vsyncpa [#allocation12], 0
    %104 = vsyncpa [#allocation15], 0
    %105 = vsyncpa [#allocation18], 0
    %106 = vsyncpa [#allocation21], 0
    %107 = vsyncpa [#allocation24], 0
    %108 = vsyncpa [#allocation27], 0
    loop: start=0, step=1, limit=4
    $region2: #{small_forward.1} parent=1 // loop_pre_header
      _
    $region3: #{small_forward.1} parent=1 // loop_header
      %s110 = sphi 0, %s114
      %p111 = scmp.ge.s32.totalorder %s110, 4
      %s120 = sphi 0, %s122
      %s123 = sphi 0, %s120
      %s124 = sphi 0, %s123
      %s140 = sphi 0, %s124
      %s146 = sphi 0, %s148
      %s149 = sphi 0, %s146
      %s150 = sphi 0, %s149
      %s166 = sphi 0, %s150
      %s170 = sphi 0, %s170
      %s172 = sphi 0, %s170
      %s173 = sphi 0, %s172
      %s187 = sphi 0, %s173
      %s191 = sphi 0, %s191
      %s193 = sphi 0, %s191
      %s194 = sphi 0, %s193
      %s208 = sphi 0, %s194
      %s212 = sphi 0, %s212
      %s214 = sphi 0, %s212
      %s215 = sphi 0, %s214
      %s229 = sphi 0, %s215
      %s233 = sphi 0, %s233
      %s235 = sphi 0, %s233
      %s236 = sphi 0, %s235
      %s250 = sphi 0, %s236
      %s254 = sphi 0, %s254
      %s256 = sphi 0, %s254
      %s257 = sphi 0, %s256
      %s271 = sphi 0, %s257
      %s275 = sphi 0, %s275
      %s277 = sphi 0, %s275
      %s278 = sphi 0, %s277
      %s292 = sphi 0, %s278
      %s296 = sphi 0, %s296
      %s298 = sphi 0, %s296
      %s299 = sphi 0, %s298
      %s313 = sphi 0, %s299
      %s317 = sphi 0, %s317
      %s319 = sphi 0, %s317
      %s320 = sphi 0, %s319
      %s334 = sphi 0, %s320
      %s338 = sphi 0, %s338
      %s340 = sphi 0, %s338
      %s341 = sphi 0, %s340
      %s355 = sphi 0, %s341
      %s359 = sphi 0, %s359
      %s361 = sphi 0, %s359
      %s362 = sphi 0, %s361
      %s376 = sphi 0, %s362
      %s380 = sphi 0, %s380
      %s382 = sphi 0, %s380
      %s383 = sphi 0, %s382
      %s397 = sphi 0, %s383
      %s401 = sphi 0, %s401
      %s403 = sphi 0, %s401
      %s404 = sphi 0, %s403
      %s418 = sphi 0, %s404
      %s422 = sphi 0, %s422
      %s424 = sphi 0, %s422
      %s425 = sphi 0, %s424
      %s439 = sphi 0, %s425
      %s443 = sphi 0, %s443
      %s445 = sphi 0, %s443
      %s446 = sphi 0, %s445
      %s460 = sphi 0, %s446
      %s464 = sphi 0, %s464
      %s466 = sphi 0, %s464
      %s467 = sphi 0, %s466
      %s481 = sphi 0, %s467
      %s485 = sphi 0, %s485
      %s487 = sphi 0, %s485
      %s488 = sphi 0, %s487
      %s502 = sphi 0, %s488
      %s506 = sphi 0, %s506
      %s508 = sphi 0, %s506
      %s509 = sphi 0, %s508
      %s523 = sphi 0, %s509
      %s527 = sphi 0, %s527
      %s529 = sphi 0, %s527
      %s530 = sphi 0, %s529
      %s544 = sphi 0, %s530
      %s548 = sphi 0, %s548
      %s550 = sphi 0, %s548
      %s551 = sphi 0, %s550
      %s565 = sphi 0, %s551
      %s569 = sphi 0, %s569
      %s571 = sphi 0, %s569
      %s572 = sphi 0, %s571
      %s586 = sphi 0, %s572
      %s590 = sphi 0, %s590
      %s592 = sphi 0, %s590
      %s593 = sphi 0, %s592
      %s607 = sphi 0, %s593
      %s611 = sphi 0, %s611
      %s613 = sphi 0, %s611
      %s614 = sphi 0, %s613
      %s628 = sphi 0, %s614
      %s632 = sphi 0, %s632
      %s634 = sphi 0, %s632
      %s635 = sphi 0, %s634
      %s649 = sphi 0, %s635
      %s653 = sphi 0, %s653
      %s655 = sphi 0, %s653
      %s656 = sphi 0, %s655
      %s670 = sphi 0, %s656
      %s674 = sphi 0, %s674
      %s676 = sphi 0, %s674
      %s677 = sphi 0, %s676
      %s691 = sphi 0, %s677
      %s695 = sphi 0, %s695
      %s697 = sphi 0, %s695
      %s698 = sphi 0, %s697
      %s712 = sphi 0, %s698
      %s716 = sphi 0, %s716
      %s718 = sphi 0, %s716
      %s719 = sphi 0, %s718
      %s733 = sphi 0, %s719
      %s737 = sphi 0, %s737
      %s739 = sphi 0, %s737
      %s740 = sphi 0, %s739
      %s754 = sphi 0, %s740
      %s758 = sphi 0, %s758
      %s760 = sphi 0, %s758
      %s761 = sphi 0, %s760
      %s775 = sphi 0, %s761
      %s779 = sphi 0, %s779
      %s781 = sphi 0, %s779
      %s782 = sphi 0, %s781
      %s796 = sphi 0, %s782
      %s800 = sphi 0, %s800
      %s802 = sphi 0, %s800
      %s803 = sphi 0, %s802
      %s817 = sphi 0, %s803
      %s821 = sphi 0, %s821
      %s823 = sphi 0, %s821
      %s824 = sphi 0, %s823
      %s838 = sphi 0, %s824
      %s842 = sphi 0, %s842
      %s844 = sphi 0, %s842
      %s845 = sphi 0, %s844
      %s859 = sphi 0, %s845
      %s863 = sphi 0, %s863
      %s865 = sphi 0, %s863
      %s866 = sphi 0, %s865
      %s880 = sphi 0, %s866
      %s884 = sphi 0, %s884
      %s886 = sphi 0, %s884
      %s887 = sphi 0, %s886
      %s901 = sphi 0, %s887
      %s905 = sphi 0, %s905
      %s907 = sphi 0, %s905
      %s908 = sphi 0, %s907
      %s922 = sphi 0, %s908
      %s926 = sphi 0, %s926
      %s928 = sphi 0, %s926
      %s929 = sphi 0, %s928
      %s943 = sphi 0, %s929
      %s947 = sphi 0, %s947
      %s949 = sphi 0, %s947
      %s950 = sphi 0, %s949
      %s964 = sphi 0, %s950
      %s968 = sphi 0, %s968
      %s970 = sphi 0, %s968
      %s971 = sphi 0, %s970
      %s985 = sphi 0, %s971
      %s989 = sphi 0, %s989
      %s991 = sphi 0, %s989
      %s992 = sphi 0, %s991
      %s1006 = sphi 0, %s992
      %s1010 = sphi 0, %s1010
      %s1012 = sphi 0, %s1010
      %s1013 = sphi 0, %s1012
      %s1027 = sphi 0, %s1013
      %s1031 = sphi 0, %s1031
      %s1033 = sphi 0, %s1031
      %s1034 = sphi 0, %s1033
      %s1048 = sphi 0, %s1034
      %s1052 = sphi 0, %s1052
      %s1054 = sphi 0, %s1052
      %s1055 = sphi 0, %s1054
      %s1069 = sphi 0, %s1055
      %s1073 = sphi 0, %s1073
      %s1075 = sphi 0, %s1073
      %s1076 = sphi 0, %s1075
      %s1090 = sphi 0, %s1076
      %s1096 = sphi 0, %s1098
      %s1099 = sphi 0, %s1096
      %s1100 = sphi 0, %s1099
      %s1116 = sphi 0, %s1100
    $region4: #{small_forward.1} parent=1 // loop_header_branch
      %113 = sbr.rel (%p111) target = $region8
    $region5: #{small_forward.1} parent=1 // loop_body
      %s115 = ssub.s32 %s110, 1
      %s116 = ssub.s32 %s110, 2
      %s117 = sadd.s32 %s110, 1
      %s118 = ssub.s32 %s110, %s117
      %p119 = scmp.eq.s32.totalorder %s118, 0
      %s121 = sadd.s32 %s120, 1
      %s122 = scalar_select %p119, %s120, %s121
      %p125 = pneg %p119
      %p126 = scmp.eq.s32.totalorder %s110, 1
      %p127 = por %p125, %p126
      %p128 = scmp.ne.s32.totalorder %s120, %s123
      %p129 = scmp.eq.s32.totalorder %s110, 0
      %p130 = por %p128, %p129
      %p131 = scmp.ne.s32.totalorder %s120, %s123
      %p132 = scmp.eq.s32.totalorder %s115, 1
      %p133 = por %p131, %p132
      %p134 = scmp.ne.s32.totalorder %s123, %s124
      %p135 = scmp.eq.s32.totalorder %s115, 0
      %p136 = por %p134, %p135
      %p137 = scmp.ne.s32.totalorder %s123, %s124
      %p138 = scmp.eq.s32.totalorder %s116, 1
      %p139 = por %p137, %p138
      %p141 = scmp.ne.s32.totalorder %s124, %s140
      %p142 = scmp.eq.s32.totalorder %s116, 0
      %p143 = por %p141, %p142
      %s144 = ssub.s32 %s110, %s117
      %p145 = scmp.eq.s32.totalorder %s144, 0
      %s147 = sadd.s32 %s146, 1
      %s148 = scalar_select %p145, %s146, %s147
      %p151 = pneg %p145
      %p152 = scmp.eq.s32.totalorder %s110, 1
      %p153 = por %p151, %p152
      %p154 = scmp.ne.s32.totalorder %s146, %s149
      %p155 = scmp.eq.s32.totalorder %s110, 0
      %p156 = por %p154, %p155
      %p157 = scmp.ne.s32.totalorder %s146, %s149
      %p158 = scmp.eq.s32.totalorder %s115, 1
      %p159 = por %p157, %p158
      %p160 = scmp.ne.s32.totalorder %s149, %s150
      %p161 = scmp.eq.s32.totalorder %s115, 0
      %p162 = por %p160, %p161
      %p163 = scmp.ne.s32.totalorder %s149, %s150
      %p164 = scmp.eq.s32.totalorder %s116, 1
      %p165 = por %p163, %p164
      %p167 = scmp.ne.s32.totalorder %s150, %s166
      %p168 = scmp.eq.s32.totalorder %s116, 0
      %p169 = por %p167, %p168
      %s171 = sadd.s32 %s170, 1
      %p174 = scmp.eq.s32.totalorder %s110, 1
      %p175 = scmp.ne.s32.totalorder %s170, %s172
      %p176 = scmp.eq.s32.totalorder %s110, 0
      %p177 = por %p175, %p176
      %p178 = scmp.ne.s32.totalorder %s170, %s172
      %p179 = scmp.eq.s32.totalorder %s115, 1
      %p180 = por %p178, %p179
      %p181 = scmp.ne.s32.totalorder %s172, %s173
      %p182 = scmp.eq.s32.totalorder %s115, 0
      %p183 = por %p181, %p182
      %p184 = scmp.ne.s32.totalorder %s172, %s173
      %p185 = scmp.eq.s32.totalorder %s116, 1
      %p186 = por %p184, %p185
      %p188 = scmp.ne.s32.totalorder %s173, %s187
      %p189 = scmp.eq.s32.totalorder %s116, 0
      %p190 = por %p188, %p189
      %s192 = sadd.s32 %s191, 1
      %p195 = scmp.eq.s32.totalorder %s110, 1
      %p196 = scmp.ne.s32.totalorder %s191, %s193
      %p197 = scmp.eq.s32.totalorder %s110, 0
      %p198 = por %p196, %p197
      %p199 = scmp.ne.s32.totalorder %s191, %s193
      %p200 = scmp.eq.s32.totalorder %s115, 1
      %p201 = por %p199, %p200
      %p202 = scmp.ne.s32.totalorder %s193, %s194
      %p203 = scmp.eq.s32.totalorder %s115, 0
      %p204 = por %p202, %p203
      %p205 = scmp.ne.s32.totalorder %s193, %s194
      %p206 = scmp.eq.s32.totalorder %s116, 1
      %p207 = por %p205, %p206
      %p209 = scmp.ne.s32.totalorder %s194, %s208
      %p210 = scmp.eq.s32.totalorder %s116, 0
      %p211 = por %p209, %p210
      %s213 = sadd.s32 %s212, 1
      %p216 = scmp.eq.s32.totalorder %s110, 1
      %p217 = scmp.ne.s32.totalorder %s212, %s214
      %p218 = scmp.eq.s32.totalorder %s110, 0
      %p219 = por %p217, %p218
      %p220 = scmp.ne.s32.totalorder %s212, %s214
      %p221 = scmp.eq.s32.totalorder %s115, 1
      %p222 = por %p220, %p221
      %p223 = scmp.ne.s32.totalorder %s214, %s215
      %p224 = scmp.eq.s32.totalorder %s115, 0
      %p225 = por %p223, %p224
      %p226 = scmp.ne.s32.totalorder %s214, %s215
      %p227 = scmp.eq.s32.totalorder %s116, 1
      %p228 = por %p226, %p227
      %p230 = scmp.ne.s32.totalorder %s215, %s229
      %p231 = scmp.eq.s32.totalorder %s116, 0
      %p232 = por %p230, %p231
      %s234 = sadd.s32 %s233, 1
      %p237 = scmp.eq.s32.totalorder %s110, 1
      %p238 = scmp.ne.s32.totalorder %s233, %s235
      %p239 = scmp.eq.s32.totalorder %s110, 0
      %p240 = por %p238, %p239
      %p241 = scmp.ne.s32.totalorder %s233, %s235
      %p242 = scmp.eq.s32.totalorder %s115, 1
      %p243 = por %p241, %p242
      %p244 = scmp.ne.s32.totalorder %s235, %s236
      %p245 = scmp.eq.s32.totalorder %s115, 0
      %p246 = por %p244, %p245
      %p247 = scmp.ne.s32.totalorder %s235, %s236
      %p248 = scmp.eq.s32.totalorder %s116, 1
      %p249 = por %p247, %p248
      %p251 = scmp.ne.s32.totalorder %s236, %s250
      %p252 = scmp.eq.s32.totalorder %s116, 0
      %p253 = por %p251, %p252
      %s255 = sadd.s32 %s254, 1
      %p258 = scmp.eq.s32.totalorder %s110, 1
      %p259 = scmp.ne.s32.totalorder %s254, %s256
      %p260 = scmp.eq.s32.totalorder %s110, 0
      %p261 = por %p259, %p260
      %p262 = scmp.ne.s32.totalorder %s254, %s256
      %p263 = scmp.eq.s32.totalorder %s115, 1
      %p264 = por %p262, %p263
      %p265 = scmp.ne.s32.totalorder %s256, %s257
      %p266 = scmp.eq.s32.totalorder %s115, 0
      %p267 = por %p265, %p266
      %p268 = scmp.ne.s32.totalorder %s256, %s257
      %p269 = scmp.eq.s32.totalorder %s116, 1
      %p270 = por %p268, %p269
      %p272 = scmp.ne.s32.totalorder %s257, %s271
      %p273 = scmp.eq.s32.totalorder %s116, 0
      %p274 = por %p272, %p273
      %s276 = sadd.s32 %s275, 1
      %p279 = scmp.eq.s32.totalorder %s110, 1
      %p280 = scmp.ne.s32.totalorder %s275, %s277
      %p281 = scmp.eq.s32.totalorder %s110, 0
      %p282 = por %p280, %p281
      %p283 = scmp.ne.s32.totalorder %s275, %s277
      %p284 = scmp.eq.s32.totalorder %s115, 1
      %p285 = por %p283, %p284
      %p286 = scmp.ne.s32.totalorder %s277, %s278
      %p287 = scmp.eq.s32.totalorder %s115, 0
      %p288 = por %p286, %p287
      %p289 = scmp.ne.s32.totalorder %s277, %s278
      %p290 = scmp.eq.s32.totalorder %s116, 1
      %p291 = por %p289, %p290
      %p293 = scmp.ne.s32.totalorder %s278, %s292
      %p294 = scmp.eq.s32.totalorder %s116, 0
      %p295 = por %p293, %p294
      %s297 = sadd.s32 %s296, 1
      %p300 = scmp.eq.s32.totalorder %s110, 1
      %p301 = scmp.ne.s32.totalorder %s296, %s298
      %p302 = scmp.eq.s32.totalorder %s110, 0
      %p303 = por %p301, %p302
      %p304 = scmp.ne.s32.totalorder %s296, %s298
      %p305 = scmp.eq.s32.totalorder %s115, 1
      %p306 = por %p304, %p305
      %p307 = scmp.ne.s32.totalorder %s298, %s299
      %p308 = scmp.eq.s32.totalorder %s115, 0
      %p309 = por %p307, %p308
      %p310 = scmp.ne.s32.totalorder %s298, %s299
      %p311 = scmp.eq.s32.totalorder %s116, 1
      %p312 = por %p310, %p311
      %p314 = scmp.ne.s32.totalorder %s299, %s313
      %p315 = scmp.eq.s32.totalorder %s116, 0
      %p316 = por %p314, %p315
      %s318 = sadd.s32 %s317, 1
      %p321 = scmp.eq.s32.totalorder %s110, 1
      %p322 = scmp.ne.s32.totalorder %s317, %s319
      %p323 = scmp.eq.s32.totalorder %s110, 0
      %p324 = por %p322, %p323
      %p325 = scmp.ne.s32.totalorder %s317, %s319
      %p326 = scmp.eq.s32.totalorder %s115, 1
      %p327 = por %p325, %p326
      %p328 = scmp.ne.s32.totalorder %s319, %s320
      %p329 = scmp.eq.s32.totalorder %s115, 0
      %p330 = por %p328, %p329
      %p331 = scmp.ne.s32.totalorder %s319, %s320
      %p332 = scmp.eq.s32.totalorder %s116, 1
      %p333 = por %p331, %p332
      %p335 = scmp.ne.s32.totalorder %s320, %s334
      %p336 = scmp.eq.s32.totalorder %s116, 0
      %p337 = por %p335, %p336
      %s339 = sadd.s32 %s338, 1
      %p342 = scmp.eq.s32.totalorder %s110, 1
      %p343 = scmp.ne.s32.totalorder %s338, %s340
      %p344 = scmp.eq.s32.totalorder %s110, 0
      %p345 = por %p343, %p344
      %p346 = scmp.ne.s32.totalorder %s338, %s340
      %p347 = scmp.eq.s32.totalorder %s115, 1
      %p348 = por %p346, %p347
      %p349 = scmp.ne.s32.totalorder %s340, %s341
      %p350 = scmp.eq.s32.totalorder %s115, 0
      %p351 = por %p349, %p350
      %p352 = scmp.ne.s32.totalorder %s340, %s341
      %p353 = scmp.eq.s32.totalorder %s116, 1
      %p354 = por %p352, %p353
      %p356 = scmp.ne.s32.totalorder %s341, %s355
      %p357 = scmp.eq.s32.totalorder %s116, 0
      %p358 = por %p356, %p357
      %s360 = sadd.s32 %s359, 1
      %p363 = scmp.eq.s32.totalorder %s110, 1
      %p364 = scmp.ne.s32.totalorder %s359, %s361
      %p365 = scmp.eq.s32.totalorder %s110, 0
      %p366 = por %p364, %p365
      %p367 = scmp.ne.s32.totalorder %s359, %s361
      %p368 = scmp.eq.s32.totalorder %s115, 1
      %p369 = por %p367, %p368
      %p370 = scmp.ne.s32.totalorder %s361, %s362
      %p371 = scmp.eq.s32.totalorder %s115, 0
      %p372 = por %p370, %p371
      %p373 = scmp.ne.s32.totalorder %s361, %s362
      %p374 = scmp.eq.s32.totalorder %s116, 1
      %p375 = por %p373, %p374
      %p377 = scmp.ne.s32.totalorder %s362, %s376
      %p378 = scmp.eq.s32.totalorder %s116, 0
      %p379 = por %p377, %p378
      %s381 = sadd.s32 %s380, 1
      %p384 = scmp.eq.s32.totalorder %s110, 1
      %p385 = scmp.ne.s32.totalorder %s380, %s382
      %p386 = scmp.eq.s32.totalorder %s110, 0
      %p387 = por %p385, %p386
      %p388 = scmp.ne.s32.totalorder %s380, %s382
      %p389 = scmp.eq.s32.totalorder %s115, 1
      %p390 = por %p388, %p389
      %p391 = scmp.ne.s32.totalorder %s382, %s383
      %p392 = scmp.eq.s32.totalorder %s115, 0
      %p393 = por %p391, %p392
      %p394 = scmp.ne.s32.totalorder %s382, %s383
      %p395 = scmp.eq.s32.totalorder %s116, 1
      %p396 = por %p394, %p395
      %p398 = scmp.ne.s32.totalorder %s383, %s397
      %p399 = scmp.eq.s32.totalorder %s116, 0
      %p400 = por %p398, %p399
      %s402 = sadd.s32 %s401, 1
      %p405 = scmp.eq.s32.totalorder %s110, 1
      %p406 = scmp.ne.s32.totalorder %s401, %s403
      %p407 = scmp.eq.s32.totalorder %s110, 0
      %p408 = por %p406, %p407
      %p409 = scmp.ne.s32.totalorder %s401, %s403
      %p410 = scmp.eq.s32.totalorder %s115, 1
      %p411 = por %p409, %p410
      %p412 = scmp.ne.s32.totalorder %s403, %s404
      %p413 = scmp.eq.s32.totalorder %s115, 0
      %p414 = por %p412, %p413
      %p415 = scmp.ne.s32.totalorder %s403, %s404
      %p416 = scmp.eq.s32.totalorder %s116, 1
      %p417 = por %p415, %p416
      %p419 = scmp.ne.s32.totalorder %s404, %s418
      %p420 = scmp.eq.s32.totalorder %s116, 0
      %p421 = por %p419, %p420
      %s423 = sadd.s32 %s422, 1
      %p426 = scmp.eq.s32.totalorder %s110, 1
      %p427 = scmp.ne.s32.totalorder %s422, %s424
      %p428 = scmp.eq.s32.totalorder %s110, 0
      %p429 = por %p427, %p428
      %p430 = scmp.ne.s32.totalorder %s422, %s424
      %p431 = scmp.eq.s32.totalorder %s115, 1
      %p432 = por %p430, %p431
      %p433 = scmp.ne.s32.totalorder %s424, %s425
      %p434 = scmp.eq.s32.totalorder %s115, 0
      %p435 = por %p433, %p434
      %p436 = scmp.ne.s32.totalorder %s424, %s425
      %p437 = scmp.eq.s32.totalorder %s116, 1
      %p438 = por %p436, %p437
      %p440 = scmp.ne.s32.totalorder %s425, %s439
      %p441 = scmp.eq.s32.totalorder %s116, 0
      %p442 = por %p440, %p441
      %s444 = sadd.s32 %s443, 1
      %p447 = scmp.eq.s32.totalorder %s110, 1
      %p448 = scmp.ne.s32.totalorder %s443, %s445
      %p449 = scmp.eq.s32.totalorder %s110, 0
      %p450 = por %p448, %p449
      %p451 = scmp.ne.s32.totalorder %s443, %s445
      %p452 = scmp.eq.s32.totalorder %s115, 1
      %p453 = por %p451, %p452
      %p454 = scmp.ne.s32.totalorder %s445, %s446
      %p455 = scmp.eq.s32.totalorder %s115, 0
      %p456 = por %p454, %p455
      %p457 = scmp.ne.s32.totalorder %s445, %s446
      %p458 = scmp.eq.s32.totalorder %s116, 1
      %p459 = por %p457, %p458
      %p461 = scmp.ne.s32.totalorder %s446, %s460
      %p462 = scmp.eq.s32.totalorder %s116, 0
      %p463 = por %p461, %p462
      %s465 = sadd.s32 %s464, 1
      %p468 = scmp.eq.s32.totalorder %s110, 1
      %p469 = scmp.ne.s32.totalorder %s464, %s466
      %p470 = scmp.eq.s32.totalorder %s110, 0
      %p471 = por %p469, %p470
      %p472 = scmp.ne.s32.totalorder %s464, %s466
      %p473 = scmp.eq.s32.totalorder %s115, 1
      %p474 = por %p472, %p473
      %p475 = scmp.ne.s32.totalorder %s466, %s467
      %p476 = scmp.eq.s32.totalorder %s115, 0
      %p477 = por %p475, %p476
      %p478 = scmp.ne.s32.totalorder %s466, %s467
      %p479 = scmp.eq.s32.totalorder %s116, 1
      %p480 = por %p478, %p479
      %p482 = scmp.ne.s32.totalorder %s467, %s481
      %p483 = scmp.eq.s32.totalorder %s116, 0
      %p484 = por %p482, %p483
      %s486 = sadd.s32 %s485, 1
      %p489 = scmp.eq.s32.totalorder %s110, 1
      %p490 = scmp.ne.s32.totalorder %s485, %s487
      %p491 = scmp.eq.s32.totalorder %s110, 0
      %p492 = por %p490, %p491
      %p493 = scmp.ne.s32.totalorder %s485, %s487
      %p494 = scmp.eq.s32.totalorder %s115, 1
      %p495 = por %p493, %p494
      %p496 = scmp.ne.s32.totalorder %s487, %s488
      %p497 = scmp.eq.s32.totalorder %s115, 0
      %p498 = por %p496, %p497
      %p499 = scmp.ne.s32.totalorder %s487, %s488
      %p500 = scmp.eq.s32.totalorder %s116, 1
      %p501 = por %p499, %p500
      %p503 = scmp.ne.s32.totalorder %s488, %s502
      %p504 = scmp.eq.s32.totalorder %s116, 0
      %p505 = por %p503, %p504
      %s507 = sadd.s32 %s506, 1
      %p510 = scmp.eq.s32.totalorder %s110, 1
      %p511 = scmp.ne.s32.totalorder %s506, %s508
      %p512 = scmp.eq.s32.totalorder %s110, 0
      %p513 = por %p511, %p512
      %p514 = scmp.ne.s32.totalorder %s506, %s508
      %p515 = scmp.eq.s32.totalorder %s115, 1
      %p516 = por %p514, %p515
      %p517 = scmp.ne.s32.totalorder %s508, %s509
      %p518 = scmp.eq.s32.totalorder %s115, 0
      %p519 = por %p517, %p518
      %p520 = scmp.ne.s32.totalorder %s508, %s509
      %p521 = scmp.eq.s32.totalorder %s116, 1
      %p522 = por %p520, %p521
      %p524 = scmp.ne.s32.totalorder %s509, %s523
      %p525 = scmp.eq.s32.totalorder %s116, 0
      %p526 = por %p524, %p525
      %s528 = sadd.s32 %s527, 1
      %p531 = scmp.eq.s32.totalorder %s110, 1
      %p532 = scmp.ne.s32.totalorder %s527, %s529
      %p533 = scmp.eq.s32.totalorder %s110, 0
      %p534 = por %p532, %p533
      %p535 = scmp.ne.s32.totalorder %s527, %s529
      %p536 = scmp.eq.s32.totalorder %s115, 1
      %p537 = por %p535, %p536
      %p538 = scmp.ne.s32.totalorder %s529, %s530
      %p539 = scmp.eq.s32.totalorder %s115, 0
      %p540 = por %p538, %p539
      %p541 = scmp.ne.s32.totalorder %s529, %s530
      %p542 = scmp.eq.s32.totalorder %s116, 1
      %p543 = por %p541, %p542
      %p545 = scmp.ne.s32.totalorder %s530, %s544
      %p546 = scmp.eq.s32.totalorder %s116, 0
      %p547 = por %p545, %p546
      %s549 = sadd.s32 %s548, 1
      %p552 = scmp.eq.s32.totalorder %s110, 1
      %p553 = scmp.ne.s32.totalorder %s548, %s550
      %p554 = scmp.eq.s32.totalorder %s110, 0
      %p555 = por %p553, %p554
      %p556 = scmp.ne.s32.totalorder %s548, %s550
      %p557 = scmp.eq.s32.totalorder %s115, 1
      %p558 = por %p556, %p557
      %p559 = scmp.ne.s32.totalorder %s550, %s551
      %p560 = scmp.eq.s32.totalorder %s115, 0
      %p561 = por %p559, %p560
      %p562 = scmp.ne.s32.totalorder %s550, %s551
      %p563 = scmp.eq.s32.totalorder %s116, 1
      %p564 = por %p562, %p563
      %p566 = scmp.ne.s32.totalorder %s551, %s565
      %p567 = scmp.eq.s32.totalorder %s116, 0
      %p568 = por %p566, %p567
      %s570 = sadd.s32 %s569, 1
      %p573 = scmp.eq.s32.totalorder %s110, 1
      %p574 = scmp.ne.s32.totalorder %s569, %s571
      %p575 = scmp.eq.s32.totalorder %s110, 0
      %p576 = por %p574, %p575
      %p577 = scmp.ne.s32.totalorder %s569, %s571
      %p578 = scmp.eq.s32.totalorder %s115, 1
      %p579 = por %p577, %p578
      %p580 = scmp.ne.s32.totalorder %s571, %s572
      %p581 = scmp.eq.s32.totalorder %s115, 0
      %p582 = por %p580, %p581
      %p583 = scmp.ne.s32.totalorder %s571, %s572
      %p584 = scmp.eq.s32.totalorder %s116, 1
      %p585 = por %p583, %p584
      %p587 = scmp.ne.s32.totalorder %s572, %s586
      %p588 = scmp.eq.s32.totalorder %s116, 0
      %p589 = por %p587, %p588
      %s591 = sadd.s32 %s590, 1
      %p594 = scmp.eq.s32.totalorder %s110, 1
      %p595 = scmp.ne.s32.totalorder %s590, %s592
      %p596 = scmp.eq.s32.totalorder %s110, 0
      %p597 = por %p595, %p596
      %p598 = scmp.ne.s32.totalorder %s590, %s592
      %p599 = scmp.eq.s32.totalorder %s115, 1
      %p600 = por %p598, %p599
      %p601 = scmp.ne.s32.totalorder %s592, %s593
      %p602 = scmp.eq.s32.totalorder %s115, 0
      %p603 = por %p601, %p602
      %p604 = scmp.ne.s32.totalorder %s592, %s593
      %p605 = scmp.eq.s32.totalorder %s116, 1
      %p606 = por %p604, %p605
      %p608 = scmp.ne.s32.totalorder %s593, %s607
      %p609 = scmp.eq.s32.totalorder %s116, 0
      %p610 = por %p608, %p609
      %s612 = sadd.s32 %s611, 1
      %p615 = scmp.eq.s32.totalorder %s110, 1
      %p616 = scmp.ne.s32.totalorder %s611, %s613
      %p617 = scmp.eq.s32.totalorder %s110, 0
      %p618 = por %p616, %p617
      %p619 = scmp.ne.s32.totalorder %s611, %s613
      %p620 = scmp.eq.s32.totalorder %s115, 1
      %p621 = por %p619, %p620
      %p622 = scmp.ne.s32.totalorder %s613, %s614
      %p623 = scmp.eq.s32.totalorder %s115, 0
      %p624 = por %p622, %p623
      %p625 = scmp.ne.s32.totalorder %s613, %s614
      %p626 = scmp.eq.s32.totalorder %s116, 1
      %p627 = por %p625, %p626
      %p629 = scmp.ne.s32.totalorder %s614, %s628
      %p630 = scmp.eq.s32.totalorder %s116, 0
      %p631 = por %p629, %p630
      %s633 = sadd.s32 %s632, 1
      %p636 = scmp.eq.s32.totalorder %s110, 1
      %p637 = scmp.ne.s32.totalorder %s632, %s634
      %p638 = scmp.eq.s32.totalorder %s110, 0
      %p639 = por %p637, %p638
      %p640 = scmp.ne.s32.totalorder %s632, %s634
      %p641 = scmp.eq.s32.totalorder %s115, 1
      %p642 = por %p640, %p641
      %p643 = scmp.ne.s32.totalorder %s634, %s635
      %p644 = scmp.eq.s32.totalorder %s115, 0
      %p645 = por %p643, %p644
      %p646 = scmp.ne.s32.totalorder %s634, %s635
      %p647 = scmp.eq.s32.totalorder %s116, 1
      %p648 = por %p646, %p647
      %p650 = scmp.ne.s32.totalorder %s635, %s649
      %p651 = scmp.eq.s32.totalorder %s116, 0
      %p652 = por %p650, %p651
      %s654 = sadd.s32 %s653, 1
      %p657 = scmp.eq.s32.totalorder %s110, 1
      %p658 = scmp.ne.s32.totalorder %s653, %s655
      %p659 = scmp.eq.s32.totalorder %s110, 0
      %p660 = por %p658, %p659
      %p661 = scmp.ne.s32.totalorder %s653, %s655
      %p662 = scmp.eq.s32.totalorder %s115, 1
      %p663 = por %p661, %p662
      %p664 = scmp.ne.s32.totalorder %s655, %s656
      %p665 = scmp.eq.s32.totalorder %s115, 0
      %p666 = por %p664, %p665
      %p667 = scmp.ne.s32.totalorder %s655, %s656
      %p668 = scmp.eq.s32.totalorder %s116, 1
      %p669 = por %p667, %p668
      %p671 = scmp.ne.s32.totalorder %s656, %s670
      %p672 = scmp.eq.s32.totalorder %s116, 0
      %p673 = por %p671, %p672
      %s675 = sadd.s32 %s674, 1
      %p678 = scmp.eq.s32.totalorder %s110, 1
      %p679 = scmp.ne.s32.totalorder %s674, %s676
      %p680 = scmp.eq.s32.totalorder %s110, 0
      %p681 = por %p679, %p680
      %p682 = scmp.ne.s32.totalorder %s674, %s676
      %p683 = scmp.eq.s32.totalorder %s115, 1
      %p684 = por %p682, %p683
      %p685 = scmp.ne.s32.totalorder %s676, %s677
      %p686 = scmp.eq.s32.totalorder %s115, 0
      %p687 = por %p685, %p686
      %p688 = scmp.ne.s32.totalorder %s676, %s677
      %p689 = scmp.eq.s32.totalorder %s116, 1
      %p690 = por %p688, %p689
      %p692 = scmp.ne.s32.totalorder %s677, %s691
      %p693 = scmp.eq.s32.totalorder %s116, 0
      %p694 = por %p692, %p693
      %s696 = sadd.s32 %s695, 1
      %p699 = scmp.eq.s32.totalorder %s110, 1
      %p700 = scmp.ne.s32.totalorder %s695, %s697
      %p701 = scmp.eq.s32.totalorder %s110, 0
      %p702 = por %p700, %p701
      %p703 = scmp.ne.s32.totalorder %s695, %s697
      %p704 = scmp.eq.s32.totalorder %s115, 1
      %p705 = por %p703, %p704
      %p706 = scmp.ne.s32.totalorder %s697, %s698
      %p707 = scmp.eq.s32.totalorder %s115, 0
      %p708 = por %p706, %p707
      %p709 = scmp.ne.s32.totalorder %s697, %s698
      %p710 = scmp.eq.s32.totalorder %s116, 1
      %p711 = por %p709, %p710
      %p713 = scmp.ne.s32.totalorder %s698, %s712
      %p714 = scmp.eq.s32.totalorder %s116, 0
      %p715 = por %p713, %p714
      %s717 = sadd.s32 %s716, 1
      %p720 = scmp.eq.s32.totalorder %s110, 1
      %p721 = scmp.ne.s32.totalorder %s716, %s718
      %p722 = scmp.eq.s32.totalorder %s110, 0
      %p723 = por %p721, %p722
      %p724 = scmp.ne.s32.totalorder %s716, %s718
      %p725 = scmp.eq.s32.totalorder %s115, 1
      %p726 = por %p724, %p725
      %p727 = scmp.ne.s32.totalorder %s718, %s719
      %p728 = scmp.eq.s32.totalorder %s115, 0
      %p729 = por %p727, %p728
      %p730 = scmp.ne.s32.totalorder %s718, %s719
      %p731 = scmp.eq.s32.totalorder %s116, 1
      %p732 = por %p730, %p731
      %p734 = scmp.ne.s32.totalorder %s719, %s733
      %p735 = scmp.eq.s32.totalorder %s116, 0
      %p736 = por %p734, %p735
      %s738 = sadd.s32 %s737, 1
      %p741 = scmp.eq.s32.totalorder %s110, 1
      %p742 = scmp.ne.s32.totalorder %s737, %s739
      %p743 = scmp.eq.s32.totalorder %s110, 0
      %p744 = por %p742, %p743
      %p745 = scmp.ne.s32.totalorder %s737, %s739
      %p746 = scmp.eq.s32.totalorder %s115, 1
      %p747 = por %p745, %p746
      %p748 = scmp.ne.s32.totalorder %s739, %s740
      %p749 = scmp.eq.s32.totalorder %s115, 0
      %p750 = por %p748, %p749
      %p751 = scmp.ne.s32.totalorder %s739, %s740
      %p752 = scmp.eq.s32.totalorder %s116, 1
      %p753 = por %p751, %p752
      %p755 = scmp.ne.s32.totalorder %s740, %s754
      %p756 = scmp.eq.s32.totalorder %s116, 0
      %p757 = por %p755, %p756
      %s759 = sadd.s32 %s758, 1
      %p762 = scmp.eq.s32.totalorder %s110, 1
      %p763 = scmp.ne.s32.totalorder %s758, %s760
      %p764 = scmp.eq.s32.totalorder %s110, 0
      %p765 = por %p763, %p764
      %p766 = scmp.ne.s32.totalorder %s758, %s760
      %p767 = scmp.eq.s32.totalorder %s115, 1
      %p768 = por %p766, %p767
      %p769 = scmp.ne.s32.totalorder %s760, %s761
      %p770 = scmp.eq.s32.totalorder %s115, 0
      %p771 = por %p769, %p770
      %p772 = scmp.ne.s32.totalorder %s760, %s761
      %p773 = scmp.eq.s32.totalorder %s116, 1
      %p774 = por %p772, %p773
      %p776 = scmp.ne.s32.totalorder %s761, %s775
      %p777 = scmp.eq.s32.totalorder %s116, 0
      %p778 = por %p776, %p777
      %s780 = sadd.s32 %s779, 1
      %p783 = scmp.eq.s32.totalorder %s110, 1
      %p784 = scmp.ne.s32.totalorder %s779, %s781
      %p785 = scmp.eq.s32.totalorder %s110, 0
      %p786 = por %p784, %p785
      %p787 = scmp.ne.s32.totalorder %s779, %s781
      %p788 = scmp.eq.s32.totalorder %s115, 1
      %p789 = por %p787, %p788
      %p790 = scmp.ne.s32.totalorder %s781, %s782
      %p791 = scmp.eq.s32.totalorder %s115, 0
      %p792 = por %p790, %p791
      %p793 = scmp.ne.s32.totalorder %s781, %s782
      %p794 = scmp.eq.s32.totalorder %s116, 1
      %p795 = por %p793, %p794
      %p797 = scmp.ne.s32.totalorder %s782, %s796
      %p798 = scmp.eq.s32.totalorder %s116, 0
      %p799 = por %p797, %p798
      %s801 = sadd.s32 %s800, 1
      %p804 = scmp.eq.s32.totalorder %s110, 1
      %p805 = scmp.ne.s32.totalorder %s800, %s802
      %p806 = scmp.eq.s32.totalorder %s110, 0
      %p807 = por %p805, %p806
      %p808 = scmp.ne.s32.totalorder %s800, %s802
      %p809 = scmp.eq.s32.totalorder %s115, 1
      %p810 = por %p808, %p809
      %p811 = scmp.ne.s32.totalorder %s802, %s803
      %p812 = scmp.eq.s32.totalorder %s115, 0
      %p813 = por %p811, %p812
      %p814 = scmp.ne.s32.totalorder %s802, %s803
      %p815 = scmp.eq.s32.totalorder %s116, 1
      %p816 = por %p814, %p815
      %p818 = scmp.ne.s32.totalorder %s803, %s817
      %p819 = scmp.eq.s32.totalorder %s116, 0
      %p820 = por %p818, %p819
      %s822 = sadd.s32 %s821, 1
      %p825 = scmp.eq.s32.totalorder %s110, 1
      %p826 = scmp.ne.s32.totalorder %s821, %s823
      %p827 = scmp.eq.s32.totalorder %s110, 0
      %p828 = por %p826, %p827
      %p829 = scmp.ne.s32.totalorder %s821, %s823
      %p830 = scmp.eq.s32.totalorder %s115, 1
      %p831 = por %p829, %p830
      %p832 = scmp.ne.s32.totalorder %s823, %s824
      %p833 = scmp.eq.s32.totalorder %s115, 0
      %p834 = por %p832, %p833
      %p835 = scmp.ne.s32.totalorder %s823, %s824
      %p836 = scmp.eq.s32.totalorder %s116, 1
      %p837 = por %p835, %p836
      %p839 = scmp.ne.s32.totalorder %s824, %s838
      %p840 = scmp.eq.s32.totalorder %s116, 0
      %p841 = por %p839, %p840
      %s843 = sadd.s32 %s842, 1
      %p846 = scmp.eq.s32.totalorder %s110, 1
      %p847 = scmp.ne.s32.totalorder %s842, %s844
      %p848 = scmp.eq.s32.totalorder %s110, 0
      %p849 = por %p847, %p848
      %p850 = scmp.ne.s32.totalorder %s842, %s844
      %p851 = scmp.eq.s32.totalorder %s115, 1
      %p852 = por %p850, %p851
      %p853 = scmp.ne.s32.totalorder %s844, %s845
      %p854 = scmp.eq.s32.totalorder %s115, 0
      %p855 = por %p853, %p854
      %p856 = scmp.ne.s32.totalorder %s844, %s845
      %p857 = scmp.eq.s32.totalorder %s116, 1
      %p858 = por %p856, %p857
      %p860 = scmp.ne.s32.totalorder %s845, %s859
      %p861 = scmp.eq.s32.totalorder %s116, 0
      %p862 = por %p860, %p861
      %s864 = sadd.s32 %s863, 1
      %p867 = scmp.eq.s32.totalorder %s110, 1
      %p868 = scmp.ne.s32.totalorder %s863, %s865
      %p869 = scmp.eq.s32.totalorder %s110, 0
      %p870 = por %p868, %p869
      %p871 = scmp.ne.s32.totalorder %s863, %s865
      %p872 = scmp.eq.s32.totalorder %s115, 1
      %p873 = por %p871, %p872
      %p874 = scmp.ne.s32.totalorder %s865, %s866
      %p875 = scmp.eq.s32.totalorder %s115, 0
      %p876 = por %p874, %p875
      %p877 = scmp.ne.s32.totalorder %s865, %s866
      %p878 = scmp.eq.s32.totalorder %s116, 1
      %p879 = por %p877, %p878
      %p881 = scmp.ne.s32.totalorder %s866, %s880
      %p882 = scmp.eq.s32.totalorder %s116, 0
      %p883 = por %p881, %p882
      %s885 = sadd.s32 %s884, 1
      %p888 = scmp.eq.s32.totalorder %s110, 1
      %p889 = scmp.ne.s32.totalorder %s884, %s886
      %p890 = scmp.eq.s32.totalorder %s110, 0
      %p891 = por %p889, %p890
      %p892 = scmp.ne.s32.totalorder %s884, %s886
      %p893 = scmp.eq.s32.totalorder %s115, 1
      %p894 = por %p892, %p893
      %p895 = scmp.ne.s32.totalorder %s886, %s887
      %p896 = scmp.eq.s32.totalorder %s115, 0
      %p897 = por %p895, %p896
      %p898 = scmp.ne.s32.totalorder %s886, %s887
      %p899 = scmp.eq.s32.totalorder %s116, 1
      %p900 = por %p898, %p899
      %p902 = scmp.ne.s32.totalorder %s887, %s901
      %p903 = scmp.eq.s32.totalorder %s116, 0
      %p904 = por %p902, %p903
      %s906 = sadd.s32 %s905, 1
      %p909 = scmp.eq.s32.totalorder %s110, 1
      %p910 = scmp.ne.s32.totalorder %s905, %s907
      %p911 = scmp.eq.s32.totalorder %s110, 0
      %p912 = por %p910, %p911
      %p913 = scmp.ne.s32.totalorder %s905, %s907
      %p914 = scmp.eq.s32.totalorder %s115, 1
      %p915 = por %p913, %p914
      %p916 = scmp.ne.s32.totalorder %s907, %s908
      %p917 = scmp.eq.s32.totalorder %s115, 0
      %p918 = por %p916, %p917
      %p919 = scmp.ne.s32.totalorder %s907, %s908
      %p920 = scmp.eq.s32.totalorder %s116, 1
      %p921 = por %p919, %p920
      %p923 = scmp.ne.s32.totalorder %s908, %s922
      %p924 = scmp.eq.s32.totalorder %s116, 0
      %p925 = por %p923, %p924
      %s927 = sadd.s32 %s926, 1
      %p930 = scmp.eq.s32.totalorder %s110, 1
      %p931 = scmp.ne.s32.totalorder %s926, %s928
      %p932 = scmp.eq.s32.totalorder %s110, 0
      %p933 = por %p931, %p932
      %p934 = scmp.ne.s32.totalorder %s926, %s928
      %p935 = scmp.eq.s32.totalorder %s115, 1
      %p936 = por %p934, %p935
      %p937 = scmp.ne.s32.totalorder %s928, %s929
      %p938 = scmp.eq.s32.totalorder %s115, 0
      %p939 = por %p937, %p938
      %p940 = scmp.ne.s32.totalorder %s928, %s929
      %p941 = scmp.eq.s32.totalorder %s116, 1
      %p942 = por %p940, %p941
      %p944 = scmp.ne.s32.totalorder %s929, %s943
      %p945 = scmp.eq.s32.totalorder %s116, 0
      %p946 = por %p944, %p945
      %s948 = sadd.s32 %s947, 1
      %p951 = scmp.eq.s32.totalorder %s110, 1
      %p952 = scmp.ne.s32.totalorder %s947, %s949
      %p953 = scmp.eq.s32.totalorder %s110, 0
      %p954 = por %p952, %p953
      %p955 = scmp.ne.s32.totalorder %s947, %s949
      %p956 = scmp.eq.s32.totalorder %s115, 1
      %p957 = por %p955, %p956
      %p958 = scmp.ne.s32.totalorder %s949, %s950
      %p959 = scmp.eq.s32.totalorder %s115, 0
      %p960 = por %p958, %p959
      %p961 = scmp.ne.s32.totalorder %s949, %s950
      %p962 = scmp.eq.s32.totalorder %s116, 1
      %p963 = por %p961, %p962
      %p965 = scmp.ne.s32.totalorder %s950, %s964
      %p966 = scmp.eq.s32.totalorder %s116, 0
      %p967 = por %p965, %p966
      %s969 = sadd.s32 %s968, 1
      %p972 = scmp.eq.s32.totalorder %s110, 1
      %p973 = scmp.ne.s32.totalorder %s968, %s970
      %p974 = scmp.eq.s32.totalorder %s110, 0
      %p975 = por %p973, %p974
      %p976 = scmp.ne.s32.totalorder %s968, %s970
      %p977 = scmp.eq.s32.totalorder %s115, 1
      %p978 = por %p976, %p977
      %p979 = scmp.ne.s32.totalorder %s970, %s971
      %p980 = scmp.eq.s32.totalorder %s115, 0
      %p981 = por %p979, %p980
      %p982 = scmp.ne.s32.totalorder %s970, %s971
      %p983 = scmp.eq.s32.totalorder %s116, 1
      %p984 = por %p982, %p983
      %p986 = scmp.ne.s32.totalorder %s971, %s985
      %p987 = scmp.eq.s32.totalorder %s116, 0
      %p988 = por %p986, %p987
      %s990 = sadd.s32 %s989, 1
      %p993 = scmp.eq.s32.totalorder %s110, 1
      %p994 = scmp.ne.s32.totalorder %s989, %s991
      %p995 = scmp.eq.s32.totalorder %s110, 0
      %p996 = por %p994, %p995
      %p997 = scmp.ne.s32.totalorder %s989, %s991
      %p998 = scmp.eq.s32.totalorder %s115, 1
      %p999 = por %p997, %p998
      %p1000 = scmp.ne.s32.totalorder %s991, %s992
      %p1001 = scmp.eq.s32.totalorder %s115, 0
      %p1002 = por %p1000, %p1001
      %p1003 = scmp.ne.s32.totalorder %s991, %s992
      %p1004 = scmp.eq.s32.totalorder %s116, 1
      %p1005 = por %p1003, %p1004
      %p1007 = scmp.ne.s32.totalorder %s992, %s1006
      %p1008 = scmp.eq.s32.totalorder %s116, 0
      %p1009 = por %p1007, %p1008
      %s1011 = sadd.s32 %s1010, 1
      %p1014 = scmp.eq.s32.totalorder %s110, 1
      %p1015 = scmp.ne.s32.totalorder %s1010, %s1012
      %p1016 = scmp.eq.s32.totalorder %s110, 0
      %p1017 = por %p1015, %p1016
      %p1018 = scmp.ne.s32.totalorder %s1010, %s1012
      %p1019 = scmp.eq.s32.totalorder %s115, 1
      %p1020 = por %p1018, %p1019
      %p1021 = scmp.ne.s32.totalorder %s1012, %s1013
      %p1022 = scmp.eq.s32.totalorder %s115, 0
      %p1023 = por %p1021, %p1022
      %p1024 = scmp.ne.s32.totalorder %s1012, %s1013
      %p1025 = scmp.eq.s32.totalorder %s116, 1
      %p1026 = por %p1024, %p1025
      %p1028 = scmp.ne.s32.totalorder %s1013, %s1027
      %p1029 = scmp.eq.s32.totalorder %s116, 0
      %p1030 = por %p1028, %p1029
      %s1032 = sadd.s32 %s1031, 1
      %p1035 = scmp.eq.s32.totalorder %s110, 1
      %p1036 = scmp.ne.s32.totalorder %s1031, %s1033
      %p1037 = scmp.eq.s32.totalorder %s110, 0
      %p1038 = por %p1036, %p1037
      %p1039 = scmp.ne.s32.totalorder %s1031, %s1033
      %p1040 = scmp.eq.s32.totalorder %s115, 1
      %p1041 = por %p1039, %p1040
      %p1042 = scmp.ne.s32.totalorder %s1033, %s1034
      %p1043 = scmp.eq.s32.totalorder %s115, 0
      %p1044 = por %p1042, %p1043
      %p1045 = scmp.ne.s32.totalorder %s1033, %s1034
      %p1046 = scmp.eq.s32.totalorder %s116, 1
      %p1047 = por %p1045, %p1046
      %p1049 = scmp.ne.s32.totalorder %s1034, %s1048
      %p1050 = scmp.eq.s32.totalorder %s116, 0
      %p1051 = por %p1049, %p1050
      %s1053 = sadd.s32 %s1052, 1
      %p1056 = scmp.eq.s32.totalorder %s110, 1
      %p1057 = scmp.ne.s32.totalorder %s1052, %s1054
      %p1058 = scmp.eq.s32.totalorder %s110, 0
      %p1059 = por %p1057, %p1058
      %p1060 = scmp.ne.s32.totalorder %s1052, %s1054
      %p1061 = scmp.eq.s32.totalorder %s115, 1
      %p1062 = por %p1060, %p1061
      %p1063 = scmp.ne.s32.totalorder %s1054, %s1055
      %p1064 = scmp.eq.s32.totalorder %s115, 0
      %p1065 = por %p1063, %p1064
      %p1066 = scmp.ne.s32.totalorder %s1054, %s1055
      %p1067 = scmp.eq.s32.totalorder %s116, 1
      %p1068 = por %p1066, %p1067
      %p1070 = scmp.ne.s32.totalorder %s1055, %s1069
      %p1071 = scmp.eq.s32.totalorder %s116, 0
      %p1072 = por %p1070, %p1071
      %s1074 = sadd.s32 %s1073, 1
      %p1077 = scmp.eq.s32.totalorder %s110, 1
      %p1078 = scmp.ne.s32.totalorder %s1073, %s1075
      %p1079 = scmp.eq.s32.totalorder %s110, 0
      %p1080 = por %p1078, %p1079
      %p1081 = scmp.ne.s32.totalorder %s1073, %s1075
      %p1082 = scmp.eq.s32.totalorder %s115, 1
      %p1083 = por %p1081, %p1082
      %p1084 = scmp.ne.s32.totalorder %s1075, %s1076
      %p1085 = scmp.eq.s32.totalorder %s115, 0
      %p1086 = por %p1084, %p1085
      %p1087 = scmp.ne.s32.totalorder %s1075, %s1076
      %p1088 = scmp.eq.s32.totalorder %s116, 1
      %p1089 = por %p1087, %p1088
      %p1091 = scmp.ne.s32.totalorder %s1076, %s1090
      %p1092 = scmp.eq.s32.totalorder %s116, 0
      %p1093 = por %p1091, %p1092
      %s1094 = ssub.s32 %s110, %s117
      %p1095 = scmp.eq.s32.totalorder %s1094, 0
      %s1097 = sadd.s32 %s1096, 1
      %s1098 = scalar_select %p1095, %s1096, %s1097
      %p1101 = pneg %p1095
      %p1102 = scmp.eq.s32.totalorder %s110, 1
      %p1103 = por %p1101, %p1102
      %p1104 = scmp.ne.s32.totalorder %s1096, %s1099
      %p1105 = scmp.eq.s32.totalorder %s110, 0
      %p1106 = por %p1104, %p1105
      %p1107 = scmp.ne.s32.totalorder %s1096, %s1099
      %p1108 = scmp.eq.s32.totalorder %s115, 1
      %p1109 = por %p1107, %p1108
      %p1110 = scmp.ne.s32.totalorder %s1099, %s1100
      %p1111 = scmp.eq.s32.totalorder %s115, 0
      %p1112 = por %p1110, %p1111
      %p1113 = scmp.ne.s32.totalorder %s1099, %s1100
      %p1114 = scmp.eq.s32.totalorder %s116, 1
      %p1115 = por %p1113, %p1114
      %p1117 = scmp.ne.s32.totalorder %s1100, %s1116
      %p1118 = scmp.eq.s32.totalorder %s116, 0
      %p1119 = por %p1117, %p1118
      %p1120 = scmp.le.s32.totalorder 1, %s110
      %p1121 = scmp.lt.s32.totalorder %s110, 3
      %p1122 = pnand %p1120, %p1121
      %p1123 = pneg %p1122
      // Predicated region
      $region9: #{small_forward.1} parent=5 // pred_check
        _
      $region10: #{small_forward.1} parent=5 // pred_check_branch
        %1125 = sbr.rel (%p1122) target = $region12
      $region11: #{small_forward.1} parent=5 // pred_region
        %s1126 = ssub.s32 %s110, 1
        // Predicated region
        $region13: #{small_forward.1} parent=11 // pred_check
          %p1127 = pneg %p183
        $region14: #{small_forward.1} parent=11 // pred_check_branch
          %1129 = sbr.rel (%p1127) target = $region16
        $region15: #{small_forward.1} parent=11 // pred_region
          _
        $region16: #{small_forward.1} parent=11 // pred_fallthru
          _
        // Predicated region
        $region17: #{small_forward.1} parent=11 // pred_check
          %p1130 = pneg %p204
        $region18: #{small_forward.1} parent=11 // pred_check_branch
          %1132 = sbr.rel (%p1130) target = $region20
        $region19: #{small_forward.1} parent=11 // pred_region
          _
        $region20: #{small_forward.1} parent=11 // pred_fallthru
          _
        // Predicated region
        $region21: #{small_forward.1} parent=11 // pred_check
          %p1133 = pneg %p225
        $region22: #{small_forward.1} parent=11 // pred_check_branch
          %1135 = sbr.rel (%p1133) target = $region24
        $region23: #{small_forward.1} parent=11 // pred_region
          _
        $region24: #{small_forward.1} parent=11 // pred_fallthru
          _
        // Predicated region
        $region25: #{small_forward.1} parent=11 // pred_check
          %p1136 = pneg %p246
        $region26: #{small_forward.1} parent=11 // pred_check_branch
          %1138 = sbr.rel (%p1136) target = $region28
        $region27: #{small_forward.1} parent=11 // pred_region
          _
        $region28: #{small_forward.1} parent=11 // pred_fallthru
          _
        // Predicated region
        $region29: #{small_forward.1} parent=11 // pred_check
          %p1139 = pneg %p267
        $region30: #{small_forward.1} parent=11 // pred_check_branch
          %1141 = sbr.rel (%p1139) target = $region32
        $region31: #{small_forward.1} parent=11 // pred_region
          _
        $region32: #{small_forward.1} parent=11 // pred_fallthru
          _
        // Predicated region
        $region33: #{small_forward.1} parent=11 // pred_check
          %p1142 = pneg %p288
        $region34: #{small_forward.1} parent=11 // pred_check_branch
          %1144 = sbr.rel (%p1142) target = $region36
        $region35: #{small_forward.1} parent=11 // pred_region
          %s1146 = ssub.s32 128, 128
          %1147 = vsyncadd [#allocation4], %s1146
          %s1149 = sshll.u32 [#allocation3], 4
          %s1150 = int_to_ptr.vmem [resolvable:$true] %s1149
          %1152 = dma.hbm_to_vmem [thread:$0]  %s15, 128, %s1150, [#allocation4]
        $region36: #{small_forward.1} parent=11 // pred_fallthru
          _
        // Predicated region
        $region37: #{small_forward.1} parent=11 // pred_check
          %p1153 = pneg %p309
        $region38: #{small_forward.1} parent=11 // pred_check_branch
          %1155 = sbr.rel (%p1153) target = $region40
        $region39: #{small_forward.1} parent=11 // pred_region
          _
        $region40: #{small_forward.1} parent=11 // pred_fallthru
          _
        // Predicated region
        $region41: #{small_forward.1} parent=11 // pred_check
          %p1156 = pneg %p330
        $region42: #{small_forward.1} parent=11 // pred_check_branch
          %1158 = sbr.rel (%p1156) target = $region44
        $region43: #{small_forward.1} parent=11 // pred_region
          _
        $region44: #{small_forward.1} parent=11 // pred_fallthru
          _
        // Predicated region
        $region45: #{small_forward.1} parent=11 // pred_check
          %p1159 = pneg %p351
        $region46: #{small_forward.1} parent=11 // pred_check_branch
          %1161 = sbr.rel (%p1159) target = $region48
        $region47: #{small_forward.1} parent=11 // pred_region
          %s1163 = ssub.s32 128, 128
          %1164 = vsyncadd [#allocation6], %s1163
          %s1166 = sshll.u32 [#allocation5], 4
          %s1167 = int_to_ptr.vmem [resolvable:$true] %s1166
          %1169 = dma.hbm_to_vmem [thread:$0]  %s21, 128, %s1167, [#allocation6]
        $region48: #{small_forward.1} parent=11 // pred_fallthru
          _
        // Predicated region
        $region49: #{small_forward.1} parent=11 // pred_check
          %p1170 = pneg %p372
        $region50: #{small_forward.1} parent=11 // pred_check_branch
          %1172 = sbr.rel (%p1170) target = $region52
        $region51: #{small_forward.1} parent=11 // pred_region
          %s1174 = ssub.s32 32, 32
          %1175 = vsyncadd [#allocation6], %s1174
          %s1177 = sshll.u32 [#allocation7], 4
          %s1178 = int_to_ptr.vmem [resolvable:$true] %s1177
          %1180 = dma.hbm_to_vmem [thread:$0]  %s23, 32, %s1178, [#allocation6]
        $region52: #{small_forward.1} parent=11 // pred_fallthru
          _
        // Predicated region
        $region53: #{small_forward.1} parent=11 // pred_check
          %p1181 = pneg %p393
        $region54: #{small_forward.1} parent=11 // pred_check_branch
          %1183 = sbr.rel (%p1181) target = $region56
        $region55: #{small_forward.1} parent=11 // pred_region
          %s1185 = ssub.s32 16, 16
          %1186 = vsyncadd [#allocation9], %s1185
          %s1188 = sshll.u32 [#allocation8], 4
          %s1189 = int_to_ptr.vmem [resolvable:$true] %s1188
          %1191 = dma.hbm_to_vmem [thread:$0]  %s25, 16, %s1189, [#allocation9]
        $region56: #{small_forward.1} parent=11 // pred_fallthru
          _
        // Predicated region
        $region57: #{small_forward.1} parent=11 // pred_check
          %p1192 = pneg %p414
        $region58: #{small_forward.1} parent=11 // pred_check_branch
          %1194 = sbr.rel (%p1192) target = $region60
        $region59: #{small_forward.1} parent=11 // pred_region
          _
        $region60: #{small_forward.1} parent=11 // pred_fallthru
          _
        // Predicated region
        $region61: #{small_forward.1} parent=11 // pred_check
          %p1195 = pneg %p435
        $region62: #{small_forward.1} parent=11 // pred_check_branch
          %1197 = sbr.rel (%p1195) target = $region64
        $region63: #{small_forward.1} parent=11 // pred_region
          %s1199 = ssub.s32 16, 16
          %1200 = vsyncadd [#allocation9], %s1199
          %s1202 = sshll.u32 [#allocation10], 4
          %s1203 = int_to_ptr.vmem [resolvable:$true] %s1202
          %1205 = dma.hbm_to_vmem [thread:$0]  %s29, 16, %s1203, [#allocation9]
        $region64: #{small_forward.1} parent=11 // pred_fallthru
          _
        // Predicated region
        $region65: #{small_forward.1} parent=11 // pred_check
          %p1206 = pneg %p456
        $region66: #{small_forward.1} parent=11 // pred_check_branch
          %1208 = sbr.rel (%p1206) target = $region68
        $region67: #{small_forward.1} parent=11 // pred_region
          _
        $region68: #{small_forward.1} parent=11 // pred_fallthru
          _
        // Predicated region
        $region69: #{small_forward.1} parent=11 // pred_check
          %p1209 = pneg %p477
        $region70: #{small_forward.1} parent=11 // pred_check_branch
          %1211 = sbr.rel (%p1209) target = $region72
        $region71: #{small_forward.1} parent=11 // pred_region
          _
        $region72: #{small_forward.1} parent=11 // pred_fallthru
          _
        // Predicated region
        $region73: #{small_forward.1} parent=11 // pred_check
          %p1212 = pneg %p498
        $region74: #{small_forward.1} parent=11 // pred_check_branch
          %1214 = sbr.rel (%p1212) target = $region76
        $region75: #{small_forward.1} parent=11 // pred_region
          %s1216 = ssub.s32 16, 16
          %1217 = vsyncadd [#allocation12], %s1216
          %s1219 = sshll.u32 [#allocation11], 4
          %s1220 = int_to_ptr.vmem [resolvable:$true] %s1219
          %1222 = dma.hbm_to_vmem [thread:$0]  %s35, 16, %s1220, [#allocation12]
        $region76: #{small_forward.1} parent=11 // pred_fallthru
          _
        // Predicated region
        $region77: #{small_forward.1} parent=11 // pred_check
          %p1223 = pneg %p519
        $region78: #{small_forward.1} parent=11 // pred_check_branch
          %1225 = sbr.rel (%p1223) target = $region80
        $region79: #{small_forward.1} parent=11 // pred_region
          _
        $region80: #{small_forward.1} parent=11 // pred_fallthru
          _
        // Predicated region
        $region81: #{small_forward.1} parent=11 // pred_check
          %p1226 = pneg %p540
        $region82: #{small_forward.1} parent=11 // pred_check_branch
          %1228 = sbr.rel (%p1226) target = $region84
        $region83: #{small_forward.1} parent=11 // pred_region
          _
        $region84: #{small_forward.1} parent=11 // pred_fallthru
          _
        // Predicated region
        $region85: #{small_forward.1} parent=11 // pred_check
          %p1229 = pneg %p561
        $region86: #{small_forward.1} parent=11 // pred_check_branch
          %1231 = sbr.rel (%p1229) target = $region88
        $region87: #{small_forward.1} parent=11 // pred_region
          %s1233 = ssub.s32 16, 16
          %1234 = vsyncadd [#allocation12], %s1233
          %s1236 = sshll.u32 [#allocation13], 4
          %s1237 = int_to_ptr.vmem [resolvable:$true] %s1236
          %1239 = dma.hbm_to_vmem [thread:$0]  %s41, 16, %s1237, [#allocation12]
        $region88: #{small_forward.1} parent=11 // pred_fallthru
          _
        // Predicated region
        $region89: #{small_forward.1} parent=11 // pred_check
          %p1240 = pneg %p582
        $region90: #{small_forward.1} parent=11 // pred_check_branch
          %1242 = sbr.rel (%p1240) target = $region92
        $region91: #{small_forward.1} parent=11 // pred_region
          _
        $region92: #{small_forward.1} parent=11 // pred_fallthru
          _
        // Predicated region
        $region93: #{small_forward.1} parent=11 // pred_check
          %p1243 = pneg %p603
        $region94: #{small_forward.1} parent=11 // pred_check_branch
          %1245 = sbr.rel (%p1243) target = $region96
        $region95: #{small_forward.1} parent=11 // pred_region
          _
        $region96: #{small_forward.1} parent=11 // pred_fallthru
          _
        // Predicated region
        $region97: #{small_forward.1} parent=11 // pred_check
          %p1246 = pneg %p624
        $region98: #{small_forward.1} parent=11 // pred_check_branch
          %1248 = sbr.rel (%p1246) target = $region100
        $region99: #{small_forward.1} parent=11 // pred_region
          %s1250 = ssub.s32 16, 16
          %1251 = vsyncadd [#allocation15], %s1250
          %s1253 = sshll.u32 [#allocation14], 4
          %s1254 = int_to_ptr.vmem [resolvable:$true] %s1253
          %1256 = dma.hbm_to_vmem [thread:$0]  %s47, 16, %s1254, [#allocation15]
        $region100: #{small_forward.1} parent=11 // pred_fallthru
          _
        // Predicated region
        $region101: #{small_forward.1} parent=11 // pred_check
          %p1257 = pneg %p645
        $region102: #{small_forward.1} parent=11 // pred_check_branch
          %1259 = sbr.rel (%p1257) target = $region104
        $region103: #{small_forward.1} parent=11 // pred_region
          _
        $region104: #{small_forward.1} parent=11 // pred_fallthru
          _
        // Predicated region
        $region105: #{small_forward.1} parent=11 // pred_check
          %p1260 = pneg %p666
        $region106: #{small_forward.1} parent=11 // pred_check_branch
          %1262 = sbr.rel (%p1260) target = $region108
        $region107: #{small_forward.1} parent=11 // pred_region
          _
        $region108: #{small_forward.1} parent=11 // pred_fallthru
          _
        // Predicated region
        $region109: #{small_forward.1} parent=11 // pred_check
          %p1263 = pneg %p687
        $region110: #{small_forward.1} parent=11 // pred_check_branch
          %1265 = sbr.rel (%p1263) target = $region112
        $region111: #{small_forward.1} parent=11 // pred_region
          %s1267 = ssub.s32 16, 16
          %1268 = vsyncadd [#allocation15], %s1267
          %s1270 = sshll.u32 [#allocation16], 4
          %s1271 = int_to_ptr.vmem [resolvable:$true] %s1270
          %1273 = dma.hbm_to_vmem [thread:$0]  %s53, 16, %s1271, [#allocation15]
        $region112: #{small_forward.1} parent=11 // pred_fallthru
          _
        // Predicated region
        $region113: #{small_forward.1} parent=11 // pred_check
          %p1274 = pneg %p708
        $region114: #{small_forward.1} parent=11 // pred_check_branch
          %1276 = sbr.rel (%p1274) target = $region116
        $region115: #{small_forward.1} parent=11 // pred_region
          %s1278 = ssub.s32 256, 256
          %1279 = vsyncadd [#allocation18], %s1278
          %s1280 = sshll.u32 [#allocation17], 4
          %s1281 = int_to_ptr.vmem [resolvable:$true] %s1280
          %1286 = dma.hbm_to_vmem [thread:$0]  %s55, 256, %s1281, [#allocation18], 128, 128, 8
        $region116: #{small_forward.1} parent=11 // pred_fallthru
          _
        // Predicated region
        $region117: #{small_forward.1} parent=11 // pred_check
          %p1287 = pneg %p729
        $region118: #{small_forward.1} parent=11 // pred_check_branch
          %1289 = sbr.rel (%p1287) target = $region120
        $region119: #{small_forward.1} parent=11 // pred_region
          _
        $region120: #{small_forward.1} parent=11 // pred_fallthru
          _
        // Predicated region
        $region121: #{small_forward.1} parent=11 // pred_check
          %p1290 = pneg %p750
        $region122: #{small_forward.1} parent=11 // pred_check_branch
          %1292 = sbr.rel (%p1290) target = $region124
        $region123: #{small_forward.1} parent=11 // pred_region
          %s1294 = ssub.s32 16, 16
          %1295 = vsyncadd [#allocation18], %s1294
          %s1297 = sshll.u32 [#allocation19], 4
          %s1298 = int_to_ptr.vmem [resolvable:$true] %s1297
          %1300 = dma.hbm_to_vmem [thread:$0]  %s59, 16, %s1298, [#allocation18]
        $region124: #{small_forward.1} parent=11 // pred_fallthru
          _
        // Predicated region
        $region125: #{small_forward.1} parent=11 // pred_check
          %p1301 = pneg %p771
        $region126: #{small_forward.1} parent=11 // pred_check_branch
          %1303 = sbr.rel (%p1301) target = $region128
        $region127: #{small_forward.1} parent=11 // pred_region
          %s1305 = ssub.s32 256, 256
          %1306 = vsyncadd [#allocation21], %s1305
          %s1307 = sshll.u32 [#allocation20], 4
          %s1308 = int_to_ptr.vmem [resolvable:$true] %s1307
          %1313 = dma.hbm_to_vmem [thread:$0]  %s61, 256, %s1308, [#allocation21], 128, 128, 8
        $region128: #{small_forward.1} parent=11 // pred_fallthru
          _
        // Predicated region
        $region129: #{small_forward.1} parent=11 // pred_check
          %p1314 = pneg %p792
        $region130: #{small_forward.1} parent=11 // pred_check_branch
          %1316 = sbr.rel (%p1314) target = $region132
        $region131: #{small_forward.1} parent=11 // pred_region
          _
        $region132: #{small_forward.1} parent=11 // pred_fallthru
          _
        // Predicated region
        $region133: #{small_forward.1} parent=11 // pred_check
          %p1317 = pneg %p813
        $region134: #{small_forward.1} parent=11 // pred_check_branch
          %1319 = sbr.rel (%p1317) target = $region136
        $region135: #{small_forward.1} parent=11 // pred_region
          %s1321 = ssub.s32 16, 16
          %1322 = vsyncadd [#allocation21], %s1321
          %s1324 = sshll.u32 [#allocation22], 4
          %s1325 = int_to_ptr.vmem [resolvable:$true] %s1324
          %1327 = dma.hbm_to_vmem [thread:$0]  %s65, 16, %s1325, [#allocation21]
        $region136: #{small_forward.1} parent=11 // pred_fallthru
          _
        // Predicated region
        $region137: #{small_forward.1} parent=11 // pred_check
          %p1328 = pneg %p834
        $region138: #{small_forward.1} parent=11 // pred_check_branch
          %1330 = sbr.rel (%p1328) target = $region140
        $region139: #{small_forward.1} parent=11 // pred_region
          _
        $region140: #{small_forward.1} parent=11 // pred_fallthru
          _
        // Predicated region
        $region141: #{small_forward.1} parent=11 // pred_check
          %p1331 = pneg %p855
        $region142: #{small_forward.1} parent=11 // pred_check_branch
          %1333 = sbr.rel (%p1331) target = $region144
        $region143: #{small_forward.1} parent=11 // pred_region
          _
        $region144: #{small_forward.1} parent=11 // pred_fallthru
          _
        // Predicated region
        $region145: #{small_forward.1} parent=11 // pred_check
          %p1334 = pneg %p876
        $region146: #{small_forward.1} parent=11 // pred_check_branch
          %1336 = sbr.rel (%p1334) target = $region148
        $region147: #{small_forward.1} parent=11 // pred_region
          %s1338 = ssub.s32 16, 16
          %1339 = vsyncadd [#allocation24], %s1338
          %s1341 = sshll.u32 [#allocation23], 4
          %s1342 = int_to_ptr.vmem [resolvable:$true] %s1341
          %1344 = dma.hbm_to_vmem [thread:$0]  %s71, 16, %s1342, [#allocation24]
        $region148: #{small_forward.1} parent=11 // pred_fallthru
          _
        // Predicated region
        $region149: #{small_forward.1} parent=11 // pred_check
          %p1345 = pneg %p897
        $region150: #{small_forward.1} parent=11 // pred_check_branch
          %1347 = sbr.rel (%p1345) target = $region152
        $region151: #{small_forward.1} parent=11 // pred_region
          _
        $region152: #{small_forward.1} parent=11 // pred_fallthru
          _
        // Predicated region
        $region153: #{small_forward.1} parent=11 // pred_check
          %p1348 = pneg %p918
        $region154: #{small_forward.1} parent=11 // pred_check_branch
          %1350 = sbr.rel (%p1348) target = $region156
        $region155: #{small_forward.1} parent=11 // pred_region
          _
        $region156: #{small_forward.1} parent=11 // pred_fallthru
          _
        // Predicated region
        $region157: #{small_forward.1} parent=11 // pred_check
          %p1351 = pneg %p939
        $region158: #{small_forward.1} parent=11 // pred_check_branch
          %1353 = sbr.rel (%p1351) target = $region160
        $region159: #{small_forward.1} parent=11 // pred_region
          %s1355 = ssub.s32 16, 16
          %1356 = vsyncadd [#allocation24], %s1355
          %s1358 = sshll.u32 [#allocation25], 4
          %s1359 = int_to_ptr.vmem [resolvable:$true] %s1358
          %1361 = dma.hbm_to_vmem [thread:$0]  %s77, 16, %s1359, [#allocation24]
        $region160: #{small_forward.1} parent=11 // pred_fallthru
          _
        // Predicated region
        $region161: #{small_forward.1} parent=11 // pred_check
          %p1362 = pneg %p960
        $region162: #{small_forward.1} parent=11 // pred_check_branch
          %1364 = sbr.rel (%p1362) target = $region164
        $region163: #{small_forward.1} parent=11 // pred_region
          _
        $region164: #{small_forward.1} parent=11 // pred_fallthru
          _
        // Predicated region
        $region165: #{small_forward.1} parent=11 // pred_check
          %p1365 = pneg %p981
        $region166: #{small_forward.1} parent=11 // pred_check_branch
          %1367 = sbr.rel (%p1365) target = $region168
        $region167: #{small_forward.1} parent=11 // pred_region
          _
        $region168: #{small_forward.1} parent=11 // pred_fallthru
          _
        // Predicated region
        $region169: #{small_forward.1} parent=11 // pred_check
          %p1368 = pneg %p1002
        $region170: #{small_forward.1} parent=11 // pred_check_branch
          %1370 = sbr.rel (%p1368) target = $region172
        $region171: #{small_forward.1} parent=11 // pred_region
          %s1372 = ssub.s32 16, 16
          %1373 = vsyncadd [#allocation27], %s1372
          %s1375 = sshll.u32 [#allocation26], 4
          %s1376 = int_to_ptr.vmem [resolvable:$true] %s1375
          %1378 = dma.hbm_to_vmem [thread:$0]  %s83, 16, %s1376, [#allocation27]
        $region172: #{small_forward.1} parent=11 // pred_fallthru
          _
        // Predicated region
        $region173: #{small_forward.1} parent=11 // pred_check
          %p1379 = pneg %p1023
        $region174: #{small_forward.1} parent=11 // pred_check_branch
          %1381 = sbr.rel (%p1379) target = $region176
        $region175: #{small_forward.1} parent=11 // pred_region
          _
        $region176: #{small_forward.1} parent=11 // pred_fallthru
          _
        // Predicated region
        $region177: #{small_forward.1} parent=11 // pred_check
          %p1382 = pneg %p1044
        $region178: #{small_forward.1} parent=11 // pred_check_branch
          %1384 = sbr.rel (%p1382) target = $region180
        $region179: #{small_forward.1} parent=11 // pred_region
          %s1386 = ssub.s32 16, 16
          %1387 = vsyncadd [#allocation27], %s1386
          %s1389 = sshll.u32 [#allocation28], 4
          %s1390 = int_to_ptr.vmem [resolvable:$true] %s1389
          %1392 = dma.hbm_to_vmem [thread:$0]  %s87, 16, %s1390, [#allocation27]
        $region180: #{small_forward.1} parent=11 // pred_fallthru
          _
        // Predicated region
        $region181: #{small_forward.1} parent=11 // pred_check
          %p1393 = pneg %p1065
        $region182: #{small_forward.1} parent=11 // pred_check_branch
          %1395 = sbr.rel (%p1393) target = $region184
        $region183: #{small_forward.1} parent=11 // pred_region
          _
        $region184: #{small_forward.1} parent=11 // pred_fallthru
          _
        // Predicated region
        $region185: #{small_forward.1} parent=11 // pred_check
          %p1396 = pneg %p1086
        $region186: #{small_forward.1} parent=11 // pred_check_branch
          %1398 = sbr.rel (%p1396) target = $region188
        $region187: #{small_forward.1} parent=11 // pred_region
          _
        $region188: #{small_forward.1} parent=11 // pred_fallthru
          _
      $region12: #{small_forward.1} parent=5 // pred_fallthru
        _
      %p1399 = scmp.lt.s32.totalorder %s110, 2
      // Predicated region
      $region189: #{small_forward.1} parent=5 // pred_check
        %p1400 = pneg %p1399
      $region190: #{small_forward.1} parent=5 // pred_check_branch
        %1402 = sbr.rel (%p1400) target = $region192
      $region191: #{small_forward.1} parent=5 // pred_region
        // Predicated region
        $region193: #{small_forward.1} parent=191 // pred_check
          %p1403 = pneg %p130
        $region194: #{small_forward.1} parent=191 // pred_check_branch
          %1405 = sbr.rel (%p1403) target = $region196
        $region195: #{small_forward.1} parent=191 // pred_region
          %p1406 = scmp.lt.s32.totalorder %s110, 1
          %s1407 = scalar_select %p1406, %s110, 1
          %s1408 = smul.addr %s1407, 4
          %s1409 = smul.addr %s1408, 8
          %s1410 = scalar_lea.vmem %s1, %s1409
        $region196: #{small_forward.1} parent=191 // pred_fallthru
          _
        // Predicated region
        $region197: #{small_forward.1} parent=191 // pred_check
          %p1411 = pneg %p156
        $region198: #{small_forward.1} parent=191 // pred_check_branch
          %1413 = sbr.rel (%p1411) target = $region200
        $region199: #{small_forward.1} parent=191 // pred_region
          %p1414 = scmp.lt.s32.totalorder %s110, 1
          %s1415 = scalar_select %p1414, %s110, 1
          %s1416 = smul.addr %s1415, 6
          %s1417 = smul.addr %s1416, 8
          %s1418 = scalar_lea.vmem %s3, %s1417
        $region200: #{small_forward.1} parent=191 // pred_fallthru
          _
      $region192: #{small_forward.1} parent=5 // pred_fallthru
        _
      %p1419 = scmp.le.s32.totalorder 1, %s110
      %p1420 = scmp.lt.s32.totalorder %s110, 3
      %p1421 = pnand %p1419, %p1420
      %p1422 = pneg %p1421
      // Predicated region
      $region201: #{small_forward.1} parent=5 // pred_check
        _
      $region202: #{small_forward.1} parent=5 // pred_check_branch
        %1424 = sbr.rel (%p1421) target = $region204
      $region203: #{small_forward.1} parent=5 // pred_region
        %s1425 = ssub.s32 %s110, 1
        // Predicated region
        $region205: #{small_forward.1} parent=203 // pred_check
          %p1426 = pneg %p288
        $region206: #{small_forward.1} parent=203 // pred_check_branch
          %1428 = sbr.rel (%p1426) target = $region208
        $region207: #{small_forward.1} parent=203 // pred_region
          %1429 = dma.done [#allocation4], 128
        $region208: #{small_forward.1} parent=203 // pred_fallthru
          _
        // Predicated region
        $region209: #{small_forward.1} parent=203 // pred_check
          %p1430 = pneg %p351
        $region210: #{small_forward.1} parent=203 // pred_check_branch
          %1432 = sbr.rel (%p1430) target = $region212
        $region211: #{small_forward.1} parent=203 // pred_region
          %1433 = dma.done [#allocation6], 128
        $region212: #{small_forward.1} parent=203 // pred_fallthru
          _
        // Predicated region
        $region213: #{small_forward.1} parent=203 // pred_check
          %p1434 = pneg %p372
        $region214: #{small_forward.1} parent=203 // pred_check_branch
          %1436 = sbr.rel (%p1434) target = $region216
        $region215: #{small_forward.1} parent=203 // pred_region
          %1437 = dma.done [#allocation6], 32
        $region216: #{small_forward.1} parent=203 // pred_fallthru
          _
        // Predicated region
        $region217: #{small_forward.1} parent=203 // pred_check
          %p1438 = pneg %p393
        $region218: #{small_forward.1} parent=203 // pred_check_branch
          %1440 = sbr.rel (%p1438) target = $region220
        $region219: #{small_forward.1} parent=203 // pred_region
          %1441 = dma.done [#allocation9], 16
        $region220: #{small_forward.1} parent=203 // pred_fallthru
          _
        // Predicated region
        $region221: #{small_forward.1} parent=203 // pred_check
          %p1442 = pneg %p435
        $region222: #{small_forward.1} parent=203 // pred_check_branch
          %1444 = sbr.rel (%p1442) target = $region224
        $region223: #{small_forward.1} parent=203 // pred_region
          %1445 = dma.done [#allocation9], 16
        $region224: #{small_forward.1} parent=203 // pred_fallthru
          _
        // Predicated region
        $region225: #{small_forward.1} parent=203 // pred_check
          %p1446 = pneg %p498
        $region226: #{small_forward.1} parent=203 // pred_check_branch
          %1448 = sbr.rel (%p1446) target = $region228
        $region227: #{small_forward.1} parent=203 // pred_region
          %1449 = dma.done [#allocation12], 16
        $region228: #{small_forward.1} parent=203 // pred_fallthru
          _
        // Predicated region
        $region229: #{small_forward.1} parent=203 // pred_check
          %p1450 = pneg %p561
        $region230: #{small_forward.1} parent=203 // pred_check_branch
          %1452 = sbr.rel (%p1450) target = $region232
        $region231: #{small_forward.1} parent=203 // pred_region
          %1453 = dma.done [#allocation12], 16
        $region232: #{small_forward.1} parent=203 // pred_fallthru
          _
        // Predicated region
        $region233: #{small_forward.1} parent=203 // pred_check
          %p1454 = pneg %p624
        $region234: #{small_forward.1} parent=203 // pred_check_branch
          %1456 = sbr.rel (%p1454) target = $region236
        $region235: #{small_forward.1} parent=203 // pred_region
          %1457 = dma.done [#allocation15], 16
        $region236: #{small_forward.1} parent=203 // pred_fallthru
          _
        // Predicated region
        $region237: #{small_forward.1} parent=203 // pred_check
          %p1458 = pneg %p687
        $region238: #{small_forward.1} parent=203 // pred_check_branch
          %1460 = sbr.rel (%p1458) target = $region240
        $region239: #{small_forward.1} parent=203 // pred_region
          %1461 = dma.done [#allocation15], 16
        $region240: #{small_forward.1} parent=203 // pred_fallthru
          _
        // Predicated region
        $region241: #{small_forward.1} parent=203 // pred_check
          %p1462 = pneg %p708
        $region242: #{small_forward.1} parent=203 // pred_check_branch
          %1464 = sbr.rel (%p1462) target = $region244
        $region243: #{small_forward.1} parent=203 // pred_region
          %1465 = dma.done [#allocation18], 256
        $region244: #{small_forward.1} parent=203 // pred_fallthru
          _
        // Predicated region
        $region245: #{small_forward.1} parent=203 // pred_check
          %p1466 = pneg %p750
        $region246: #{small_forward.1} parent=203 // pred_check_branch
          %1468 = sbr.rel (%p1466) target = $region248
        $region247: #{small_forward.1} parent=203 // pred_region
          %1469 = dma.done [#allocation18], 16
        $region248: #{small_forward.1} parent=203 // pred_fallthru
          _
        // Predicated region
        $region249: #{small_forward.1} parent=203 // pred_check
          %p1470 = pneg %p771
        $region250: #{small_forward.1} parent=203 // pred_check_branch
          %1472 = sbr.rel (%p1470) target = $region252
        $region251: #{small_forward.1} parent=203 // pred_region
          %1473 = dma.done [#allocation21], 256
        $region252: #{small_forward.1} parent=203 // pred_fallthru
          _
        // Predicated region
        $region253: #{small_forward.1} parent=203 // pred_check
          %p1474 = pneg %p813
        $region254: #{small_forward.1} parent=203 // pred_check_branch
          %1476 = sbr.rel (%p1474) target = $region256
        $region255: #{small_forward.1} parent=203 // pred_region
          %1477 = dma.done [#allocation21], 16
        $region256: #{small_forward.1} parent=203 // pred_fallthru
          _
        // Predicated region
        $region257: #{small_forward.1} parent=203 // pred_check
          %p1478 = pneg %p876
        $region258: #{small_forward.1} parent=203 // pred_check_branch
          %1480 = sbr.rel (%p1478) target = $region260
        $region259: #{small_forward.1} parent=203 // pred_region
          %1481 = dma.done [#allocation24], 16
        $region260: #{small_forward.1} parent=203 // pred_fallthru
          _
        // Predicated region
        $region261: #{small_forward.1} parent=203 // pred_check
          %p1482 = pneg %p939
        $region262: #{small_forward.1} parent=203 // pred_check_branch
          %1484 = sbr.rel (%p1482) target = $region264
        $region263: #{small_forward.1} parent=203 // pred_region
          %1485 = dma.done [#allocation24], 16
        $region264: #{small_forward.1} parent=203 // pred_fallthru
          _
        // Predicated region
        $region265: #{small_forward.1} parent=203 // pred_check
          %p1486 = pneg %p1002
        $region266: #{small_forward.1} parent=203 // pred_check_branch
          %1488 = sbr.rel (%p1486) target = $region268
        $region267: #{small_forward.1} parent=203 // pred_region
          %1489 = dma.done [#allocation27], 16
        $region268: #{small_forward.1} parent=203 // pred_fallthru
          _
        // Predicated region
        $region269: #{small_forward.1} parent=203 // pred_check
          %p1490 = pneg %p1044
        $region270: #{small_forward.1} parent=203 // pred_check_branch
          %1492 = sbr.rel (%p1490) target = $region272
        $region271: #{small_forward.1} parent=203 // pred_region
          %1493 = dma.done [#allocation27], 16
        $region272: #{small_forward.1} parent=203 // pred_fallthru
          _
        %p1494 = scmp.lt.s32.totalorder %s115, 1
        %s1495 = scalar_select %p1494, %s115, 1
        %s1496 = smul.addr %s1495, 4
        %s1497 = smul.addr %s1496, 8
        %s1498 = scalar_lea.vmem %s1, %s1497
        %p1499 = pneg %p136
        %p1500 = pneg %p133
        %p1501 = scmp.lt.s32.totalorder %s115, 1
        %s1502 = scalar_select %p1501, %s115, 1
        %s1503 = smul.addr %s1502, 6
        %s1504 = smul.addr %s1503, 8
        %s1505 = scalar_lea.vmem %s3, %s1504
        %p1506 = pneg %p162
        %p1507 = pneg %p159
        %p1508 = pneg %p183
        %p1509 = pneg %p180
        %p1510 = pneg %p204
        %p1511 = pneg %p201
        %p1512 = pneg %p225
        %p1513 = pneg %p222
        %p1514 = pneg %p246
        %p1515 = pneg %p243
        %p1516 = pneg %p267
        %p1517 = pneg %p264
        %p1518 = pneg %p288
        %p1519 = pneg %p285
        %p1520 = pneg %p309
        %p1521 = pneg %p306
        %p1522 = pneg %p330
        %p1523 = pneg %p327
        %p1524 = pneg %p351
        %p1525 = pneg %p348
        %p1526 = pneg %p372
        %p1527 = pneg %p369
        %p1528 = pneg %p393
        %p1529 = pneg %p390
        %p1530 = pneg %p414
        %p1531 = pneg %p411
        %p1532 = pneg %p435
        %p1533 = pneg %p432
        %p1534 = pneg %p456
        %p1535 = pneg %p453
        %p1536 = pneg %p477
        %p1537 = pneg %p474
        %p1538 = pneg %p498
        %p1539 = pneg %p495
        %p1540 = pneg %p519
        %p1541 = pneg %p516
        %p1542 = pneg %p540
        %p1543 = pneg %p537
        %p1544 = pneg %p561
        %p1545 = pneg %p558
        %p1546 = pneg %p582
        %p1547 = pneg %p579
        %p1548 = pneg %p603
        %p1549 = pneg %p600
        %p1550 = pneg %p624
        %p1551 = pneg %p621
        %p1552 = pneg %p645
        %p1553 = pneg %p642
        %p1554 = pneg %p666
        %p1555 = pneg %p663
        %p1556 = pneg %p687
        %p1557 = pneg %p684
        %p1558 = pneg %p708
        %p1559 = pneg %p705
        %p1560 = pneg %p729
        %p1561 = pneg %p726
        %p1562 = pneg %p750
        %p1563 = pneg %p747
        %p1564 = pneg %p771
        %p1565 = pneg %p768
        %p1566 = pneg %p792
        %p1567 = pneg %p789
        %p1568 = pneg %p813
        %p1569 = pneg %p810
        %p1570 = pneg %p834
        %p1571 = pneg %p831
        %p1572 = pneg %p855
        %p1573 = pneg %p852
        %p1574 = pneg %p876
        %p1575 = pneg %p873
        %p1576 = pneg %p897
        %p1577 = pneg %p894
        %p1578 = pneg %p918
        %p1579 = pneg %p915
        %p1580 = pneg %p939
        %p1581 = pneg %p936
        %p1582 = pneg %p960
        %p1583 = pneg %p957
        %p1584 = pneg %p981
        %p1585 = pneg %p978
        %p1586 = pneg %p1002
        %p1587 = pneg %p999
        %p1588 = pneg %p1023
        %p1589 = pneg %p1020
        %p1590 = pneg %p1044
        %p1591 = pneg %p1041
        %p1592 = pneg %p1065
        %p1593 = pneg %p1062
        %p1594 = pneg %p1086
        %p1595 = pneg %p1083
        %p1596 = pneg %p1112
        %p1597 = pneg %p1109
        %p1598 = scmp.lt.s32.totalorder %s115, 1
        %s1599 = scalar_select %p1598, %s115, 1
        %s1600 = scalar_lea.vmem %s93, %s1599
        %p1601 = scmp.lt.s32.totalorder %s115, 1
        %s1602 = scalar_select %p1601, %s115, 1
        %s1603 = smul.addr %s1602, 4
        %s1604 = smul.addr %s1603, 8
        %s1605 = scalar_lea.vmem %s1, %s1604
        %p1606 = scmp.lt.s32.totalorder %s115, 1
        %s1607 = scalar_select %p1606, %s115, 1
        %s1608 = smul.addr %s1607, 6
        %s1609 = smul.addr %s1608, 8
        %s1610 = scalar_lea.vmem %s3, %s1609
        %p1611 = scmp.lt.s32.totalorder %s115, 1
        %s1612 = scalar_select %p1611, %s115, 1
        %s1613 = scalar_lea.vmem %s93, %s1612
        %v1614 = vld [vmem:[%s1605] sm:$0xff]
        %v1615 = vld [vmem:[%s1605 + $0x8] sm:$0xff]
        %v1616 = vld [vmem:[%s1605 + $0x10] sm:$0xff]
        %v1617 = vld [vmem:[%s1605 + $0x18] sm:$0xff]
        %vm1618 = vcmask 15360
        %v1619 = vsel %vm1618, %v1614, 0.0
        %v1620 = vsel %vm1618, %v1615, 0.0
        %v1621 = vadd.f32 %v1619, %v1620
        %v1622 = vsel %vm1618, %v1616, 0.0
        %v1623 = vadd.f32 %v1621, %v1622
        %v1624 = vsel %vm1618, %v1617, 0.0
        %v1625 = vadd.f32 %v1623, %v1624
        %v1626 = vrot.slane %v1625, 4
        %v1627 = vadd.f32 %v1625, %v1626
        %v1628 = vrot.slane %v1627, 2
        %v1629 = vadd.f32 %v1627, %v1628
        %v1630 = vrot.slane %v1629, 1
        %v1631 = vadd.f32 %v1629, %v1630
        %v1632 = vrcp.pop 32.0
        %v1633 = vmul.f32 %v1631, %v1632
        %v1634 = vsub.f32 %v1614, %v1633
        %v1635 = vsub.f32 %v1615, %v1633
        %v1636 = vsub.f32 %v1616, %v1633
        %v1637 = vsub.f32 %v1617, %v1633
        %v1638 = vmul.f32 %v1634, %v1634
        %v1639 = vmul.f32 %v1635, %v1635
        %v1640 = vmul.f32 %v1636, %v1636
        %v1641 = vmul.f32 %v1637, %v1637
        %v1642 = vsel %vm1618, %v1638, 0.0
        %v1643 = vsel %vm1618, %v1639, 0.0
        %v1644 = vadd.f32 %v1642, %v1643
        %v1645 = vsel %vm1618, %v1640, 0.0
        %v1646 = vadd.f32 %v1644, %v1645
        %v1647 = vsel %vm1618, %v1641, 0.0
        %v1648 = vadd.f32 %v1646, %v1647
        %v1649 = vrot.slane %v1648, 4
        %v1650 = vadd.f32 %v1648, %v1649
        %v1651 = vrot.slane %v1650, 2
        %v1652 = vadd.f32 %v1650, %v1651
        %v1653 = vrot.slane %v1652, 1
        %v1654 = vadd.f32 %v1652, %v1653
        %v1655 = vmul.f32 %v1654, %v1632
        %v1656 = vadd.f32 %v1655, 1e-05
        %v1657 = vrsqrt.pop %v1656
        %v1658 = vmul.f32 %v1634, %v1657
        %v1659 = vmul.f32 %v1635, %v1657
        %v1660 = vmul.f32 %v1636, %v1657
        %v1661 = vmul.f32 %v1637, %v1657
        %v1662 = vld [vmem:[%s1610] sm:$0xff]
        %v1663 = vld [vmem:[%s1610 + $0x8] sm:$0xff]
        %v1664 = vld [vmem:[%s1610 + $0x10] sm:$0xff]
        %v1665 = vld [vmem:[%s1610 + $0x18] sm:$0xff]
        %v1666 = vld [vmem:[%s1610 + $0x20] sm:$0xff]
        %v1667 = vld [vmem:[%s1610 + $0x28] sm:$0xff]
        %vm1668 = vcmask 23552
        %v1669 = vsel %vm1668, %v1662, 0.0
        %v1670 = vsel %vm1668, %v1663, 0.0
        %v1671 = vadd.f32 %v1669, %v1670
        %v1672 = vsel %vm1668, %v1664, 0.0
        %v1673 = vadd.f32 %v1671, %v1672
        %v1674 = vsel %vm1668, %v1665, 0.0
        %v1675 = vadd.f32 %v1673, %v1674
        %v1676 = vsel %vm1668, %v1666, 0.0
        %v1677 = vadd.f32 %v1675, %v1676
        %v1678 = vsel %vm1668, %v1667, 0.0
        %v1679 = vadd.f32 %v1677, %v1678
        %v1680 = vrot.slane %v1679, 4
        %v1681 = vadd.f32 %v1679, %v1680
        %v1682 = vrot.slane %v1681, 2
        %v1683 = vadd.f32 %v1681, %v1682
        %v1684 = vrot.slane %v1683, 1
        %v1685 = vadd.f32 %v1683, %v1684
        %v1686 = vrcp.pop 48.0
        %v1687 = vmul.f32 %v1685, %v1686
        %v1688 = vsub.f32 %v1662, %v1687
        %v1689 = vsub.f32 %v1663, %v1687
        %v1690 = vsub.f32 %v1664, %v1687
        %v1691 = vsub.f32 %v1665, %v1687
        %v1692 = vsub.f32 %v1666, %v1687
        %v1693 = vsub.f32 %v1667, %v1687
        %v1694 = vmul.f32 %v1688, %v1688
        %v1695 = vmul.f32 %v1689, %v1689
        %v1696 = vmul.f32 %v1690, %v1690
        %v1697 = vmul.f32 %v1691, %v1691
        %v1698 = vmul.f32 %v1692, %v1692
        %v1699 = vmul.f32 %v1693, %v1693
        %v1700 = vsel %vm1668, %v1694, 0.0
        %v1701 = vsel %vm1668, %v1695, 0.0
        %v1702 = vadd.f32 %v1700, %v1701
        %v1703 = vsel %vm1668, %v1696, 0.0
        %v1704 = vadd.f32 %v1702, %v1703
        %v1705 = vsel %vm1668, %v1697, 0.0
        %v1706 = vadd.f32 %v1704, %v1705
        %v1707 = vsel %vm1668, %v1698, 0.0
        %v1708 = vadd.f32 %v1706, %v1707
        %v1709 = vsel %vm1668, %v1699, 0.0
        %v1710 = vadd.f32 %v1708, %v1709
        %v1711 = vrot.slane %v1710, 4
        %v1712 = vadd.f32 %v1710, %v1711
        %v1713 = vrot.slane %v1712, 2
        %v1714 = vadd.f32 %v1712, %v1713
        %v1715 = vrot.slane %v1714, 1
        %v1716 = vadd.f32 %v1714, %v1715
        %v1717 = vmul.f32 %v1716, %v1686
        %v1718 = vadd.f32 %v1717, 1e-05
        %v1719 = vrsqrt.pop %v1718
        %v1720 = vmul.f32 %v1688, %v1719
        %v1721 = vmul.f32 %v1689, %v1719
        %v1722 = vmul.f32 %v1690, %v1719
        %v1723 = vmul.f32 %v1691, %v1719
        %v1724 = vmul.f32 %v1692, %v1719
        %v1725 = vmul.f32 %v1693, %v1719
        %v1726 = vld [vmem:[#allocation7] sm:$0x3]
        %1728 = vset.pattern.permute.xlu0 0
        %1729 = vperm.xlu0 %1728, %v1658
        %v1730 = vpop.permute.xlu0 %1729
        %1733 = vset.pattern.permute.xlu0 0
        %1734 = vperm.xlu0 %1733, %v1659
        %v1735 = vpop.permute.xlu0 %1734
        %1738 = vset.pattern.permute.xlu0 0
        %1739 = vperm.xlu0 %1738, %v1660
        %v1740 = vpop.permute.xlu0 %1739
        %1743 = vset.pattern.permute.xlu0 0
        %1744 = vperm.xlu0 %1743, %v1661
        %v1745 = vpop.permute.xlu0 %1744
        %v1747 = vlaneseq
        %v1748 = vshrl.u32 %v1747, 7
        %v1749 = vsub.s32 0, %v1748
        %v1750 = vrot.slane %v1726, %v1749
        %v1751 = vmul.f32 %v1730, %v1750
        %v1752 = vmul.f32 %v1735, %v1750
        %v1753 = vmul.f32 %v1740, %v1750
        %v1754 = vmul.f32 %v1745, %v1750
        %1755 = vset.pattern.permute.xlu0 1
        %1756 = vperm.xlu0 %1755, %v1658
        %v1757 = vpop.permute.xlu0 %1756
        %1759 = vset.pattern.permute.xlu0 1
        %1760 = vperm.xlu0 %1759, %v1659
        %v1761 = vpop.permute.xlu0 %1760
        %1763 = vset.pattern.permute.xlu0 1
        %1764 = vperm.xlu0 %1763, %v1660
        %v1765 = vpop.permute.xlu0 %1764
        %1767 = vset.pattern.permute.xlu0 1
        %1768 = vperm.xlu0 %1767, %v1661
        %v1769 = vpop.permute.xlu0 %1768
        %v1771 = vlaneseq
        %v1772 = vshrl.u32 %v1771, 7
        %v1773 = vsub.s32 1, %v1772
        %v1774 = vrot.slane %v1726, %v1773
        %v1775 = vmul.f32 %v1757, %v1774
        %v1776 = vmul.f32 %v1761, %v1774
        %v1777 = vmul.f32 %v1765, %v1774
        %v1778 = vmul.f32 %v1769, %v1774
        %v1779 = vadd.f32 %v1751, %v1775
        %v1780 = vadd.f32 %v1752, %v1776
        %v1781 = vadd.f32 %v1753, %v1777
        %v1782 = vadd.f32 %v1754, %v1778
        %v1783 = vld [vmem:[%s5] sm:$0xff]
        %v1784 = vld [vmem:[%s5 + $0x8] sm:$0xff]
        %v1785 = vld [vmem:[%s5 + $0x10] sm:$0xff]
        %v1786 = vld [vmem:[%s5 + $0x18] sm:$0xff]
        %v1787 = vld [vmem:[%s5 + $0x20] sm:$0xff]
        %v1788 = vld [vmem:[%s5 + $0x28] sm:$0xff]
        %v1789 = vld [vmem:[#allocation8] sm:$0x1]
        %v1791 = vlaneseq
        %v1792 = vshrl.u32 %v1791, 7
        %v1793 = vsub.s32 0, %v1792
        %v1794 = vrot.slane %v1789, %v1793
        %vm1796 = vcmask 261120
        %v1798 = vsel %vm1796, %v1783, 0
        %v1801 = vsel %vm1796, %v1784, 0
        %v1804 = vsel %vm1796, %v1785, 0
        %v1807 = vsel %vm1796, %v1786, 0
        %v1810 = vsel %vm1796, %v1787, 0
        %v1813 = vsel %vm1796, %v1788, 0
        %1815 = vmatprep.subr.mxu0 0.0
        %1816 = vmatpush1.msra.mxu0 %v1779
        %1817 = vmatprep.subr.mxu0 0.0
        %1818 = vmatpush1.msra.mxu0 %v1780
        %1819 = vmatprep.subr.mxu0 0.0
        %1820 = vmatpush1.msra.mxu0 %v1781
        %1821 = vmatprep.subr.mxu0 0.0
        %1822 = vmatpush1.msra.mxu0 %v1782
        %1823 = vmatprep.subr.mxu0 0.0
        %1824 = vmatpush1.msra.mxu0 0.0
        %1825 = vmatprep.subr.mxu0 0.0
        %1826 = vmatpush1.msra.mxu0 0.0
        %1827 = vmatprep.subr.mxu0 0.0
        %1828 = vmatpush1.msra.mxu0 0.0
        %1829 = vmatprep.subr.mxu0 0.0
        %1830 = vmatpush1.msra.mxu0 0.0
        %1831 = vmatprep.subr.mxu0 0.0
        %1832 = vmatpush1.msra.mxu0 0.0
        %1833 = vmatprep.subr.mxu0 0.0
        %1834 = vmatpush1.msra.mxu0 0.0
        %1835 = vmatprep.subr.mxu0 0.0
        %1836 = vmatpush1.msra.mxu0 0.0
        %1837 = vmatprep.subr.mxu0 0.0
        %1838 = vmatpush1.msra.mxu0 0.0
        %1839 = vmatprep.subr.mxu0 0.0
        %1840 = vmatpush1.msra.mxu0 0.0
        %1841 = vmatprep.subr.mxu0 0.0
        %1842 = vmatpush1.msra.mxu0 0.0
        %1843 = vmatprep.subr.mxu0 0.0
        %1844 = vmatpush1.msra.mxu0 0.0
        %1845 = vmatprep.subr.mxu0 0.0
        %1846 = vmatpush1.msra.mxu0 0.0
        %1847 = vmatprep.subr.mxu0 0.0
        %1848 = vmatpush1.msra.mxu0 0.0
        %1849 = vmatprep.subr.mxu0 0.0
        %1850 = vmatpush1.msra.mxu0 0.0
        %1851 = vmatprep.subr.mxu0 0.0
        %1852 = vmatpush1.msra.mxu0 0.0
        %1853 = vmatprep.subr.mxu0 0.0
        %1854 = vmatpush1.msra.mxu0 0.0
        %1855 = vmatprep.subr.mxu0 0.0
        %1856 = vmatpush1.msra.mxu0 0.0
        %1857 = vmatprep.subr.mxu0 0.0
        %1858 = vmatpush1.msra.mxu0 0.0
        %1859 = vmatprep.subr.mxu0 0.0
        %1860 = vmatpush1.msra.mxu0 0.0
        %1861 = vmatprep.subr.mxu0 0.0
        %1862 = vmatpush1.msra.mxu0 0.0
        %1863 = vmatprep.subr.mxu0 0.0
        %1864 = vmatpush1.msra.mxu0 0.0
        %1865 = vmatprep.subr.mxu0 0.0
        %1866 = vmatpush1.msra.mxu0 0.0
        %1867 = vmatprep.subr.mxu0 0.0
        %1868 = vmatpush1.msra.mxu0 0.0
        %1869 = vmatprep.subr.mxu0 0.0
        %1870 = vmatpush1.msra.mxu0 0.0
        %1871 = vmatprep.subr.mxu0 0.0
        %1872 = vmatpush1.msra.mxu0 0.0
        %1873 = vmatprep.subr.mxu0 0.0
        %1874 = vmatpush1.msra.mxu0 0.0
        %1875 = vmatprep.subr.mxu0 0.0
        %1876 = vmatpush1.msra.mxu0 0.0
        %1877 = vmatprep.subr.mxu0 0.0
        %1878 = vmatpush1.msra.mxu0 0.0
        %1879 = vmatprep.mubr.f32.mxu0 0.0
        %1880 = vmatmul.mubr.f32.gmra.mrb[0].mxu0 %v1798
        %v1881 = vpop.f32.mrb[0].mxu0
        %v1882 = vadd.f32 %v1794, %v1881
        %v1883 = vpop.f32.mrb[0].mxu0
        %1884 = vmatprep.mubr.f32.mxu0 0.0
        %1885 = vmatmul.mubr.f32.gmra.mrb[0].mxu0 %v1801
        %v1886 = vpop.f32.mrb[0].mxu0
        %v1887 = vadd.f32 %v1794, %v1886
        %v1888 = vpop.f32.mrb[0].mxu0
        %1889 = vmatprep.mubr.f32.mxu0 0.0
        %1890 = vmatmul.mubr.f32.gmra.mrb[0].mxu0 %v1804
        %v1891 = vpop.f32.mrb[0].mxu0
        %v1892 = vadd.f32 %v1794, %v1891
        %v1893 = vpop.f32.mrb[0].mxu0
        %1894 = vmatprep.mubr.f32.mxu0 0.0
        %1895 = vmatmul.mubr.f32.gmra.mrb[0].mxu0 %v1807
        %v1896 = vpop.f32.mrb[0].mxu0
        %v1897 = vadd.f32 %v1794, %v1896
        %v1898 = vpop.f32.mrb[0].mxu0
        %1899 = vmatprep.mubr.f32.mxu0 0.0
        %1900 = vmatmul.mubr.f32.gmra.mrb[0].mxu0 %v1810
        %v1901 = vpop.f32.mrb[0].mxu0
        %v1902 = vadd.f32 %v1794, %v1901
        %v1903 = vpop.f32.mrb[0].mxu0
        %1904 = vmatprep.mubr.f32.mxu0 0.0
        %1905 = vmatmul.mubr.f32.gmra.mrb[0].mxu0 %v1813
        %v1906 = vpop.f32.mrb[0].mxu0
        %v1907 = vadd.f32 %v1794, %v1906
        %v1908 = vpop.f32.mrb[0].mxu0
        %1909 = vdwg.mxu0
        %v1910 = vmax.f32 %v1882, 0.0
        %v1911 = vmax.f32 %v1887, 0.0
        %v1912 = vmax.f32 %v1892, 0.0
        %v1913 = vmax.f32 %v1897, 0.0
        %v1914 = vmax.f32 %v1902, 0.0
        %v1915 = vmax.f32 %v1907, 0.0
        %1922 = vrot.lane.b32.xlu0 %v1720, 13
        %v1923 = vpop.permute.xlu0 %1922
        %1924 = vrot.lane.b32.xlu0 %v1721, 13
        %v1925 = vpop.permute.xlu0 %1924
        %1926 = vrot.lane.b32.xlu0 %v1722, 13
        %v1927 = vpop.permute.xlu0 %1926
        %1928 = vrot.lane.b32.xlu0 %v1723, 13
        %v1929 = vpop.permute.xlu0 %1928
        %1930 = vrot.lane.b32.xlu0 %v1724, 13
        %v1931 = vpop.permute.xlu0 %1930
        %1932 = vrot.lane.b32.xlu0 %v1725, 13
        %v1933 = vpop.permute.xlu0 %1932
        %vm1940 = vcmask 105472
        %v1941 = vsel %vm1940, %v1910, %v1923
        %v1942 = vsel %vm1940, %v1911, %v1925
        %v1943 = vsel %vm1940, %v1912, %v1927
        %v1944 = vsel %vm1940, %v1913, %v1929
        %v1945 = vsel %vm1940, %v1914, %v1931
        %v1946 = vsel %vm1940, %v1915, %v1933
        %v1947 = vld [vmem:[%s27] sm:$0xff]
        %v1948 = vld [vmem:[%s27 + $0x8] sm:$0xff]
        %vm1949 = vcmask 130048
        %v1951 = vsel %vm1949, %v1941, 0
        %v1954 = vsel %vm1949, %v1942, 0
        %v1957 = vsel %vm1949, %v1943, 0
        %v1960 = vsel %vm1949, %v1944, 0
        %v1963 = vsel %vm1949, %v1945, 0
        %v1966 = vsel %vm1949, %v1946, 0
        %1968 = vmatprep.subr.mxu0 0.0
        %1969 = vmatpush1.msra.mxu0 %v1947
        %1970 = vmatprep.subr.mxu0 0.0
        %1971 = vmatpush1.msra.mxu0 %v1948
        %1972 = vmatprep.subr.mxu0 0.0
        %1973 = vmatpush1.msra.mxu0 0.0
        %1974 = vmatprep.subr.mxu0 0.0
        %1975 = vmatpush1.msra.mxu0 0.0
        %1976 = vmatprep.subr.mxu0 0.0
        %1977 = vmatpush1.msra.mxu0 0.0
        %1978 = vmatprep.subr.mxu0 0.0
        %1979 = vmatpush1.msra.mxu0 0.0
        %1980 = vmatprep.subr.mxu0 0.0
        %1981 = vmatpush1.msra.mxu0 0.0
        %1982 = vmatprep.subr.mxu0 0.0
        %1983 = vmatpush1.msra.mxu0 0.0
        %1984 = vmatprep.subr.mxu0 0.0
        %1985 = vmatpush1.msra.mxu0 0.0
        %1986 = vmatprep.subr.mxu0 0.0
        %1987 = vmatpush1.msra.mxu0 0.0
        %1988 = vmatprep.subr.mxu0 0.0
        %1989 = vmatpush1.msra.mxu0 0.0
        %1990 = vmatprep.subr.mxu0 0.0
        %1991 = vmatpush1.msra.mxu0 0.0
        %1992 = vmatprep.subr.mxu0 0.0
        %1993 = vmatpush1.msra.mxu0 0.0
        %1994 = vmatprep.subr.mxu0 0.0
        %1995 = vmatpush1.msra.mxu0 0.0
        %1996 = vmatprep.subr.mxu0 0.0
        %1997 = vmatpush1.msra.mxu0 0.0
        %1998 = vmatprep.subr.mxu0 0.0
        %1999 = vmatpush1.msra.mxu0 0.0
        %2000 = vmatprep.subr.mxu0 0.0
        %2001 = vmatpush1.msra.mxu0 0.0
        %2002 = vmatprep.subr.mxu0 0.0
        %2003 = vmatpush1.msra.mxu0 0.0
        %2004 = vmatprep.subr.mxu0 0.0
        %2005 = vmatpush1.msra.mxu0 0.0
        %2006 = vmatprep.subr.mxu0 0.0
        %2007 = vmatpush1.msra.mxu0 0.0
        %2008 = vmatprep.subr.mxu0 0.0
        %2009 = vmatpush1.msra.mxu0 0.0
        %2010 = vmatprep.subr.mxu0 0.0
        %2011 = vmatpush1.msra.mxu0 0.0
        %2012 = vmatprep.subr.mxu0 0.0
        %2013 = vmatpush1.msra.mxu0 0.0
        %2014 = vmatprep.subr.mxu0 0.0
        %2015 = vmatpush1.msra.mxu0 0.0
        %2016 = vmatprep.subr.mxu0 0.0
        %2017 = vmatpush1.msra.mxu0 0.0
        %2018 = vmatprep.subr.mxu0 0.0
        %2019 = vmatpush1.msra.mxu0 0.0
        %2020 = vmatprep.subr.mxu0 0.0
        %2021 = vmatpush1.msra.mxu0 0.0
        %2022 = vmatprep.subr.mxu0 0.0
        %2023 = vmatpush1.msra.mxu0 0.0
        %2024 = vmatprep.subr.mxu0 0.0
        %2025 = vmatpush1.msra.mxu0 0.0
        %2026 = vmatprep.subr.mxu0 0.0
        %2027 = vmatpush1.msra.mxu0 0.0
        %2028 = vmatprep.subr.mxu0 0.0
        %2029 = vmatpush1.msra.mxu0 0.0
        %2030 = vmatprep.subr.mxu0 0.0
        %2031 = vmatpush1.msra.mxu0 0.0
        %2032 = vmatprep.mubr.f32.mxu0 0.0
        %2033 = vmatmul.mubr.f32.gmra.mrb[0].mxu0 %v1951
        %v2034 = vpop.f32.mrb[0].mxu0
        %v2035 = vadd.f32 0.0, %v2034
        %v2036 = vpop.f32.mrb[0].mxu0
        %2037 = vmatprep.mubr.f32.mxu0 0.0
        %2038 = vmatmul.mubr.f32.gmra.mrb[0].mxu0 %v1954
        %v2039 = vpop.f32.mrb[0].mxu0
        %v2040 = vadd.f32 0.0, %v2039
        %v2041 = vpop.f32.mrb[0].mxu0
        %2042 = vmatprep.mubr.f32.mxu0 0.0
        %2043 = vmatmul.mubr.f32.gmra.mrb[0].mxu0 %v1957
        %v2044 = vpop.f32.mrb[0].mxu0
        %v2045 = vadd.f32 0.0, %v2044
        %v2046 = vpop.f32.mrb[0].mxu0
        %2047 = vmatprep.mubr.f32.mxu0 0.0
        %2048 = vmatmul.mubr.f32.gmra.mrb[0].mxu0 %v1960
        %v2049 = vpop.f32.mrb[0].mxu0
        %v2050 = vadd.f32 0.0, %v2049
        %v2051 = vpop.f32.mrb[0].mxu0
        %2052 = vmatprep.mubr.f32.mxu0 0.0
        %2053 = vmatmul.mubr.f32.gmra.mrb[0].mxu0 %v1963
        %v2054 = vpop.f32.mrb[0].mxu0
        %v2055 = vadd.f32 0.0, %v2054
        %v2056 = vpop.f32.mrb[0].mxu0
        %2057 = vmatprep.mubr.f32.mxu0 0.0
        %2058 = vmatmul.mubr.f32.gmra.mrb[0].mxu0 %v1966
        %v2059 = vpop.f32.mrb[0].mxu0
        %v2060 = vadd.f32 0.0, %v2059
        %v2061 = vpop.f32.mrb[0].mxu0
        %2062 = vdwg.mxu0
        %v2063 = vld [vmem:[%s7] sm:$0xff]
        %v2064 = vld [vmem:[%s7 + $0x8] sm:$0xff]
        %v2065 = vld [vmem:[%s7 + $0x10] sm:$0xff]
        %v2066 = vld [vmem:[%s7 + $0x18] sm:$0xff]
        %v2067 = vld [vmem:[%s7 + $0x20] sm:$0xff]
        %v2068 = vld [vmem:[%s7 + $0x28] sm:$0xff]
        %v2069 = vld [vmem:[%s7 + $0x30] sm:$0xff]
        %v2070 = vld [vmem:[%s7 + $0x38] sm:$0xff]
        %v2071 = vld [vmem:[#allocation10] sm:$0x1]
        %v2073 = vlaneseq
        %v2074 = vshrl.u32 %v2073, 7
        %v2075 = vsub.s32 0, %v2074
        %v2076 = vrot.slane %v2071, %v2075
        %vm2078 = vcmask 392192
        %v2080 = vsel %vm2078, %v2063, 0
        %v2083 = vsel %vm2078, %v2064, 0
        %v2086 = vsel %vm2078, %v2065, 0
        %v2089 = vsel %vm2078, %v2066, 0
        %v2092 = vsel %vm2078, %v2067, 0
        %v2095 = vsel %vm2078, %v2068, 0
        %v2098 = vsel %vm2078, %v2069, 0
        %v2101 = vsel %vm2078, %v2070, 0
        %2103 = vmatprep.subr.mxu0 0.0
        %2104 = vmatpush1.msra.mxu0 %v2035
        %2105 = vmatprep.subr.mxu0 0.0
        %2106 = vmatpush1.msra.mxu0 %v2040
        %2107 = vmatprep.subr.mxu0 0.0
        %2108 = vmatpush1.msra.mxu0 %v2045
        %2109 = vmatprep.subr.mxu0 0.0
        %2110 = vmatpush1.msra.mxu0 %v2050
        %2111 = vmatprep.subr.mxu0 0.0
        %2112 = vmatpush1.msra.mxu0 %v2055
        %2113 = vmatprep.subr.mxu0 0.0
        %2114 = vmatpush1.msra.mxu0 %v2060
        %2115 = vmatprep.subr.mxu0 0.0
        %2116 = vmatpush1.msra.mxu0 0.0
        %2117 = vmatprep.subr.mxu0 0.0
        %2118 = vmatpush1.msra.mxu0 0.0
        %2119 = vmatprep.subr.mxu0 0.0
        %2120 = vmatpush1.msra.mxu0 0.0
        %2121 = vmatprep.subr.mxu0 0.0
        %2122 = vmatpush1.msra.mxu0 0.0
        %2123 = vmatprep.subr.mxu0 0.0
        %2124 = vmatpush1.msra.mxu0 0.0
        %2125 = vmatprep.subr.mxu0 0.0
        %2126 = vmatpush1.msra.mxu0 0.0
        %2127 = vmatprep.subr.mxu0 0.0
        %2128 = vmatpush1.msra.mxu0 0.0
        %2129 = vmatprep.subr.mxu0 0.0
        %2130 = vmatpush1.msra.mxu0 0.0
        %2131 = vmatprep.subr.mxu0 0.0
        %2132 = vmatpush1.msra.mxu0 0.0
        %2133 = vmatprep.subr.mxu0 0.0
        %2134 = vmatpush1.msra.mxu0 0.0
        %2135 = vmatprep.subr.mxu0 0.0
        %2136 = vmatpush1.msra.mxu0 0.0
        %2137 = vmatprep.subr.mxu0 0.0
        %2138 = vmatpush1.msra.mxu0 0.0
        %2139 = vmatprep.subr.mxu0 0.0
        %2140 = vmatpush1.msra.mxu0 0.0
        %2141 = vmatprep.subr.mxu0 0.0
        %2142 = vmatpush1.msra.mxu0 0.0
        %2143 = vmatprep.subr.mxu0 0.0
        %2144 = vmatpush1.msra.mxu0 0.0
        %2145 = vmatprep.subr.mxu0 0.0
        %2146 = vmatpush1.msra.mxu0 0.0
        %2147 = vmatprep.subr.mxu0 0.0
        %2148 = vmatpush1.msra.mxu0 0.0
        %2149 = vmatprep.subr.mxu0 0.0
        %2150 = vmatpush1.msra.mxu0 0.0
        %2151 = vmatprep.subr.mxu0 0.0
        %2152 = vmatpush1.msra.mxu0 0.0
        %2153 = vmatprep.subr.mxu0 0.0
        %2154 = vmatpush1.msra.mxu0 0.0
        %2155 = vmatprep.subr.mxu0 0.0
        %2156 = vmatpush1.msra.mxu0 0.0
        %2157 = vmatprep.subr.mxu0 0.0
        %2158 = vmatpush1.msra.mxu0 0.0
        %2159 = vmatprep.subr.mxu0 0.0
        %2160 = vmatpush1.msra.mxu0 0.0
        %2161 = vmatprep.subr.mxu0 0.0
        %2162 = vmatpush1.msra.mxu0 0.0
        %2163 = vmatprep.subr.mxu0 0.0
        %2164 = vmatpush1.msra.mxu0 0.0
        %2165 = vmatprep.subr.mxu0 0.0
        %2166 = vmatpush1.msra.mxu0 0.0
        %2167 = vmatprep.mubr.f32.mxu0 0.0
        %2168 = vmatmul.mubr.f32.gmra.mrb[0].mxu0 %v2080
        %v2169 = vpop.f32.mrb[0].mxu0
        %v2170 = vadd.f32 %v2076, %v2169
        %v2171 = vpop.f32.mrb[0].mxu0
        %2172 = vmatprep.mubr.f32.mxu0 0.0
        %2173 = vmatmul.mubr.f32.gmra.mrb[0].mxu0 %v2083
        %v2174 = vpop.f32.mrb[0].mxu0
        %v2175 = vadd.f32 %v2076, %v2174
        %v2176 = vpop.f32.mrb[0].mxu0
        %2177 = vmatprep.mubr.f32.mxu0 0.0
        %2178 = vmatmul.mubr.f32.gmra.mrb[0].mxu0 %v2086
        %v2179 = vpop.f32.mrb[0].mxu0
        %v2180 = vadd.f32 %v2076, %v2179
        %v2181 = vpop.f32.mrb[0].mxu0
        %2182 = vmatprep.mubr.f32.mxu0 0.0
        %2183 = vmatmul.mubr.f32.gmra.mrb[0].mxu0 %v2089
        %v2184 = vpop.f32.mrb[0].mxu0
        %v2185 = vadd.f32 %v2076, %v2184
        %v2186 = vpop.f32.mrb[0].mxu0
        %2187 = vmatprep.mubr.f32.mxu0 0.0
        %2188 = vmatmul.mubr.f32.gmra.mrb[0].mxu0 %v2092
        %v2189 = vpop.f32.mrb[0].mxu0
        %v2190 = vadd.f32 %v2076, %v2189
        %v2191 = vpop.f32.mrb[0].mxu0
        %2192 = vmatprep.mubr.f32.mxu0 0.0
        %2193 = vmatmul.mubr.f32.gmra.mrb[0].mxu0 %v2095
        %v2194 = vpop.f32.mrb[0].mxu0
        %v2195 = vadd.f32 %v2076, %v2194
        %v2196 = vpop.f32.mrb[0].mxu0
        %2197 = vmatprep.mubr.f32.mxu0 0.0
        %2198 = vmatmul.mubr.f32.gmra.mrb[0].mxu0 %v2098
        %v2199 = vpop.f32.mrb[0].mxu0
        %v2200 = vadd.f32 %v2076, %v2199
        %v2201 = vpop.f32.mrb[0].mxu0
        %2202 = vmatprep.mubr.f32.mxu0 0.0
        %2203 = vmatmul.mubr.f32.gmra.mrb[0].mxu0 %v2101
        %v2204 = vpop.f32.mrb[0].mxu0
        %v2205 = vadd.f32 %v2076, %v2204
        %v2206 = vpop.f32.mrb[0].mxu0
        %2207 = vdwg.mxu0
        %v2208 = vmax.f32 %v2170, 0.0
        %v2209 = vmax.f32 %v2175, 0.0
        %v2210 = vmax.f32 %v2180, 0.0
        %v2211 = vmax.f32 %v2185, 0.0
        %v2212 = vmax.f32 %v2190, 0.0
        %v2213 = vmax.f32 %v2195, 0.0
        %v2214 = vmax.f32 %v2200, 0.0
        %v2215 = vmax.f32 %v2205, 0.0
        %v2216 = vld [vmem:[%s31] sm:$0xff]
        %v2217 = vld [vmem:[%s31 + $0x8] sm:$0xff]
        %v2219 = vsel %vm1949, %v2208, 0
        %v2222 = vsel %vm1949, %v2209, 0
        %v2225 = vsel %vm1949, %v2210, 0
        %v2228 = vsel %vm1949, %v2211, 0
        %v2231 = vsel %vm1949, %v2212, 0
        %v2234 = vsel %vm1949, %v2213, 0
        %v2237 = vsel %vm1949, %v2214, 0
        %v2240 = vsel %vm1949, %v2215, 0
        %2242 = vmatprep.subr.mxu0 0.0
        %2243 = vmatpush1.msra.mxu0 %v2216
        %2244 = vmatprep.subr.mxu0 0.0
        %2245 = vmatpush1.msra.mxu0 %v2217
        %2246 = vmatprep.subr.mxu0 0.0
        %2247 = vmatpush1.msra.mxu0 0.0
        %2248 = vmatprep.subr.mxu0 0.0
        %2249 = vmatpush1.msra.mxu0 0.0
        %2250 = vmatprep.subr.mxu0 0.0
        %2251 = vmatpush1.msra.mxu0 0.0
        %2252 = vmatprep.subr.mxu0 0.0
        %2253 = vmatpush1.msra.mxu0 0.0
        %2254 = vmatprep.subr.mxu0 0.0
        %2255 = vmatpush1.msra.mxu0 0.0
        %2256 = vmatprep.subr.mxu0 0.0
        %2257 = vmatpush1.msra.mxu0 0.0
        %2258 = vmatprep.subr.mxu0 0.0
        %2259 = vmatpush1.msra.mxu0 0.0
        %2260 = vmatprep.subr.mxu0 0.0
        %2261 = vmatpush1.msra.mxu0 0.0
        %2262 = vmatprep.subr.mxu0 0.0
        %2263 = vmatpush1.msra.mxu0 0.0
        %2264 = vmatprep.subr.mxu0 0.0
        %2265 = vmatpush1.msra.mxu0 0.0
        %2266 = vmatprep.subr.mxu0 0.0
        %2267 = vmatpush1.msra.mxu0 0.0
        %2268 = vmatprep.subr.mxu0 0.0
        %2269 = vmatpush1.msra.mxu0 0.0
        %2270 = vmatprep.subr.mxu0 0.0
        %2271 = vmatpush1.msra.mxu0 0.0
        %2272 = vmatprep.subr.mxu0 0.0
        %2273 = vmatpush1.msra.mxu0 0.0
        %2274 = vmatprep.subr.mxu0 0.0
        %2275 = vmatpush1.msra.mxu0 0.0
        %2276 = vmatprep.subr.mxu0 0.0
        %2277 = vmatpush1.msra.mxu0 0.0
        %2278 = vmatprep.subr.mxu0 0.0
        %2279 = vmatpush1.msra.mxu0 0.0
        %2280 = vmatprep.subr.mxu0 0.0
        %2281 = vmatpush1.msra.mxu0 0.0
        %2282 = vmatprep.subr.mxu0 0.0
        %2283 = vmatpush1.msra.mxu0 0.0
        %2284 = vmatprep.subr.mxu0 0.0
        %2285 = vmatpush1.msra.mxu0 0.0
        %2286 = vmatprep.subr.mxu0 0.0
        %2287 = vmatpush1.msra.mxu0 0.0
        %2288 = vmatprep.subr.mxu0 0.0
        %2289 = vmatpush1.msra.mxu0 0.0
        %2290 = vmatprep.subr.mxu0 0.0
        %2291 = vmatpush1.msra.mxu0 0.0
        %2292 = vmatprep.subr.mxu0 0.0
        %2293 = vmatpush1.msra.mxu0 0.0
        %2294 = vmatprep.subr.mxu0 0.0
        %2295 = vmatpush1.msra.mxu0 0.0
        %2296 = vmatprep.subr.mxu0 0.0
        %2297 = vmatpush1.msra.mxu0 0.0
        %2298 = vmatprep.subr.mxu0 0.0
        %2299 = vmatpush1.msra.mxu0 0.0
        %2300 = vmatprep.subr.mxu0 0.0
        %2301 = vmatpush1.msra.mxu0 0.0
        %2302 = vmatprep.subr.mxu0 0.0
        %2303 = vmatpush1.msra.mxu0 0.0
        %2304 = vmatprep.subr.mxu0 0.0
        %2305 = vmatpush1.msra.mxu0 0.0
        %2306 = vmatprep.mubr.f32.mxu0 0.0
        %2307 = vmatmul.mubr.f32.gmra.mrb[0].mxu0 %v2219
        %v2308 = vpop.f32.mrb[0].mxu0
        %v2309 = vadd.f32 0.0, %v2308
        %v2310 = vpop.f32.mrb[0].mxu0
        %2311 = vmatprep.mubr.f32.mxu0 0.0
        %2312 = vmatmul.mubr.f32.gmra.mrb[0].mxu0 %v2222
        %v2313 = vpop.f32.mrb[0].mxu0
        %v2314 = vadd.f32 0.0, %v2313
        %v2315 = vpop.f32.mrb[0].mxu0
        %2316 = vmatprep.mubr.f32.mxu0 0.0
        %2317 = vmatmul.mubr.f32.gmra.mrb[0].mxu0 %v2225
        %v2318 = vpop.f32.mrb[0].mxu0
        %v2319 = vadd.f32 0.0, %v2318
        %v2320 = vpop.f32.mrb[0].mxu0
        %2321 = vmatprep.mubr.f32.mxu0 0.0
        %2322 = vmatmul.mubr.f32.gmra.mrb[0].mxu0 %v2228
        %v2323 = vpop.f32.mrb[0].mxu0
        %v2324 = vadd.f32 0.0, %v2323
        %v2325 = vpop.f32.mrb[0].mxu0
        %2326 = vmatprep.mubr.f32.mxu0 0.0
        %2327 = vmatmul.mubr.f32.gmra.mrb[0].mxu0 %v2231
        %v2328 = vpop.f32.mrb[0].mxu0
        %v2329 = vadd.f32 0.0, %v2328
        %v2330 = vpop.f32.mrb[0].mxu0
        %2331 = vmatprep.mubr.f32.mxu0 0.0
        %2332 = vmatmul.mubr.f32.gmra.mrb[0].mxu0 %v2234
        %v2333 = vpop.f32.mrb[0].mxu0
        %v2334 = vadd.f32 0.0, %v2333
        %v2335 = vpop.f32.mrb[0].mxu0
        %2336 = vmatprep.mubr.f32.mxu0 0.0
        %2337 = vmatmul.mubr.f32.gmra.mrb[0].mxu0 %v2237
        %v2338 = vpop.f32.mrb[0].mxu0
        %v2339 = vadd.f32 0.0, %v2338
        %v2340 = vpop.f32.mrb[0].mxu0
        %2341 = vmatprep.mubr.f32.mxu0 0.0
        %2342 = vmatmul.mubr.f32.gmra.mrb[0].mxu0 %v2240
        %v2343 = vpop.f32.mrb[0].mxu0
        %v2344 = vadd.f32 0.0, %v2343
        %v2345 = vpop.f32.mrb[0].mxu0
        %2346 = vdwg.mxu0
        %v2347 = vld [vmem:[%s9] sm:$0xff]
        %v2348 = vld [vmem:[%s9 + $0x8] sm:$0xff]
        %v2349 = vld [vmem:[%s9 + $0x10] sm:$0xff]
        %v2350 = vld [vmem:[%s9 + $0x18] sm:$0xff]
        %v2351 = vld [vmem:[%s9 + $0x20] sm:$0xff]
        %v2352 = vld [vmem:[%s9 + $0x28] sm:$0xff]
        %v2353 = vld [vmem:[%s9 + $0x30] sm:$0xff]
        %v2354 = vld [vmem:[%s9 + $0x38] sm:$0xff]
        %v2355 = vld [vmem:[%s33] sm:$0xff]
        %v2356 = vld [vmem:[%s33 + $0x8] sm:$0xff]
        %2357 = vmatprep.subr.mxu0 0.0
        %2358 = vmatpush1.msra.mxu0 %v2355
        %2359 = vmatprep.subr.mxu0 0.0
        %2360 = vmatpush1.msra.mxu0 %v2356
        %2361 = vmatprep.subr.mxu0 0.0
        %2362 = vmatpush1.msra.mxu0 0.0
        %2363 = vmatprep.subr.mxu0 0.0
        %2364 = vmatpush1.msra.mxu0 0.0
        %2365 = vmatprep.subr.mxu0 0.0
        %2366 = vmatpush1.msra.mxu0 0.0
        %2367 = vmatprep.subr.mxu0 0.0
        %2368 = vmatpush1.msra.mxu0 0.0
        %2369 = vmatprep.subr.mxu0 0.0
        %2370 = vmatpush1.msra.mxu0 0.0
        %2371 = vmatprep.subr.mxu0 0.0
        %2372 = vmatpush1.msra.mxu0 0.0
        %2373 = vmatprep.subr.mxu0 0.0
        %2374 = vmatpush1.msra.mxu0 0.0
        %2375 = vmatprep.subr.mxu0 0.0
        %2376 = vmatpush1.msra.mxu0 0.0
        %2377 = vmatprep.subr.mxu0 0.0
        %2378 = vmatpush1.msra.mxu0 0.0
        %2379 = vmatprep.subr.mxu0 0.0
        %2380 = vmatpush1.msra.mxu0 0.0
        %2381 = vmatprep.subr.mxu0 0.0
        %2382 = vmatpush1.msra.mxu0 0.0
        %2383 = vmatprep.subr.mxu0 0.0
        %2384 = vmatpush1.msra.mxu0 0.0
        %2385 = vmatprep.subr.mxu0 0.0
        %2386 = vmatpush1.msra.mxu0 0.0
        %2387 = vmatprep.subr.mxu0 0.0
        %2388 = vmatpush1.msra.mxu0 0.0
        %2389 = vmatprep.subr.mxu0 0.0
        %2390 = vmatpush1.msra.mxu0 0.0
        %2391 = vmatprep.subr.mxu0 0.0
        %2392 = vmatpush1.msra.mxu0 0.0
        %2393 = vmatprep.subr.mxu0 0.0
        %2394 = vmatpush1.msra.mxu0 0.0
        %2395 = vmatprep.subr.mxu0 0.0
        %2396 = vmatpush1.msra.mxu0 0.0
        %2397 = vmatprep.subr.mxu0 0.0
        %2398 = vmatpush1.msra.mxu0 0.0
        %2399 = vmatprep.subr.mxu0 0.0
        %2400 = vmatpush1.msra.mxu0 0.0
        %2401 = vmatprep.subr.mxu0 0.0
        %2402 = vmatpush1.msra.mxu0 0.0
        %2403 = vmatprep.subr.mxu0 0.0
        %2404 = vmatpush1.msra.mxu0 0.0
        %2405 = vmatprep.subr.mxu0 0.0
        %2406 = vmatpush1.msra.mxu0 0.0
        %2407 = vmatprep.subr.mxu0 0.0
        %2408 = vmatpush1.msra.mxu0 0.0
        %2409 = vmatprep.subr.mxu0 0.0
        %2410 = vmatpush1.msra.mxu0 0.0
        %2411 = vmatprep.subr.mxu0 0.0
        %2412 = vmatpush1.msra.mxu0 0.0
        %2413 = vmatprep.subr.mxu0 0.0
        %2414 = vmatpush1.msra.mxu0 0.0
        %2415 = vmatprep.subr.mxu0 0.0
        %2416 = vmatpush1.msra.mxu0 0.0
        %2417 = vmatprep.subr.mxu0 0.0
        %2418 = vmatpush1.msra.mxu0 0.0
        %2419 = vmatprep.subr.mxu0 0.0
        %2420 = vmatpush1.msra.mxu0 0.0
        %2421 = vmatprep.mubr.f32.mxu0 0.0
        %2422 = vmatmul.mubr.f32.gmra.mrb[0].mxu0 %v2219
        %v2423 = vpop.f32.mrb[0].mxu0
        %v2424 = vadd.f32 0.0, %v2423
        %v2425 = vpop.f32.mrb[0].mxu0
        %2426 = vmatprep.mubr.f32.mxu0 0.0
        %2427 = vmatmul.mubr.f32.gmra.mrb[0].mxu0 %v2222
        %v2428 = vpop.f32.mrb[0].mxu0
        %v2429 = vadd.f32 0.0, %v2428
        %v2430 = vpop.f32.mrb[0].mxu0
        %2431 = vmatprep.mubr.f32.mxu0 0.0
        %2432 = vmatmul.mubr.f32.gmra.mrb[0].mxu0 %v2225
        %v2433 = vpop.f32.mrb[0].mxu0
        %v2434 = vadd.f32 0.0, %v2433
        %v2435 = vpop.f32.mrb[0].mxu0
        %2436 = vmatprep.mubr.f32.mxu0 0.0
        %2437 = vmatmul.mubr.f32.gmra.mrb[0].mxu0 %v2228
        %v2438 = vpop.f32.mrb[0].mxu0
        %v2439 = vadd.f32 0.0, %v2438
        %v2440 = vpop.f32.mrb[0].mxu0
        %2441 = vmatprep.mubr.f32.mxu0 0.0
        %2442 = vmatmul.mubr.f32.gmra.mrb[0].mxu0 %v2231
        %v2443 = vpop.f32.mrb[0].mxu0
        %v2444 = vadd.f32 0.0, %v2443
        %v2445 = vpop.f32.mrb[0].mxu0
        %2446 = vmatprep.mubr.f32.mxu0 0.0
        %2447 = vmatmul.mubr.f32.gmra.mrb[0].mxu0 %v2234
        %v2448 = vpop.f32.mrb[0].mxu0
        %v2449 = vadd.f32 0.0, %v2448
        %v2450 = vpop.f32.mrb[0].mxu0
        %2451 = vmatprep.mubr.f32.mxu0 0.0
        %2452 = vmatmul.mubr.f32.gmra.mrb[0].mxu0 %v2237
        %v2453 = vpop.f32.mrb[0].mxu0
        %v2454 = vadd.f32 0.0, %v2453
        %v2455 = vpop.f32.mrb[0].mxu0
        %2456 = vmatprep.mubr.f32.mxu0 0.0
        %2457 = vmatmul.mubr.f32.gmra.mrb[0].mxu0 %v2240
        %v2458 = vpop.f32.mrb[0].mxu0
        %v2459 = vadd.f32 0.0, %v2458
        %v2460 = vpop.f32.mrb[0].mxu0
        %2461 = vdwg.mxu0
        %vm2462 = vcmask 523264
        %v2464 = vsel %vm2462, %v2347, 0
        %v2467 = vsel %vm2462, %v2348, 0
        %v2470 = vsel %vm2462, %v2349, 0
        %v2473 = vsel %vm2462, %v2350, 0
        %v2476 = vsel %vm2462, %v2351, 0
        %v2479 = vsel %vm2462, %v2352, 0
        %v2482 = vsel %vm2462, %v2353, 0
        %v2485 = vsel %vm2462, %v2354, 0
        %2487 = vmatprep.subr.mxu0 0.0
        %2488 = vmatpush1.msra.mxu0 %v2309
        %2489 = vmatprep.subr.mxu0 0.0
        %2490 = vmatpush1.msra.mxu0 %v2314
        %2491 = vmatprep.subr.mxu0 0.0
        %2492 = vmatpush1.msra.mxu0 %v2319
        %2493 = vmatprep.subr.mxu0 0.0
        %2494 = vmatpush1.msra.mxu0 %v2324
        %2495 = vmatprep.subr.mxu0 0.0
        %2496 = vmatpush1.msra.mxu0 %v2329
        %2497 = vmatprep.subr.mxu0 0.0
        %2498 = vmatpush1.msra.mxu0 %v2334
        %2499 = vmatprep.subr.mxu0 0.0
        %2500 = vmatpush1.msra.mxu0 %v2339
        %2501 = vmatprep.subr.mxu0 0.0
        %2502 = vmatpush1.msra.mxu0 %v2344
        %2503 = vmatprep.subr.mxu0 0.0
        %2504 = vmatpush1.msra.mxu0 0.0
        %2505 = vmatprep.subr.mxu0 0.0
        %2506 = vmatpush1.msra.mxu0 0.0
        %2507 = vmatprep.subr.mxu0 0.0
        %2508 = vmatpush1.msra.mxu0 0.0
        %2509 = vmatprep.subr.mxu0 0.0
        %2510 = vmatpush1.msra.mxu0 0.0
        %2511 = vmatprep.subr.mxu0 0.0
        %2512 = vmatpush1.msra.mxu0 0.0
        %2513 = vmatprep.subr.mxu0 0.0
        %2514 = vmatpush1.msra.mxu0 0.0
        %2515 = vmatprep.subr.mxu0 0.0
        %2516 = vmatpush1.msra.mxu0 0.0
        %2517 = vmatprep.subr.mxu0 0.0
        %2518 = vmatpush1.msra.mxu0 0.0
        %2519 = vmatprep.subr.mxu0 0.0
        %2520 = vmatpush1.msra.mxu0 0.0
        %2521 = vmatprep.subr.mxu0 0.0
        %2522 = vmatpush1.msra.mxu0 0.0
        %2523 = vmatprep.subr.mxu0 0.0
        %2524 = vmatpush1.msra.mxu0 0.0
        %2525 = vmatprep.subr.mxu0 0.0
        %2526 = vmatpush1.msra.mxu0 0.0
        %2527 = vmatprep.subr.mxu0 0.0
        %2528 = vmatpush1.msra.mxu0 0.0
        %2529 = vmatprep.subr.mxu0 0.0
        %2530 = vmatpush1.msra.mxu0 0.0
        %2531 = vmatprep.subr.mxu0 0.0
        %2532 = vmatpush1.msra.mxu0 0.0
        %2533 = vmatprep.subr.mxu0 0.0
        %2534 = vmatpush1.msra.mxu0 0.0
        %2535 = vmatprep.subr.mxu0 0.0
        %2536 = vmatpush1.msra.mxu0 0.0
        %2537 = vmatprep.subr.mxu0 0.0
        %2538 = vmatpush1.msra.mxu0 0.0
        %2539 = vmatprep.subr.mxu0 0.0
        %2540 = vmatpush1.msra.mxu0 0.0
        %2541 = vmatprep.subr.mxu0 0.0
        %2542 = vmatpush1.msra.mxu0 0.0
        %2543 = vmatprep.subr.mxu0 0.0
        %2544 = vmatpush1.msra.mxu0 0.0
        %2545 = vmatprep.subr.mxu0 0.0
        %2546 = vmatpush1.msra.mxu0 0.0
        %2547 = vmatprep.subr.mxu0 0.0
        %2548 = vmatpush1.msra.mxu0 0.0
        %2549 = vmatprep.subr.mxu0 0.0
        %2550 = vmatpush1.msra.mxu0 0.0
        %2551 = vmatprep.mubr.f32.mxu0 0.0
        %2552 = vmatmul.mubr.f32.gmra.mrb[0].mxu0 %v2464
        %v2553 = vpop.f32.mrb[0].mxu0
        %v2554 = vadd.f32 %v2424, %v2553
        %v2555 = vpop.f32.mrb[0].mxu0
        %2556 = vmatprep.mubr.f32.mxu0 0.0
        %2557 = vmatmul.mubr.f32.gmra.mrb[0].mxu0 %v2467
        %v2558 = vpop.f32.mrb[0].mxu0
        %v2559 = vadd.f32 %v2429, %v2558
        %v2560 = vpop.f32.mrb[0].mxu0
        %2561 = vmatprep.mubr.f32.mxu0 0.0
        %2562 = vmatmul.mubr.f32.gmra.mrb[0].mxu0 %v2470
        %v2563 = vpop.f32.mrb[0].mxu0
        %v2564 = vadd.f32 %v2434, %v2563
        %v2565 = vpop.f32.mrb[0].mxu0
        %2566 = vmatprep.mubr.f32.mxu0 0.0
        %2567 = vmatmul.mubr.f32.gmra.mrb[0].mxu0 %v2473
        %v2568 = vpop.f32.mrb[0].mxu0
        %v2569 = vadd.f32 %v2439, %v2568
        %v2570 = vpop.f32.mrb[0].mxu0
        %2571 = vmatprep.mubr.f32.mxu0 0.0
        %2572 = vmatmul.mubr.f32.gmra.mrb[0].mxu0 %v2476
        %v2573 = vpop.f32.mrb[0].mxu0
        %v2574 = vadd.f32 %v2444, %v2573
        %v2575 = vpop.f32.mrb[0].mxu0
        %2576 = vmatprep.mubr.f32.mxu0 0.0
        %2577 = vmatmul.mubr.f32.gmra.mrb[0].mxu0 %v2479
        %v2578 = vpop.f32.mrb[0].mxu0
        %v2579 = vadd.f32 %v2449, %v2578
        %v2580 = vpop.f32.mrb[0].mxu0
        %2581 = vmatprep.mubr.f32.mxu0 0.0
        %2582 = vmatmul.mubr.f32.gmra.mrb[0].mxu0 %v2482
        %v2583 = vpop.f32.mrb[0].mxu0
        %v2584 = vadd.f32 %v2454, %v2583
        %v2585 = vpop.f32.mrb[0].mxu0
        %2586 = vmatprep.mubr.f32.mxu0 0.0
        %2587 = vmatmul.mubr.f32.gmra.mrb[0].mxu0 %v2485
        %v2588 = vpop.f32.mrb[0].mxu0
        %v2589 = vadd.f32 %v2459, %v2588
        %v2590 = vpop.f32.mrb[0].mxu0
        %2591 = vdwg.mxu0
        %v2592 = vld [vmem:[#allocation11] sm:$0x1]
        %v2594 = vlaneseq
        %v2595 = vshrl.u32 %v2594, 7
        %v2596 = vsub.s32 0, %v2595
        %v2597 = vrot.slane %v2592, %v2596
        %v2599 = vadd.f32 %v2554, %v2597
        %v2600 = vadd.f32 %v2559, %v2597
        %v2601 = vadd.f32 %v2564, %v2597
        %v2602 = vadd.f32 %v2569, %v2597
        %v2603 = vadd.f32 %v2574, %v2597
        %v2604 = vadd.f32 %v2579, %v2597
        %v2605 = vadd.f32 %v2584, %v2597
        %v2606 = vadd.f32 %v2589, %v2597
        %v2607 = vmax.f32 %v2599, 0.0
        %v2608 = vmax.f32 %v2600, 0.0
        %v2609 = vmax.f32 %v2601, 0.0
        %v2610 = vmax.f32 %v2602, 0.0
        %v2611 = vmax.f32 %v2603, 0.0
        %v2612 = vmax.f32 %v2604, 0.0
        %v2613 = vmax.f32 %v2605, 0.0
        %v2614 = vmax.f32 %v2606, 0.0
        %v2615 = vsel %vm1949, %v2607, 0.0
        %v2616 = vsel %vm1949, %v2608, 0.0
        %v2617 = vadd.f32 %v2615, %v2616
        %v2618 = vsel %vm1949, %v2609, 0.0
        %v2619 = vadd.f32 %v2617, %v2618
        %v2620 = vsel %vm1949, %v2610, 0.0
        %v2621 = vadd.f32 %v2619, %v2620
        %v2622 = vsel %vm1949, %v2611, 0.0
        %v2623 = vadd.f32 %v2621, %v2622
        %v2624 = vsel %vm1949, %v2612, 0.0
        %v2625 = vadd.f32 %v2623, %v2624
        %v2626 = vsel %vm1949, %v2613, 0.0
        %v2627 = vadd.f32 %v2625, %v2626
        %v2628 = vsel %vm1949, %v2614, 0.0
        %v2629 = vadd.f32 %v2627, %v2628
        %v2630 = vrot.slane %v2629, 4
        %v2631 = vadd.f32 %v2629, %v2630
        %v2632 = vrot.slane %v2631, 2
        %v2633 = vadd.f32 %v2631, %v2632
        %v2634 = vrot.slane %v2633, 1
        %v2635 = vadd.f32 %v2633, %v2634
        %v2636 = vrcp.pop 64.0
        %v2637 = vmul.f32 %v2635, %v2636
        %v2638 = vsub.f32 %v2607, %v2637
        %v2639 = vsub.f32 %v2608, %v2637
        %v2640 = vsub.f32 %v2609, %v2637
        %v2641 = vsub.f32 %v2610, %v2637
        %v2642 = vsub.f32 %v2611, %v2637
        %v2643 = vsub.f32 %v2612, %v2637
        %v2644 = vsub.f32 %v2613, %v2637
        %v2645 = vsub.f32 %v2614, %v2637
        %v2646 = vmul.f32 %v2638, %v2638
        %v2647 = vmul.f32 %v2639, %v2639
        %v2648 = vmul.f32 %v2640, %v2640
        %v2649 = vmul.f32 %v2641, %v2641
        %v2650 = vmul.f32 %v2642, %v2642
        %v2651 = vmul.f32 %v2643, %v2643
        %v2652 = vmul.f32 %v2644, %v2644
        %v2653 = vmul.f32 %v2645, %v2645
        %v2654 = vsel %vm1949, %v2646, 0.0
        %v2655 = vsel %vm1949, %v2647, 0.0
        %v2656 = vadd.f32 %v2654, %v2655
        %v2657 = vsel %vm1949, %v2648, 0.0
        %v2658 = vadd.f32 %v2656, %v2657
        %v2659 = vsel %vm1949, %v2649, 0.0
        %v2660 = vadd.f32 %v2658, %v2659
        %v2661 = vsel %vm1949, %v2650, 0.0
        %v2662 = vadd.f32 %v2660, %v2661
        %v2663 = vsel %vm1949, %v2651, 0.0
        %v2664 = vadd.f32 %v2662, %v2663
        %v2665 = vsel %vm1949, %v2652, 0.0
        %v2666 = vadd.f32 %v2664, %v2665
        %v2667 = vsel %vm1949, %v2653, 0.0
        %v2668 = vadd.f32 %v2666, %v2667
        %v2669 = vrot.slane %v2668, 4
        %v2670 = vadd.f32 %v2668, %v2669
        %v2671 = vrot.slane %v2670, 2
        %v2672 = vadd.f32 %v2670, %v2671
        %v2673 = vrot.slane %v2672, 1
        %v2674 = vadd.f32 %v2672, %v2673
        %v2675 = vmul.f32 %v2674, %v2636
        %v2676 = vadd.f32 %v2675, 1e-05
        %v2677 = vrsqrt.pop %v2676
        %v2678 = vmul.f32 %v2638, %v2677
        %v2679 = vmul.f32 %v2639, %v2677
        %v2680 = vmul.f32 %v2640, %v2677
        %v2681 = vmul.f32 %v2641, %v2677
        %v2682 = vmul.f32 %v2642, %v2677
        %v2683 = vmul.f32 %v2643, %v2677
        %v2684 = vmul.f32 %v2644, %v2677
        %v2685 = vmul.f32 %v2645, %v2677
        %v2686 = vld [vmem:[%s17] sm:$0xff]
        %v2687 = vld [vmem:[%s17 + $0x8] sm:$0xff]
        %v2688 = vld [vmem:[%s17 + $0x10] sm:$0xff]
        %v2689 = vld [vmem:[%s17 + $0x18] sm:$0xff]
        %v2691 = vsel %vm2462, %v2686, 0
        %v2694 = vsel %vm2462, %v2687, 0
        %v2697 = vsel %vm2462, %v2688, 0
        %v2700 = vsel %vm2462, %v2689, 0
        %2702 = vmatprep.subr.mxu0 0.0
        %2703 = vmatpush1.msra.mxu0 %v2678
        %2704 = vmatprep.subr.mxu0 0.0
        %2705 = vmatpush1.msra.mxu0 %v2679
        %2706 = vmatprep.subr.mxu0 0.0
        %2707 = vmatpush1.msra.mxu0 %v2680
        %2708 = vmatprep.subr.mxu0 0.0
        %2709 = vmatpush1.msra.mxu0 %v2681
        %2710 = vmatprep.subr.mxu0 0.0
        %2711 = vmatpush1.msra.mxu0 %v2682
        %2712 = vmatprep.subr.mxu0 0.0
        %2713 = vmatpush1.msra.mxu0 %v2683
        %2714 = vmatprep.subr.mxu0 0.0
        %2715 = vmatpush1.msra.mxu0 %v2684
        %2716 = vmatprep.subr.mxu0 0.0
        %2717 = vmatpush1.msra.mxu0 %v2685
        %2718 = vmatprep.subr.mxu0 0.0
        %2719 = vmatpush1.msra.mxu0 0.0
        %2720 = vmatprep.subr.mxu0 0.0
        %2721 = vmatpush1.msra.mxu0 0.0
        %2722 = vmatprep.subr.mxu0 0.0
        %2723 = vmatpush1.msra.mxu0 0.0
        %2724 = vmatprep.subr.mxu0 0.0
        %2725 = vmatpush1.msra.mxu0 0.0
        %2726 = vmatprep.subr.mxu0 0.0
        %2727 = vmatpush1.msra.mxu0 0.0
        %2728 = vmatprep.subr.mxu0 0.0
        %2729 = vmatpush1.msra.mxu0 0.0
        %2730 = vmatprep.subr.mxu0 0.0
        %2731 = vmatpush1.msra.mxu0 0.0
        %2732 = vmatprep.subr.mxu0 0.0
        %2733 = vmatpush1.msra.mxu0 0.0
        %2734 = vmatprep.subr.mxu0 0.0
        %2735 = vmatpush1.msra.mxu0 0.0
        %2736 = vmatprep.subr.mxu0 0.0
        %2737 = vmatpush1.msra.mxu0 0.0
        %2738 = vmatprep.subr.mxu0 0.0
        %2739 = vmatpush1.msra.mxu0 0.0
        %2740 = vmatprep.subr.mxu0 0.0
        %2741 = vmatpush1.msra.mxu0 0.0
        %2742 = vmatprep.subr.mxu0 0.0
        %2743 = vmatpush1.msra.mxu0 0.0
        %2744 = vmatprep.subr.mxu0 0.0
        %2745 = vmatpush1.msra.mxu0 0.0
        %2746 = vmatprep.subr.mxu0 0.0
        %2747 = vmatpush1.msra.mxu0 0.0
        %2748 = vmatprep.subr.mxu0 0.0
        %2749 = vmatpush1.msra.mxu0 0.0
        %2750 = vmatprep.subr.mxu0 0.0
        %2751 = vmatpush1.msra.mxu0 0.0
        %2752 = vmatprep.subr.mxu0 0.0
        %2753 = vmatpush1.msra.mxu0 0.0
        %2754 = vmatprep.subr.mxu0 0.0
        %2755 = vmatpush1.msra.mxu0 0.0
        %2756 = vmatprep.subr.mxu0 0.0
        %2757 = vmatpush1.msra.mxu0 0.0
        %2758 = vmatprep.subr.mxu0 0.0
        %2759 = vmatpush1.msra.mxu0 0.0
        %2760 = vmatprep.subr.mxu0 0.0
        %2761 = vmatpush1.msra.mxu0 0.0
        %2762 = vmatprep.subr.mxu0 0.0
        %2763 = vmatpush1.msra.mxu0 0.0
        %2764 = vmatprep.subr.mxu0 0.0
        %2765 = vmatpush1.msra.mxu0 0.0
        %2766 = vmatprep.mubr.f32.mxu0 0.0
        %2767 = vmatmul.mubr.f32.gmra.mrb[0].mxu0 %v2691
        %v2768 = vpop.f32.mrb[0].mxu0
        %v2769 = vadd.f32 0.0, %v2768
        %v2770 = vpop.f32.mrb[0].mxu0
        %2771 = vmatprep.mubr.f32.mxu0 0.0
        %2772 = vmatmul.mubr.f32.gmra.mrb[0].mxu0 %v2694
        %v2773 = vpop.f32.mrb[0].mxu0
        %v2774 = vadd.f32 0.0, %v2773
        %v2775 = vpop.f32.mrb[0].mxu0
        %2776 = vmatprep.mubr.f32.mxu0 0.0
        %2777 = vmatmul.mubr.f32.gmra.mrb[0].mxu0 %v2697
        %v2778 = vpop.f32.mrb[0].mxu0
        %v2779 = vadd.f32 0.0, %v2778
        %v2780 = vpop.f32.mrb[0].mxu0
        %2781 = vmatprep.mubr.f32.mxu0 0.0
        %2782 = vmatmul.mubr.f32.gmra.mrb[0].mxu0 %v2700
        %v2783 = vpop.f32.mrb[0].mxu0
        %v2784 = vadd.f32 0.0, %v2783
        %v2785 = vpop.f32.mrb[0].mxu0
        %2786 = vdwg.mxu0
        %v2787 = vld [vmem:[%s37] sm:$0xff]
        %v2788 = vld [vmem:[%s37 + $0x8] sm:$0xff]
        %v2790 = vsel %vm1949, %v2769, 0
        %v2793 = vsel %vm1949, %v2774, 0
        %v2796 = vsel %vm1949, %v2779, 0
        %v2799 = vsel %vm1949, %v2784, 0
        %2801 = vmatprep.subr.mxu0 0.0
        %2802 = vmatpush1.msra.mxu0 %v2787
        %2803 = vmatprep.subr.mxu0 0.0
        %2804 = vmatpush1.msra.mxu0 %v2788
        %2805 = vmatprep.subr.mxu0 0.0
        %2806 = vmatpush1.msra.mxu0 0.0
        %2807 = vmatprep.subr.mxu0 0.0
        %2808 = vmatpush1.msra.mxu0 0.0
        %2809 = vmatprep.subr.mxu0 0.0
        %2810 = vmatpush1.msra.mxu0 0.0
        %2811 = vmatprep.subr.mxu0 0.0
        %2812 = vmatpush1.msra.mxu0 0.0
        %2813 = vmatprep.subr.mxu0 0.0
        %2814 = vmatpush1.msra.mxu0 0.0
        %2815 = vmatprep.subr.mxu0 0.0
        %2816 = vmatpush1.msra.mxu0 0.0
        %2817 = vmatprep.subr.mxu0 0.0
        %2818 = vmatpush1.msra.mxu0 0.0
        %2819 = vmatprep.subr.mxu0 0.0
        %2820 = vmatpush1.msra.mxu0 0.0
        %2821 = vmatprep.subr.mxu0 0.0
        %2822 = vmatpush1.msra.mxu0 0.0
        %2823 = vmatprep.subr.mxu0 0.0
        %2824 = vmatpush1.msra.mxu0 0.0
        %2825 = vmatprep.subr.mxu0 0.0
        %2826 = vmatpush1.msra.mxu0 0.0
        %2827 = vmatprep.subr.mxu0 0.0
        %2828 = vmatpush1.msra.mxu0 0.0
        %2829 = vmatprep.subr.mxu0 0.0
        %2830 = vmatpush1.msra.mxu0 0.0
        %2831 = vmatprep.subr.mxu0 0.0
        %2832 = vmatpush1.msra.mxu0 0.0
        %2833 = vmatprep.subr.mxu0 0.0
        %2834 = vmatpush1.msra.mxu0 0.0
        %2835 = vmatprep.subr.mxu0 0.0
        %2836 = vmatpush1.msra.mxu0 0.0
        %2837 = vmatprep.subr.mxu0 0.0
        %2838 = vmatpush1.msra.mxu0 0.0
        %2839 = vmatprep.subr.mxu0 0.0
        %2840 = vmatpush1.msra.mxu0 0.0
        %2841 = vmatprep.subr.mxu0 0.0
        %2842 = vmatpush1.msra.mxu0 0.0
        %2843 = vmatprep.subr.mxu0 0.0
        %2844 = vmatpush1.msra.mxu0 0.0
        %2845 = vmatprep.subr.mxu0 0.0
        %2846 = vmatpush1.msra.mxu0 0.0
        %2847 = vmatprep.subr.mxu0 0.0
        %2848 = vmatpush1.msra.mxu0 0.0
        %2849 = vmatprep.subr.mxu0 0.0
        %2850 = vmatpush1.msra.mxu0 0.0
        %2851 = vmatprep.subr.mxu0 0.0
        %2852 = vmatpush1.msra.mxu0 0.0
        %2853 = vmatprep.subr.mxu0 0.0
        %2854 = vmatpush1.msra.mxu0 0.0
        %2855 = vmatprep.subr.mxu0 0.0
        %2856 = vmatpush1.msra.mxu0 0.0
        %2857 = vmatprep.subr.mxu0 0.0
        %2858 = vmatpush1.msra.mxu0 0.0
        %2859 = vmatprep.subr.mxu0 0.0
        %2860 = vmatpush1.msra.mxu0 0.0
        %2861 = vmatprep.subr.mxu0 0.0
        %2862 = vmatpush1.msra.mxu0 0.0
        %2863 = vmatprep.subr.mxu0 0.0
        %2864 = vmatpush1.msra.mxu0 0.0
        %2865 = vmatprep.mubr.f32.mxu0 0.0
        %2866 = vmatmul.mubr.f32.gmra.mrb[0].mxu0 %v2790
        %v2867 = vpop.f32.mrb[0].mxu0
        %v2868 = vadd.f32 0.0, %v2867
        %v2869 = vpop.f32.mrb[0].mxu0
        %2870 = vmatprep.mubr.f32.mxu0 0.0
        %2871 = vmatmul.mubr.f32.gmra.mrb[0].mxu0 %v2793
        %v2872 = vpop.f32.mrb[0].mxu0
        %v2873 = vadd.f32 0.0, %v2872
        %v2874 = vpop.f32.mrb[0].mxu0
        %2875 = vmatprep.mubr.f32.mxu0 0.0
        %2876 = vmatmul.mubr.f32.gmra.mrb[0].mxu0 %v2796
        %v2877 = vpop.f32.mrb[0].mxu0
        %v2878 = vadd.f32 0.0, %v2877
        %v2879 = vpop.f32.mrb[0].mxu0
        %2880 = vmatprep.mubr.f32.mxu0 0.0
        %2881 = vmatmul.mubr.f32.gmra.mrb[0].mxu0 %v2799
        %v2882 = vpop.f32.mrb[0].mxu0
        %v2883 = vadd.f32 0.0, %v2882
        %v2884 = vpop.f32.mrb[0].mxu0
        %2885 = vdwg.mxu0
        %v2886 = vld [vmem:[%s11] sm:$0xff]
        %v2887 = vld [vmem:[%s11 + $0x8] sm:$0xff]
        %v2888 = vld [vmem:[%s11 + $0x10] sm:$0xff]
        %v2889 = vld [vmem:[%s11 + $0x18] sm:$0xff]
        %v2890 = vld [vmem:[%s39] sm:$0xff]
        %v2891 = vld [vmem:[%s39 + $0x8] sm:$0xff]
        %2892 = vmatprep.subr.mxu0 0.0
        %2893 = vmatpush1.msra.mxu0 %v2890
        %2894 = vmatprep.subr.mxu0 0.0
        %2895 = vmatpush1.msra.mxu0 %v2891
        %2896 = vmatprep.subr.mxu0 0.0
        %2897 = vmatpush1.msra.mxu0 0.0
        %2898 = vmatprep.subr.mxu0 0.0
        %2899 = vmatpush1.msra.mxu0 0.0
        %2900 = vmatprep.subr.mxu0 0.0
        %2901 = vmatpush1.msra.mxu0 0.0
        %2902 = vmatprep.subr.mxu0 0.0
        %2903 = vmatpush1.msra.mxu0 0.0
        %2904 = vmatprep.subr.mxu0 0.0
        %2905 = vmatpush1.msra.mxu0 0.0
        %2906 = vmatprep.subr.mxu0 0.0
        %2907 = vmatpush1.msra.mxu0 0.0
        %2908 = vmatprep.subr.mxu0 0.0
        %2909 = vmatpush1.msra.mxu0 0.0
        %2910 = vmatprep.subr.mxu0 0.0
        %2911 = vmatpush1.msra.mxu0 0.0
        %2912 = vmatprep.subr.mxu0 0.0
        %2913 = vmatpush1.msra.mxu0 0.0
        %2914 = vmatprep.subr.mxu0 0.0
        %2915 = vmatpush1.msra.mxu0 0.0
        %2916 = vmatprep.subr.mxu0 0.0
        %2917 = vmatpush1.msra.mxu0 0.0
        %2918 = vmatprep.subr.mxu0 0.0
        %2919 = vmatpush1.msra.mxu0 0.0
        %2920 = vmatprep.subr.mxu0 0.0
        %2921 = vmatpush1.msra.mxu0 0.0
        %2922 = vmatprep.subr.mxu0 0.0
        %2923 = vmatpush1.msra.mxu0 0.0
        %2924 = vmatprep.subr.mxu0 0.0
        %2925 = vmatpush1.msra.mxu0 0.0
        %2926 = vmatprep.subr.mxu0 0.0
        %2927 = vmatpush1.msra.mxu0 0.0
        %2928 = vmatprep.subr.mxu0 0.0
        %2929 = vmatpush1.msra.mxu0 0.0
        %2930 = vmatprep.subr.mxu0 0.0
        %2931 = vmatpush1.msra.mxu0 0.0
        %2932 = vmatprep.subr.mxu0 0.0
        %2933 = vmatpush1.msra.mxu0 0.0
        %2934 = vmatprep.subr.mxu0 0.0
        %2935 = vmatpush1.msra.mxu0 0.0
        %2936 = vmatprep.subr.mxu0 0.0
        %2937 = vmatpush1.msra.mxu0 0.0
        %2938 = vmatprep.subr.mxu0 0.0
        %2939 = vmatpush1.msra.mxu0 0.0
        %2940 = vmatprep.subr.mxu0 0.0
        %2941 = vmatpush1.msra.mxu0 0.0
        %2942 = vmatprep.subr.mxu0 0.0
        %2943 = vmatpush1.msra.mxu0 0.0
        %2944 = vmatprep.subr.mxu0 0.0
        %2945 = vmatpush1.msra.mxu0 0.0
        %2946 = vmatprep.subr.mxu0 0.0
        %2947 = vmatpush1.msra.mxu0 0.0
        %2948 = vmatprep.subr.mxu0 0.0
        %2949 = vmatpush1.msra.mxu0 0.0
        %2950 = vmatprep.subr.mxu0 0.0
        %2951 = vmatpush1.msra.mxu0 0.0
        %2952 = vmatprep.subr.mxu0 0.0
        %2953 = vmatpush1.msra.mxu0 0.0
        %2954 = vmatprep.subr.mxu0 0.0
        %2955 = vmatpush1.msra.mxu0 0.0
        %2956 = vmatprep.mubr.f32.mxu0 0.0
        %2957 = vmatmul.mubr.f32.gmra.mrb[0].mxu0 %v2790
        %v2958 = vpop.f32.mrb[0].mxu0
        %v2959 = vadd.f32 0.0, %v2958
        %v2960 = vpop.f32.mrb[0].mxu0
        %2961 = vmatprep.mubr.f32.mxu0 0.0
        %2962 = vmatmul.mubr.f32.gmra.mrb[0].mxu0 %v2793
        %v2963 = vpop.f32.mrb[0].mxu0
        %v2964 = vadd.f32 0.0, %v2963
        %v2965 = vpop.f32.mrb[0].mxu0
        %2966 = vmatprep.mubr.f32.mxu0 0.0
        %2967 = vmatmul.mubr.f32.gmra.mrb[0].mxu0 %v2796
        %v2968 = vpop.f32.mrb[0].mxu0
        %v2969 = vadd.f32 0.0, %v2968
        %v2970 = vpop.f32.mrb[0].mxu0
        %2971 = vmatprep.mubr.f32.mxu0 0.0
        %2972 = vmatmul.mubr.f32.gmra.mrb[0].mxu0 %v2799
        %v2973 = vpop.f32.mrb[0].mxu0
        %v2974 = vadd.f32 0.0, %v2973
        %v2975 = vpop.f32.mrb[0].mxu0
        %2976 = vdwg.mxu0
        %v2978 = vsel %vm1796, %v2886, 0
        %v2981 = vsel %vm1796, %v2887, 0
        %v2984 = vsel %vm1796, %v2888, 0
        %v2987 = vsel %vm1796, %v2889, 0
        %2989 = vmatprep.subr.mxu0 0.0
        %2990 = vmatpush1.msra.mxu0 %v2868
        %2991 = vmatprep.subr.mxu0 0.0
        %2992 = vmatpush1.msra.mxu0 %v2873
        %2993 = vmatprep.subr.mxu0 0.0
        %2994 = vmatpush1.msra.mxu0 %v2878
        %2995 = vmatprep.subr.mxu0 0.0
        %2996 = vmatpush1.msra.mxu0 %v2883
        %2997 = vmatprep.subr.mxu0 0.0
        %2998 = vmatpush1.msra.mxu0 0.0
        %2999 = vmatprep.subr.mxu0 0.0
        %3000 = vmatpush1.msra.mxu0 0.0
        %3001 = vmatprep.subr.mxu0 0.0
        %3002 = vmatpush1.msra.mxu0 0.0
        %3003 = vmatprep.subr.mxu0 0.0
        %3004 = vmatpush1.msra.mxu0 0.0
        %3005 = vmatprep.subr.mxu0 0.0
        %3006 = vmatpush1.msra.mxu0 0.0
        %3007 = vmatprep.subr.mxu0 0.0
        %3008 = vmatpush1.msra.mxu0 0.0
        %3009 = vmatprep.subr.mxu0 0.0
        %3010 = vmatpush1.msra.mxu0 0.0
        %3011 = vmatprep.subr.mxu0 0.0
        %3012 = vmatpush1.msra.mxu0 0.0
        %3013 = vmatprep.subr.mxu0 0.0
        %3014 = vmatpush1.msra.mxu0 0.0
        %3015 = vmatprep.subr.mxu0 0.0
        %3016 = vmatpush1.msra.mxu0 0.0
        %3017 = vmatprep.subr.mxu0 0.0
        %3018 = vmatpush1.msra.mxu0 0.0
        %3019 = vmatprep.subr.mxu0 0.0
        %3020 = vmatpush1.msra.mxu0 0.0
        %3021 = vmatprep.subr.mxu0 0.0
        %3022 = vmatpush1.msra.mxu0 0.0
        %3023 = vmatprep.subr.mxu0 0.0
        %3024 = vmatpush1.msra.mxu0 0.0
        %3025 = vmatprep.subr.mxu0 0.0
        %3026 = vmatpush1.msra.mxu0 0.0
        %3027 = vmatprep.subr.mxu0 0.0
        %3028 = vmatpush1.msra.mxu0 0.0
        %3029 = vmatprep.subr.mxu0 0.0
        %3030 = vmatpush1.msra.mxu0 0.0
        %3031 = vmatprep.subr.mxu0 0.0
        %3032 = vmatpush1.msra.mxu0 0.0
        %3033 = vmatprep.subr.mxu0 0.0
        %3034 = vmatpush1.msra.mxu0 0.0
        %3035 = vmatprep.subr.mxu0 0.0
        %3036 = vmatpush1.msra.mxu0 0.0
        %3037 = vmatprep.subr.mxu0 0.0
        %3038 = vmatpush1.msra.mxu0 0.0
        %3039 = vmatprep.subr.mxu0 0.0
        %3040 = vmatpush1.msra.mxu0 0.0
        %3041 = vmatprep.subr.mxu0 0.0
        %3042 = vmatpush1.msra.mxu0 0.0
        %3043 = vmatprep.subr.mxu0 0.0
        %3044 = vmatpush1.msra.mxu0 0.0
        %3045 = vmatprep.subr.mxu0 0.0
        %3046 = vmatpush1.msra.mxu0 0.0
        %3047 = vmatprep.subr.mxu0 0.0
        %3048 = vmatpush1.msra.mxu0 0.0
        %3049 = vmatprep.subr.mxu0 0.0
        %3050 = vmatpush1.msra.mxu0 0.0
        %3051 = vmatprep.subr.mxu0 0.0
        %3052 = vmatpush1.msra.mxu0 0.0
        %3053 = vmatprep.mubr.f32.mxu0 0.0
        %3054 = vmatmul.mubr.f32.gmra.mrb[0].mxu0 %v2978
        %v3055 = vpop.f32.mrb[0].mxu0
        %v3056 = vadd.f32 %v2959, %v3055
        %v3057 = vpop.f32.mrb[0].mxu0
        %3058 = vmatprep.mubr.f32.mxu0 0.0
        %3059 = vmatmul.mubr.f32.gmra.mrb[0].mxu0 %v2981
        %v3060 = vpop.f32.mrb[0].mxu0
        %v3061 = vadd.f32 %v2964, %v3060
        %v3062 = vpop.f32.mrb[0].mxu0
        %3063 = vmatprep.mubr.f32.mxu0 0.0
        %3064 = vmatmul.mubr.f32.gmra.mrb[0].mxu0 %v2984
        %v3065 = vpop.f32.mrb[0].mxu0
        %v3066 = vadd.f32 %v2969, %v3065
        %v3067 = vpop.f32.mrb[0].mxu0
        %3068 = vmatprep.mubr.f32.mxu0 0.0
        %3069 = vmatmul.mubr.f32.gmra.mrb[0].mxu0 %v2987
        %v3070 = vpop.f32.mrb[0].mxu0
        %v3071 = vadd.f32 %v2974, %v3070
        %v3072 = vpop.f32.mrb[0].mxu0
        %3073 = vdwg.mxu0
        %v3074 = vld [vmem:[#allocation13] sm:$0x1]
        %v3076 = vlaneseq
        %v3077 = vshrl.u32 %v3076, 7
        %v3078 = vsub.s32 0, %v3077
        %v3079 = vrot.slane %v3074, %v3078
        %v3081 = vadd.f32 %v3056, %v3079
        %v3082 = vadd.f32 %v3061, %v3079
        %v3083 = vadd.f32 %v3066, %v3079
        %v3084 = vadd.f32 %v3071, %v3079
        %v3085 = vmax.f32 %v3081, 0.0
        %v3086 = vmax.f32 %v3082, 0.0
        %v3087 = vmax.f32 %v3083, 0.0
        %v3088 = vmax.f32 %v3084, 0.0
        %v3089 = vld [vmem:[%s43] sm:$0xff]
        %v3090 = vld [vmem:[%s43 + $0x8] sm:$0xff]
        %v3092 = vsel %vm1949, %v3085, 0
        %v3095 = vsel %vm1949, %v3086, 0
        %v3098 = vsel %vm1949, %v3087, 0
        %v3101 = vsel %vm1949, %v3088, 0
        %3103 = vmatprep.subr.mxu0 0.0
        %3104 = vmatpush1.msra.mxu0 %v3089
        %3105 = vmatprep.subr.mxu0 0.0
        %3106 = vmatpush1.msra.mxu0 %v3090
        %3107 = vmatprep.subr.mxu0 0.0
        %3108 = vmatpush1.msra.mxu0 0.0
        %3109 = vmatprep.subr.mxu0 0.0
        %3110 = vmatpush1.msra.mxu0 0.0
        %3111 = vmatprep.subr.mxu0 0.0
        %3112 = vmatpush1.msra.mxu0 0.0
        %3113 = vmatprep.subr.mxu0 0.0
        %3114 = vmatpush1.msra.mxu0 0.0
        %3115 = vmatprep.subr.mxu0 0.0
        %3116 = vmatpush1.msra.mxu0 0.0
        %3117 = vmatprep.subr.mxu0 0.0
        %3118 = vmatpush1.msra.mxu0 0.0
        %3119 = vmatprep.subr.mxu0 0.0
        %3120 = vmatpush1.msra.mxu0 0.0
        %3121 = vmatprep.subr.mxu0 0.0
        %3122 = vmatpush1.msra.mxu0 0.0
        %3123 = vmatprep.subr.mxu0 0.0
        %3124 = vmatpush1.msra.mxu0 0.0
        %3125 = vmatprep.subr.mxu0 0.0
        %3126 = vmatpush1.msra.mxu0 0.0
        %3127 = vmatprep.subr.mxu0 0.0
        %3128 = vmatpush1.msra.mxu0 0.0
        %3129 = vmatprep.subr.mxu0 0.0
        %3130 = vmatpush1.msra.mxu0 0.0
        %3131 = vmatprep.subr.mxu0 0.0
        %3132 = vmatpush1.msra.mxu0 0.0
        %3133 = vmatprep.subr.mxu0 0.0
        %3134 = vmatpush1.msra.mxu0 0.0
        %3135 = vmatprep.subr.mxu0 0.0
        %3136 = vmatpush1.msra.mxu0 0.0
        %3137 = vmatprep.subr.mxu0 0.0
        %3138 = vmatpush1.msra.mxu0 0.0
        %3139 = vmatprep.subr.mxu0 0.0
        %3140 = vmatpush1.msra.mxu0 0.0
        %3141 = vmatprep.subr.mxu0 0.0
        %3142 = vmatpush1.msra.mxu0 0.0
        %3143 = vmatprep.subr.mxu0 0.0
        %3144 = vmatpush1.msra.mxu0 0.0
        %3145 = vmatprep.subr.mxu0 0.0
        %3146 = vmatpush1.msra.mxu0 0.0
        %3147 = vmatprep.subr.mxu0 0.0
        %3148 = vmatpush1.msra.mxu0 0.0
        %3149 = vmatprep.subr.mxu0 0.0
        %3150 = vmatpush1.msra.mxu0 0.0
        %3151 = vmatprep.subr.mxu0 0.0
        %3152 = vmatpush1.msra.mxu0 0.0
        %3153 = vmatprep.subr.mxu0 0.0
        %3154 = vmatpush1.msra.mxu0 0.0
        %3155 = vmatprep.subr.mxu0 0.0
        %3156 = vmatpush1.msra.mxu0 0.0
        %3157 = vmatprep.subr.mxu0 0.0
        %3158 = vmatpush1.msra.mxu0 0.0
        %3159 = vmatprep.subr.mxu0 0.0
        %3160 = vmatpush1.msra.mxu0 0.0
        %3161 = vmatprep.subr.mxu0 0.0
        %3162 = vmatpush1.msra.mxu0 0.0
        %3163 = vmatprep.subr.mxu0 0.0
        %3164 = vmatpush1.msra.mxu0 0.0
        %3165 = vmatprep.subr.mxu0 0.0
        %3166 = vmatpush1.msra.mxu0 0.0
        %3167 = vmatprep.mubr.f32.mxu0 0.0
        %3168 = vmatmul.mubr.f32.gmra.mrb[0].mxu0 %v3092
        %v3169 = vpop.f32.mrb[0].mxu0
        %v3170 = vadd.f32 0.0, %v3169
        %v3171 = vpop.f32.mrb[0].mxu0
        %3172 = vmatprep.mubr.f32.mxu0 0.0
        %3173 = vmatmul.mubr.f32.gmra.mrb[0].mxu0 %v3095
        %v3174 = vpop.f32.mrb[0].mxu0
        %v3175 = vadd.f32 0.0, %v3174
        %v3176 = vpop.f32.mrb[0].mxu0
        %3177 = vmatprep.mubr.f32.mxu0 0.0
        %3178 = vmatmul.mubr.f32.gmra.mrb[0].mxu0 %v3098
        %v3179 = vpop.f32.mrb[0].mxu0
        %v3180 = vadd.f32 0.0, %v3179
        %v3181 = vpop.f32.mrb[0].mxu0
        %3182 = vmatprep.mubr.f32.mxu0 0.0
        %3183 = vmatmul.mubr.f32.gmra.mrb[0].mxu0 %v3101
        %v3184 = vpop.f32.mrb[0].mxu0
        %v3185 = vadd.f32 0.0, %v3184
        %v3186 = vpop.f32.mrb[0].mxu0
        %3187 = vdwg.mxu0
        %v3188 = vld [vmem:[%s45] sm:$0xff]
        %v3189 = vld [vmem:[%s45 + $0x8] sm:$0xff]
        %3190 = vmatprep.subr.mxu0 0.0
        %3191 = vmatpush1.msra.mxu0 %v3188
        %3192 = vmatprep.subr.mxu0 0.0
        %3193 = vmatpush1.msra.mxu0 %v3189
        %3194 = vmatprep.subr.mxu0 0.0
        %3195 = vmatpush1.msra.mxu0 0.0
        %3196 = vmatprep.subr.mxu0 0.0
        %3197 = vmatpush1.msra.mxu0 0.0
        %3198 = vmatprep.subr.mxu0 0.0
        %3199 = vmatpush1.msra.mxu0 0.0
        %3200 = vmatprep.subr.mxu0 0.0
        %3201 = vmatpush1.msra.mxu0 0.0
        %3202 = vmatprep.subr.mxu0 0.0
        %3203 = vmatpush1.msra.mxu0 0.0
        %3204 = vmatprep.subr.mxu0 0.0
        %3205 = vmatpush1.msra.mxu0 0.0
        %3206 = vmatprep.subr.mxu0 0.0
        %3207 = vmatpush1.msra.mxu0 0.0
        %3208 = vmatprep.subr.mxu0 0.0
        %3209 = vmatpush1.msra.mxu0 0.0
        %3210 = vmatprep.subr.mxu0 0.0
        %3211 = vmatpush1.msra.mxu0 0.0
        %3212 = vmatprep.subr.mxu0 0.0
        %3213 = vmatpush1.msra.mxu0 0.0
        %3214 = vmatprep.subr.mxu0 0.0
        %3215 = vmatpush1.msra.mxu0 0.0
        %3216 = vmatprep.subr.mxu0 0.0
        %3217 = vmatpush1.msra.mxu0 0.0
        %3218 = vmatprep.subr.mxu0 0.0
        %3219 = vmatpush1.msra.mxu0 0.0
        %3220 = vmatprep.subr.mxu0 0.0
        %3221 = vmatpush1.msra.mxu0 0.0
        %3222 = vmatprep.subr.mxu0 0.0
        %3223 = vmatpush1.msra.mxu0 0.0
        %3224 = vmatprep.subr.mxu0 0.0
        %3225 = vmatpush1.msra.mxu0 0.0
        %3226 = vmatprep.subr.mxu0 0.0
        %3227 = vmatpush1.msra.mxu0 0.0
        %3228 = vmatprep.subr.mxu0 0.0
        %3229 = vmatpush1.msra.mxu0 0.0
        %3230 = vmatprep.subr.mxu0 0.0
        %3231 = vmatpush1.msra.mxu0 0.0
        %3232 = vmatprep.subr.mxu0 0.0
        %3233 = vmatpush1.msra.mxu0 0.0
        %3234 = vmatprep.subr.mxu0 0.0
        %3235 = vmatpush1.msra.mxu0 0.0
        %3236 = vmatprep.subr.mxu0 0.0
        %3237 = vmatpush1.msra.mxu0 0.0
        %3238 = vmatprep.subr.mxu0 0.0
        %3239 = vmatpush1.msra.mxu0 0.0
        %3240 = vmatprep.subr.mxu0 0.0
        %3241 = vmatpush1.msra.mxu0 0.0
        %3242 = vmatprep.subr.mxu0 0.0
        %3243 = vmatpush1.msra.mxu0 0.0
        %3244 = vmatprep.subr.mxu0 0.0
        %3245 = vmatpush1.msra.mxu0 0.0
        %3246 = vmatprep.subr.mxu0 0.0
        %3247 = vmatpush1.msra.mxu0 0.0
        %3248 = vmatprep.subr.mxu0 0.0
        %3249 = vmatpush1.msra.mxu0 0.0
        %3250 = vmatprep.subr.mxu0 0.0
        %3251 = vmatpush1.msra.mxu0 0.0
        %3252 = vmatprep.subr.mxu0 0.0
        %3253 = vmatpush1.msra.mxu0 0.0
        %3254 = vmatprep.mubr.f32.mxu0 0.0
        %3255 = vmatmul.mubr.f32.gmra.mrb[0].mxu0 %v3092
        %v3256 = vpop.f32.mrb[0].mxu0
        %v3257 = vadd.f32 0.0, %v3256
        %v3258 = vpop.f32.mrb[0].mxu0
        %3259 = vmatprep.mubr.f32.mxu0 0.0
        %3260 = vmatmul.mubr.f32.gmra.mrb[0].mxu0 %v3095
        %v3261 = vpop.f32.mrb[0].mxu0
        %v3262 = vadd.f32 0.0, %v3261
        %v3263 = vpop.f32.mrb[0].mxu0
        %3264 = vmatprep.mubr.f32.mxu0 0.0
        %3265 = vmatmul.mubr.f32.gmra.mrb[0].mxu0 %v3098
        %v3266 = vpop.f32.mrb[0].mxu0
        %v3267 = vadd.f32 0.0, %v3266
        %v3268 = vpop.f32.mrb[0].mxu0
        %3269 = vmatprep.mubr.f32.mxu0 0.0
        %3270 = vmatmul.mubr.f32.gmra.mrb[0].mxu0 %v3101
        %v3271 = vpop.f32.mrb[0].mxu0
        %v3272 = vadd.f32 0.0, %v3271
        %v3273 = vpop.f32.mrb[0].mxu0
        %3274 = vdwg.mxu0
        %3275 = vmatprep.subr.mxu0 0.0
        %3276 = vmatpush1.msra.mxu0 %v3170
        %3277 = vmatprep.subr.mxu0 0.0
        %3278 = vmatpush1.msra.mxu0 %v3175
        %3279 = vmatprep.subr.mxu0 0.0
        %3280 = vmatpush1.msra.mxu0 %v3180
        %3281 = vmatprep.subr.mxu0 0.0
        %3282 = vmatpush1.msra.mxu0 %v3185
        %3283 = vmatprep.subr.mxu0 0.0
        %3284 = vmatpush1.msra.mxu0 0.0
        %3285 = vmatprep.subr.mxu0 0.0
        %3286 = vmatpush1.msra.mxu0 0.0
        %3287 = vmatprep.subr.mxu0 0.0
        %3288 = vmatpush1.msra.mxu0 0.0
        %3289 = vmatprep.subr.mxu0 0.0
        %3290 = vmatpush1.msra.mxu0 0.0
        %3291 = vmatprep.subr.mxu0 0.0
        %3292 = vmatpush1.msra.mxu0 0.0
        %3293 = vmatprep.subr.mxu0 0.0
        %3294 = vmatpush1.msra.mxu0 0.0
        %3295 = vmatprep.subr.mxu0 0.0
        %3296 = vmatpush1.msra.mxu0 0.0
        %3297 = vmatprep.subr.mxu0 0.0
        %3298 = vmatpush1.msra.mxu0 0.0
        %3299 = vmatprep.subr.mxu0 0.0
        %3300 = vmatpush1.msra.mxu0 0.0
        %3301 = vmatprep.subr.mxu0 0.0
        %3302 = vmatpush1.msra.mxu0 0.0
        %3303 = vmatprep.subr.mxu0 0.0
        %3304 = vmatpush1.msra.mxu0 0.0
        %3305 = vmatprep.subr.mxu0 0.0
        %3306 = vmatpush1.msra.mxu0 0.0
        %3307 = vmatprep.subr.mxu0 0.0
        %3308 = vmatpush1.msra.mxu0 0.0
        %3309 = vmatprep.subr.mxu0 0.0
        %3310 = vmatpush1.msra.mxu0 0.0
        %3311 = vmatprep.subr.mxu0 0.0
        %3312 = vmatpush1.msra.mxu0 0.0
        %3313 = vmatprep.subr.mxu0 0.0
        %3314 = vmatpush1.msra.mxu0 0.0
        %3315 = vmatprep.subr.mxu0 0.0
        %3316 = vmatpush1.msra.mxu0 0.0
        %3317 = vmatprep.subr.mxu0 0.0
        %3318 = vmatpush1.msra.mxu0 0.0
        %3319 = vmatprep.subr.mxu0 0.0
        %3320 = vmatpush1.msra.mxu0 0.0
        %3321 = vmatprep.subr.mxu0 0.0
        %3322 = vmatpush1.msra.mxu0 0.0
        %3323 = vmatprep.subr.mxu0 0.0
        %3324 = vmatpush1.msra.mxu0 0.0
        %3325 = vmatprep.subr.mxu0 0.0
        %3326 = vmatpush1.msra.mxu0 0.0
        %3327 = vmatprep.subr.mxu0 0.0
        %3328 = vmatpush1.msra.mxu0 0.0
        %3329 = vmatprep.subr.mxu0 0.0
        %3330 = vmatpush1.msra.mxu0 0.0
        %3331 = vmatprep.subr.mxu0 0.0
        %3332 = vmatpush1.msra.mxu0 0.0
        %3333 = vmatprep.subr.mxu0 0.0
        %3334 = vmatpush1.msra.mxu0 0.0
        %3335 = vmatprep.subr.mxu0 0.0
        %3336 = vmatpush1.msra.mxu0 0.0
        %3337 = vmatprep.subr.mxu0 0.0
        %3338 = vmatpush1.msra.mxu0 0.0
        %3339 = vmatprep.mubr.f32.mxu0 0.0
        %3340 = vmatmul.mubr.f32.gmra.mrb[0].mxu0 %v2978
        %v3341 = vpop.f32.mrb[0].mxu0
        %v3342 = vadd.f32 %v3257, %v3341
        %v3343 = vpop.f32.mrb[0].mxu0
        %3344 = vmatprep.mubr.f32.mxu0 0.0
        %3345 = vmatmul.mubr.f32.gmra.mrb[0].mxu0 %v2981
        %v3346 = vpop.f32.mrb[0].mxu0
        %v3347 = vadd.f32 %v3262, %v3346
        %v3348 = vpop.f32.mrb[0].mxu0
        %3349 = vmatprep.mubr.f32.mxu0 0.0
        %3350 = vmatmul.mubr.f32.gmra.mrb[0].mxu0 %v2984
        %v3351 = vpop.f32.mrb[0].mxu0
        %v3352 = vadd.f32 %v3267, %v3351
        %v3353 = vpop.f32.mrb[0].mxu0
        %3354 = vmatprep.mubr.f32.mxu0 0.0
        %3355 = vmatmul.mubr.f32.gmra.mrb[0].mxu0 %v2987
        %v3356 = vpop.f32.mrb[0].mxu0
        %v3357 = vadd.f32 %v3272, %v3356
        %v3358 = vpop.f32.mrb[0].mxu0
        %3359 = vdwg.mxu0
        %v3360 = vld [vmem:[#allocation14] sm:$0x1]
        %v3362 = vlaneseq
        %v3363 = vshrl.u32 %v3362, 7
        %v3364 = vsub.s32 0, %v3363
        %v3365 = vrot.slane %v3360, %v3364
        %v3367 = vadd.f32 %v3342, %v3365
        %v3368 = vadd.f32 %v3347, %v3365
        %v3369 = vadd.f32 %v3352, %v3365
        %v3370 = vadd.f32 %v3357, %v3365
        %v3371 = vmax.f32 %v3367, 0.0
        %v3372 = vmax.f32 %v3368, 0.0
        %v3373 = vmax.f32 %v3369, 0.0
        %v3374 = vmax.f32 %v3370, 0.0
        %v3375 = vsel %vm1949, %v3371, 0.0
        %v3376 = vsel %vm1949, %v3372, 0.0
        %v3377 = vadd.f32 %v3375, %v3376
        %v3378 = vsel %vm1949, %v3373, 0.0
        %v3379 = vadd.f32 %v3377, %v3378
        %v3380 = vsel %vm1949, %v3374, 0.0
        %v3381 = vadd.f32 %v3379, %v3380
        %v3382 = vrot.slane %v3381, 4
        %v3383 = vadd.f32 %v3381, %v3382
        %v3384 = vrot.slane %v3383, 2
        %v3385 = vadd.f32 %v3383, %v3384
        %v3386 = vrot.slane %v3385, 1
        %v3387 = vadd.f32 %v3385, %v3386
        %v3388 = vmul.f32 %v3387, %v1632
        %v3389 = vsub.f32 %v3371, %v3388
        %v3390 = vsub.f32 %v3372, %v3388
        %v3391 = vsub.f32 %v3373, %v3388
        %v3392 = vsub.f32 %v3374, %v3388
        %v3393 = vmul.f32 %v3389, %v3389
        %v3394 = vmul.f32 %v3390, %v3390
        %v3395 = vmul.f32 %v3391, %v3391
        %v3396 = vmul.f32 %v3392, %v3392
        %v3397 = vsel %vm1949, %v3393, 0.0
        %v3398 = vsel %vm1949, %v3394, 0.0
        %v3399 = vadd.f32 %v3397, %v3398
        %v3400 = vsel %vm1949, %v3395, 0.0
        %v3401 = vadd.f32 %v3399, %v3400
        %v3402 = vsel %vm1949, %v3396, 0.0
        %v3403 = vadd.f32 %v3401, %v3402
        %v3404 = vrot.slane %v3403, 4
        %v3405 = vadd.f32 %v3403, %v3404
        %v3406 = vrot.slane %v3405, 2
        %v3407 = vadd.f32 %v3405, %v3406
        %v3408 = vrot.slane %v3407, 1
        %v3409 = vadd.f32 %v3407, %v3408
        %v3410 = vmul.f32 %v3409, %v1632
        %v3411 = vadd.f32 %v3410, 1e-05
        %v3412 = vrsqrt.pop %v3411
        %v3413 = vmul.f32 %v3389, %v3412
        %v3414 = vmul.f32 %v3390, %v3412
        %v3415 = vmul.f32 %v3391, %v3412
        %v3416 = vmul.f32 %v3392, %v3412
        %v3417 = vld [vmem:[%s19] sm:$0xff]
        %v3418 = vld [vmem:[%s19 + $0x8] sm:$0xff]
        %v3420 = vsel %vm1796, %v3417, 0
        %v3423 = vsel %vm1796, %v3418, 0
        %3425 = vmatprep.subr.mxu0 0.0
        %3426 = vmatpush1.msra.mxu0 %v3413
        %3427 = vmatprep.subr.mxu0 0.0
        %3428 = vmatpush1.msra.mxu0 %v3414
        %3429 = vmatprep.subr.mxu0 0.0
        %3430 = vmatpush1.msra.mxu0 %v3415
        %3431 = vmatprep.subr.mxu0 0.0
        %3432 = vmatpush1.msra.mxu0 %v3416
        %3433 = vmatprep.subr.mxu0 0.0
        %3434 = vmatpush1.msra.mxu0 0.0
        %3435 = vmatprep.subr.mxu0 0.0
        %3436 = vmatpush1.msra.mxu0 0.0
        %3437 = vmatprep.subr.mxu0 0.0
        %3438 = vmatpush1.msra.mxu0 0.0
        %3439 = vmatprep.subr.mxu0 0.0
        %3440 = vmatpush1.msra.mxu0 0.0
        %3441 = vmatprep.subr.mxu0 0.0
        %3442 = vmatpush1.msra.mxu0 0.0
        %3443 = vmatprep.subr.mxu0 0.0
        %3444 = vmatpush1.msra.mxu0 0.0
        %3445 = vmatprep.subr.mxu0 0.0
        %3446 = vmatpush1.msra.mxu0 0.0
        %3447 = vmatprep.subr.mxu0 0.0
        %3448 = vmatpush1.msra.mxu0 0.0
        %3449 = vmatprep.subr.mxu0 0.0
        %3450 = vmatpush1.msra.mxu0 0.0
        %3451 = vmatprep.subr.mxu0 0.0
        %3452 = vmatpush1.msra.mxu0 0.0
        %3453 = vmatprep.subr.mxu0 0.0
        %3454 = vmatpush1.msra.mxu0 0.0
        %3455 = vmatprep.subr.mxu0 0.0
        %3456 = vmatpush1.msra.mxu0 0.0
        %3457 = vmatprep.subr.mxu0 0.0
        %3458 = vmatpush1.msra.mxu0 0.0
        %3459 = vmatprep.subr.mxu0 0.0
        %3460 = vmatpush1.msra.mxu0 0.0
        %3461 = vmatprep.subr.mxu0 0.0
        %3462 = vmatpush1.msra.mxu0 0.0
        %3463 = vmatprep.subr.mxu0 0.0
        %3464 = vmatpush1.msra.mxu0 0.0
        %3465 = vmatprep.subr.mxu0 0.0
        %3466 = vmatpush1.msra.mxu0 0.0
        %3467 = vmatprep.subr.mxu0 0.0
        %3468 = vmatpush1.msra.mxu0 0.0
        %3469 = vmatprep.subr.mxu0 0.0
        %3470 = vmatpush1.msra.mxu0 0.0
        %3471 = vmatprep.subr.mxu0 0.0
        %3472 = vmatpush1.msra.mxu0 0.0
        %3473 = vmatprep.subr.mxu0 0.0
        %3474 = vmatpush1.msra.mxu0 0.0
        %3475 = vmatprep.subr.mxu0 0.0
        %3476 = vmatpush1.msra.mxu0 0.0
        %3477 = vmatprep.subr.mxu0 0.0
        %3478 = vmatpush1.msra.mxu0 0.0
        %3479 = vmatprep.subr.mxu0 0.0
        %3480 = vmatpush1.msra.mxu0 0.0
        %3481 = vmatprep.subr.mxu0 0.0
        %3482 = vmatpush1.msra.mxu0 0.0
        %3483 = vmatprep.subr.mxu0 0.0
        %3484 = vmatpush1.msra.mxu0 0.0
        %3485 = vmatprep.subr.mxu0 0.0
        %3486 = vmatpush1.msra.mxu0 0.0
        %3487 = vmatprep.subr.mxu0 0.0
        %3488 = vmatpush1.msra.mxu0 0.0
        %3489 = vmatprep.mubr.f32.mxu0 0.0
        %3490 = vmatmul.mubr.f32.gmra.mrb[0].mxu0 %v3420
        %v3491 = vpop.f32.mrb[0].mxu0
        %v3492 = vadd.f32 0.0, %v3491
        %v3493 = vpop.f32.mrb[0].mxu0
        %3494 = vmatprep.mubr.f32.mxu0 0.0
        %3495 = vmatmul.mubr.f32.gmra.mrb[0].mxu0 %v3423
        %v3496 = vpop.f32.mrb[0].mxu0
        %v3497 = vadd.f32 0.0, %v3496
        %v3498 = vpop.f32.mrb[0].mxu0
        %3499 = vdwg.mxu0
        %v3500 = vld [vmem:[%s49] sm:$0xff]
        %v3501 = vld [vmem:[%s49 + $0x8] sm:$0xff]
        %v3503 = vsel %vm1949, %v3492, 0
        %v3506 = vsel %vm1949, %v3497, 0
        %3508 = vmatprep.subr.mxu0 0.0
        %3509 = vmatpush1.msra.mxu0 %v3500
        %3510 = vmatprep.subr.mxu0 0.0
        %3511 = vmatpush1.msra.mxu0 %v3501
        %3512 = vmatprep.subr.mxu0 0.0
        %3513 = vmatpush1.msra.mxu0 0.0
        %3514 = vmatprep.subr.mxu0 0.0
        %3515 = vmatpush1.msra.mxu0 0.0
        %3516 = vmatprep.subr.mxu0 0.0
        %3517 = vmatpush1.msra.mxu0 0.0
        %3518 = vmatprep.subr.mxu0 0.0
        %3519 = vmatpush1.msra.mxu0 0.0
        %3520 = vmatprep.subr.mxu0 0.0
        %3521 = vmatpush1.msra.mxu0 0.0
        %3522 = vmatprep.subr.mxu0 0.0
        %3523 = vmatpush1.msra.mxu0 0.0
        %3524 = vmatprep.subr.mxu0 0.0
        %3525 = vmatpush1.msra.mxu0 0.0
        %3526 = vmatprep.subr.mxu0 0.0
        %3527 = vmatpush1.msra.mxu0 0.0
        %3528 = vmatprep.subr.mxu0 0.0
        %3529 = vmatpush1.msra.mxu0 0.0
        %3530 = vmatprep.subr.mxu0 0.0
        %3531 = vmatpush1.msra.mxu0 0.0
        %3532 = vmatprep.subr.mxu0 0.0
        %3533 = vmatpush1.msra.mxu0 0.0
        %3534 = vmatprep.subr.mxu0 0.0
        %3535 = vmatpush1.msra.mxu0 0.0
        %3536 = vmatprep.subr.mxu0 0.0
        %3537 = vmatpush1.msra.mxu0 0.0
        %3538 = vmatprep.subr.mxu0 0.0
        %3539 = vmatpush1.msra.mxu0 0.0
        %3540 = vmatprep.subr.mxu0 0.0
        %3541 = vmatpush1.msra.mxu0 0.0
        %3542 = vmatprep.subr.mxu0 0.0
        %3543 = vmatpush1.msra.mxu0 0.0
        %3544 = vmatprep.subr.mxu0 0.0
        %3545 = vmatpush1.msra.mxu0 0.0
        %3546 = vmatprep.subr.mxu0 0.0
        %3547 = vmatpush1.msra.mxu0 0.0
        %3548 = vmatprep.subr.mxu0 0.0
        %3549 = vmatpush1.msra.mxu0 0.0
        %3550 = vmatprep.subr.mxu0 0.0
        %3551 = vmatpush1.msra.mxu0 0.0
        %3552 = vmatprep.subr.mxu0 0.0
        %3553 = vmatpush1.msra.mxu0 0.0
        %3554 = vmatprep.subr.mxu0 0.0
        %3555 = vmatpush1.msra.mxu0 0.0
        %3556 = vmatprep.subr.mxu0 0.0
        %3557 = vmatpush1.msra.mxu0 0.0
        %3558 = vmatprep.subr.mxu0 0.0
        %3559 = vmatpush1.msra.mxu0 0.0
        %3560 = vmatprep.subr.mxu0 0.0
        %3561 = vmatpush1.msra.mxu0 0.0
        %3562 = vmatprep.subr.mxu0 0.0
        %3563 = vmatpush1.msra.mxu0 0.0
        %3564 = vmatprep.subr.mxu0 0.0
        %3565 = vmatpush1.msra.mxu0 0.0
        %3566 = vmatprep.subr.mxu0 0.0
        %3567 = vmatpush1.msra.mxu0 0.0
        %3568 = vmatprep.subr.mxu0 0.0
        %3569 = vmatpush1.msra.mxu0 0.0
        %3570 = vmatprep.subr.mxu0 0.0
        %3571 = vmatpush1.msra.mxu0 0.0
        %3572 = vmatprep.mubr.f32.mxu0 0.0
        %3573 = vmatmul.mubr.f32.gmra.mrb[0].mxu0 %v3503
        %v3574 = vpop.f32.mrb[0].mxu0
        %v3575 = vadd.f32 0.0, %v3574
        %v3576 = vpop.f32.mrb[0].mxu0
        %3577 = vmatprep.mubr.f32.mxu0 0.0
        %3578 = vmatmul.mubr.f32.gmra.mrb[0].mxu0 %v3506
        %v3579 = vpop.f32.mrb[0].mxu0
        %v3580 = vadd.f32 0.0, %v3579
        %v3581 = vpop.f32.mrb[0].mxu0
        %3582 = vdwg.mxu0
        %v3583 = vld [vmem:[%s13] sm:$0xff]
        %v3584 = vld [vmem:[%s13 + $0x8] sm:$0xff]
        %v3585 = vld [vmem:[%s51] sm:$0xff]
        %v3586 = vld [vmem:[%s51 + $0x8] sm:$0xff]
        %3587 = vmatprep.subr.mxu0 0.0
        %3588 = vmatpush1.msra.mxu0 %v3585
        %3589 = vmatprep.subr.mxu0 0.0
        %3590 = vmatpush1.msra.mxu0 %v3586
        %3591 = vmatprep.subr.mxu0 0.0
        %3592 = vmatpush1.msra.mxu0 0.0
        %3593 = vmatprep.subr.mxu0 0.0
        %3594 = vmatpush1.msra.mxu0 0.0
        %3595 = vmatprep.subr.mxu0 0.0
        %3596 = vmatpush1.msra.mxu0 0.0
        %3597 = vmatprep.subr.mxu0 0.0
        %3598 = vmatpush1.msra.mxu0 0.0
        %3599 = vmatprep.subr.mxu0 0.0
        %3600 = vmatpush1.msra.mxu0 0.0
        %3601 = vmatprep.subr.mxu0 0.0
        %3602 = vmatpush1.msra.mxu0 0.0
        %3603 = vmatprep.subr.mxu0 0.0
        %3604 = vmatpush1.msra.mxu0 0.0
        %3605 = vmatprep.subr.mxu0 0.0
        %3606 = vmatpush1.msra.mxu0 0.0
        %3607 = vmatprep.subr.mxu0 0.0
        %3608 = vmatpush1.msra.mxu0 0.0
        %3609 = vmatprep.subr.mxu0 0.0
        %3610 = vmatpush1.msra.mxu0 0.0
        %3611 = vmatprep.subr.mxu0 0.0
        %3612 = vmatpush1.msra.mxu0 0.0
        %3613 = vmatprep.subr.mxu0 0.0
        %3614 = vmatpush1.msra.mxu0 0.0
        %3615 = vmatprep.subr.mxu0 0.0
        %3616 = vmatpush1.msra.mxu0 0.0
        %3617 = vmatprep.subr.mxu0 0.0
        %3618 = vmatpush1.msra.mxu0 0.0
        %3619 = vmatprep.subr.mxu0 0.0
        %3620 = vmatpush1.msra.mxu0 0.0
        %3621 = vmatprep.subr.mxu0 0.0
        %3622 = vmatpush1.msra.mxu0 0.0
        %3623 = vmatprep.subr.mxu0 0.0
        %3624 = vmatpush1.msra.mxu0 0.0
        %3625 = vmatprep.subr.mxu0 0.0
        %3626 = vmatpush1.msra.mxu0 0.0
        %3627 = vmatprep.subr.mxu0 0.0
        %3628 = vmatpush1.msra.mxu0 0.0
        %3629 = vmatprep.subr.mxu0 0.0
        %3630 = vmatpush1.msra.mxu0 0.0
        %3631 = vmatprep.subr.mxu0 0.0
        %3632 = vmatpush1.msra.mxu0 0.0
        %3633 = vmatprep.subr.mxu0 0.0
        %3634 = vmatpush1.msra.mxu0 0.0
        %3635 = vmatprep.subr.mxu0 0.0
        %3636 = vmatpush1.msra.mxu0 0.0
        %3637 = vmatprep.subr.mxu0 0.0
        %3638 = vmatpush1.msra.mxu0 0.0
        %3639 = vmatprep.subr.mxu0 0.0
        %3640 = vmatpush1.msra.mxu0 0.0
        %3641 = vmatprep.subr.mxu0 0.0
        %3642 = vmatpush1.msra.mxu0 0.0
        %3643 = vmatprep.subr.mxu0 0.0
        %3644 = vmatpush1.msra.mxu0 0.0
        %3645 = vmatprep.subr.mxu0 0.0
        %3646 = vmatpush1.msra.mxu0 0.0
        %3647 = vmatprep.subr.mxu0 0.0
        %3648 = vmatpush1.msra.mxu0 0.0
        %3649 = vmatprep.subr.mxu0 0.0
        %3650 = vmatpush1.msra.mxu0 0.0
        %3651 = vmatprep.mubr.f32.mxu0 0.0
        %3652 = vmatmul.mubr.f32.gmra.mrb[0].mxu0 %v3503
        %v3653 = vpop.f32.mrb[0].mxu0
        %v3654 = vadd.f32 0.0, %v3653
        %v3655 = vpop.f32.mrb[0].mxu0
        %3656 = vmatprep.mubr.f32.mxu0 0.0
        %3657 = vmatmul.mubr.f32.gmra.mrb[0].mxu0 %v3506
        %v3658 = vpop.f32.mrb[0].mxu0
        %v3659 = vadd.f32 0.0, %v3658
        %v3660 = vpop.f32.mrb[0].mxu0
        %3661 = vdwg.mxu0
        %v3663 = vsel %vm1949, %v3583, 0
        %v3666 = vsel %vm1949, %v3584, 0
        %3668 = vmatprep.subr.mxu0 0.0
        %3669 = vmatpush1.msra.mxu0 %v3575
        %3670 = vmatprep.subr.mxu0 0.0
        %3671 = vmatpush1.msra.mxu0 %v3580
        %3672 = vmatprep.subr.mxu0 0.0
        %3673 = vmatpush1.msra.mxu0 0.0
        %3674 = vmatprep.subr.mxu0 0.0
        %3675 = vmatpush1.msra.mxu0 0.0
        %3676 = vmatprep.subr.mxu0 0.0
        %3677 = vmatpush1.msra.mxu0 0.0
        %3678 = vmatprep.subr.mxu0 0.0
        %3679 = vmatpush1.msra.mxu0 0.0
        %3680 = vmatprep.subr.mxu0 0.0
        %3681 = vmatpush1.msra.mxu0 0.0
        %3682 = vmatprep.subr.mxu0 0.0
        %3683 = vmatpush1.msra.mxu0 0.0
        %3684 = vmatprep.subr.mxu0 0.0
        %3685 = vmatpush1.msra.mxu0 0.0
        %3686 = vmatprep.subr.mxu0 0.0
        %3687 = vmatpush1.msra.mxu0 0.0
        %3688 = vmatprep.subr.mxu0 0.0
        %3689 = vmatpush1.msra.mxu0 0.0
        %3690 = vmatprep.subr.mxu0 0.0
        %3691 = vmatpush1.msra.mxu0 0.0
        %3692 = vmatprep.subr.mxu0 0.0
        %3693 = vmatpush1.msra.mxu0 0.0
        %3694 = vmatprep.subr.mxu0 0.0
        %3695 = vmatpush1.msra.mxu0 0.0
        %3696 = vmatprep.subr.mxu0 0.0
        %3697 = vmatpush1.msra.mxu0 0.0
        %3698 = vmatprep.subr.mxu0 0.0
        %3699 = vmatpush1.msra.mxu0 0.0
        %3700 = vmatprep.subr.mxu0 0.0
        %3701 = vmatpush1.msra.mxu0 0.0
        %3702 = vmatprep.subr.mxu0 0.0
        %3703 = vmatpush1.msra.mxu0 0.0
        %3704 = vmatprep.subr.mxu0 0.0
        %3705 = vmatpush1.msra.mxu0 0.0
        %3706 = vmatprep.subr.mxu0 0.0
        %3707 = vmatpush1.msra.mxu0 0.0
        %3708 = vmatprep.subr.mxu0 0.0
        %3709 = vmatpush1.msra.mxu0 0.0
        %3710 = vmatprep.subr.mxu0 0.0
        %3711 = vmatpush1.msra.mxu0 0.0
        %3712 = vmatprep.subr.mxu0 0.0
        %3713 = vmatpush1.msra.mxu0 0.0
        %3714 = vmatprep.subr.mxu0 0.0
        %3715 = vmatpush1.msra.mxu0 0.0
        %3716 = vmatprep.subr.mxu0 0.0
        %3717 = vmatpush1.msra.mxu0 0.0
        %3718 = vmatprep.subr.mxu0 0.0
        %3719 = vmatpush1.msra.mxu0 0.0
        %3720 = vmatprep.subr.mxu0 0.0
        %3721 = vmatpush1.msra.mxu0 0.0
        %3722 = vmatprep.subr.mxu0 0.0
        %3723 = vmatpush1.msra.mxu0 0.0
        %3724 = vmatprep.subr.mxu0 0.0
        %3725 = vmatpush1.msra.mxu0 0.0
        %3726 = vmatprep.subr.mxu0 0.0
        %3727 = vmatpush1.msra.mxu0 0.0
        %3728 = vmatprep.subr.mxu0 0.0
        %3729 = vmatpush1.msra.mxu0 0.0
        %3730 = vmatprep.subr.mxu0 0.0
        %3731 = vmatpush1.msra.mxu0 0.0
        %3732 = vmatprep.mubr.f32.mxu0 0.0
        %3733 = vmatmul.mubr.f32.gmra.mrb[0].mxu0 %v3663
        %v3734 = vpop.f32.mrb[0].mxu0
        %v3735 = vadd.f32 %v3654, %v3734
        %v3736 = vpop.f32.mrb[0].mxu0
        %3737 = vmatprep.mubr.f32.mxu0 0.0
        %3738 = vmatmul.mubr.f32.gmra.mrb[0].mxu0 %v3666
        %v3739 = vpop.f32.mrb[0].mxu0
        %v3740 = vadd.f32 %v3659, %v3739
        %v3741 = vpop.f32.mrb[0].mxu0
        %3742 = vdwg.mxu0
        %v3743 = vld [vmem:[#allocation16] sm:$0x1]
        %v3745 = vlaneseq
        %v3746 = vshrl.u32 %v3745, 7
        %v3747 = vsub.s32 0, %v3746
        %v3748 = vrot.slane %v3743, %v3747
        %v3750 = vadd.f32 %v3735, %v3748
        %v3751 = vadd.f32 %v3740, %v3748
        %v3752 = vmax.f32 %v3750, 0.0
        %v3753 = vmax.f32 %v3751, 0.0
        %v3754 = vld [vmem:[#allocation17] sm:$0xff]
        %v3755 = vld [vmem:[#allocation17 + $0x8] sm:$0xff]
        %v3757 = vsel %vm1949, %v3752, 0
        %v3760 = vsel %vm1949, %v3753, 0
        %3762 = vmatprep.subr.mxu0 0.0
        %3763 = vmatpush1.msra.mxu0 %v3754
        %3764 = vmatprep.subr.mxu0 0.0
        %3765 = vmatpush1.msra.mxu0 %v3755
        %3766 = vmatprep.subr.mxu0 0.0
        %3767 = vmatpush1.msra.mxu0 0.0
        %3768 = vmatprep.subr.mxu0 0.0
        %3769 = vmatpush1.msra.mxu0 0.0
        %3770 = vmatprep.subr.mxu0 0.0
        %3771 = vmatpush1.msra.mxu0 0.0
        %3772 = vmatprep.subr.mxu0 0.0
        %3773 = vmatpush1.msra.mxu0 0.0
        %3774 = vmatprep.subr.mxu0 0.0
        %3775 = vmatpush1.msra.mxu0 0.0
        %3776 = vmatprep.subr.mxu0 0.0
        %3777 = vmatpush1.msra.mxu0 0.0
        %3778 = vmatprep.subr.mxu0 0.0
        %3779 = vmatpush1.msra.mxu0 0.0
        %3780 = vmatprep.subr.mxu0 0.0
        %3781 = vmatpush1.msra.mxu0 0.0
        %3782 = vmatprep.subr.mxu0 0.0
        %3783 = vmatpush1.msra.mxu0 0.0
        %3784 = vmatprep.subr.mxu0 0.0
        %3785 = vmatpush1.msra.mxu0 0.0
        %3786 = vmatprep.subr.mxu0 0.0
        %3787 = vmatpush1.msra.mxu0 0.0
        %3788 = vmatprep.subr.mxu0 0.0
        %3789 = vmatpush1.msra.mxu0 0.0
        %3790 = vmatprep.subr.mxu0 0.0
        %3791 = vmatpush1.msra.mxu0 0.0
        %3792 = vmatprep.subr.mxu0 0.0
        %3793 = vmatpush1.msra.mxu0 0.0
        %3794 = vmatprep.subr.mxu0 0.0
        %3795 = vmatpush1.msra.mxu0 0.0
        %3796 = vmatprep.subr.mxu0 0.0
        %3797 = vmatpush1.msra.mxu0 0.0
        %3798 = vmatprep.subr.mxu0 0.0
        %3799 = vmatpush1.msra.mxu0 0.0
        %3800 = vmatprep.subr.mxu0 0.0
        %3801 = vmatpush1.msra.mxu0 0.0
        %3802 = vmatprep.subr.mxu0 0.0
        %3803 = vmatpush1.msra.mxu0 0.0
        %3804 = vmatprep.subr.mxu0 0.0
        %3805 = vmatpush1.msra.mxu0 0.0
        %3806 = vmatprep.subr.mxu0 0.0
        %3807 = vmatpush1.msra.mxu0 0.0
        %3808 = vmatprep.subr.mxu0 0.0
        %3809 = vmatpush1.msra.mxu0 0.0
        %3810 = vmatprep.subr.mxu0 0.0
        %3811 = vmatpush1.msra.mxu0 0.0
        %3812 = vmatprep.subr.mxu0 0.0
        %3813 = vmatpush1.msra.mxu0 0.0
        %3814 = vmatprep.subr.mxu0 0.0
        %3815 = vmatpush1.msra.mxu0 0.0
        %3816 = vmatprep.subr.mxu0 0.0
        %3817 = vmatpush1.msra.mxu0 0.0
        %3818 = vmatprep.subr.mxu0 0.0
        %3819 = vmatpush1.msra.mxu0 0.0
        %3820 = vmatprep.subr.mxu0 0.0
        %3821 = vmatpush1.msra.mxu0 0.0
        %3822 = vmatprep.subr.mxu0 0.0
        %3823 = vmatpush1.msra.mxu0 0.0
        %3824 = vmatprep.subr.mxu0 0.0
        %3825 = vmatpush1.msra.mxu0 0.0
        %3826 = vmatprep.mubr.f32.mxu0 0.0
        %3827 = vmatmul.mubr.f32.gmra.mrb[0].mxu0 %v3757
        %v3828 = vpop.f32.mrb[0].mxu0
        %v3829 = vadd.f32 0.0, %v3828
        %v3830 = vpop.f32.mrb[0].mxu0
        %3831 = vmatprep.mubr.f32.mxu0 0.0
        %3832 = vmatmul.mubr.f32.gmra.mrb[0].mxu0 %v3760
        %v3833 = vpop.f32.mrb[0].mxu0
        %v3834 = vadd.f32 0.0, %v3833
        %v3835 = vpop.f32.mrb[0].mxu0
        %3836 = vdwg.mxu0
        %v3837 = vld [vmem:[%s57] sm:$0xff]
        %v3838 = vld [vmem:[%s57 + $0x8] sm:$0xff]
        %3839 = vmatprep.subr.mxu0 0.0
        %3840 = vmatpush1.msra.mxu0 %v3837
        %3841 = vmatprep.subr.mxu0 0.0
        %3842 = vmatpush1.msra.mxu0 %v3838
        %3843 = vmatprep.subr.mxu0 0.0
        %3844 = vmatpush1.msra.mxu0 0.0
        %3845 = vmatprep.subr.mxu0 0.0
        %3846 = vmatpush1.msra.mxu0 0.0
        %3847 = vmatprep.subr.mxu0 0.0
        %3848 = vmatpush1.msra.mxu0 0.0
        %3849 = vmatprep.subr.mxu0 0.0
        %3850 = vmatpush1.msra.mxu0 0.0
        %3851 = vmatprep.subr.mxu0 0.0
        %3852 = vmatpush1.msra.mxu0 0.0
        %3853 = vmatprep.subr.mxu0 0.0
        %3854 = vmatpush1.msra.mxu0 0.0
        %3855 = vmatprep.subr.mxu0 0.0
        %3856 = vmatpush1.msra.mxu0 0.0
        %3857 = vmatprep.subr.mxu0 0.0
        %3858 = vmatpush1.msra.mxu0 0.0
        %3859 = vmatprep.subr.mxu0 0.0
        %3860 = vmatpush1.msra.mxu0 0.0
        %3861 = vmatprep.subr.mxu0 0.0
        %3862 = vmatpush1.msra.mxu0 0.0
        %3863 = vmatprep.subr.mxu0 0.0
        %3864 = vmatpush1.msra.mxu0 0.0
        %3865 = vmatprep.subr.mxu0 0.0
        %3866 = vmatpush1.msra.mxu0 0.0
        %3867 = vmatprep.subr.mxu0 0.0
        %3868 = vmatpush1.msra.mxu0 0.0
        %3869 = vmatprep.subr.mxu0 0.0
        %3870 = vmatpush1.msra.mxu0 0.0
        %3871 = vmatprep.subr.mxu0 0.0
        %3872 = vmatpush1.msra.mxu0 0.0
        %3873 = vmatprep.subr.mxu0 0.0
        %3874 = vmatpush1.msra.mxu0 0.0
        %3875 = vmatprep.subr.mxu0 0.0
        %3876 = vmatpush1.msra.mxu0 0.0
        %3877 = vmatprep.subr.mxu0 0.0
        %3878 = vmatpush1.msra.mxu0 0.0
        %3879 = vmatprep.subr.mxu0 0.0
        %3880 = vmatpush1.msra.mxu0 0.0
        %3881 = vmatprep.subr.mxu0 0.0
        %3882 = vmatpush1.msra.mxu0 0.0
        %3883 = vmatprep.subr.mxu0 0.0
        %3884 = vmatpush1.msra.mxu0 0.0
        %3885 = vmatprep.subr.mxu0 0.0
        %3886 = vmatpush1.msra.mxu0 0.0
        %3887 = vmatprep.subr.mxu0 0.0
        %3888 = vmatpush1.msra.mxu0 0.0
        %3889 = vmatprep.subr.mxu0 0.0
        %3890 = vmatpush1.msra.mxu0 0.0
        %3891 = vmatprep.subr.mxu0 0.0
        %3892 = vmatpush1.msra.mxu0 0.0
        %3893 = vmatprep.subr.mxu0 0.0
        %3894 = vmatpush1.msra.mxu0 0.0
        %3895 = vmatprep.subr.mxu0 0.0
        %3896 = vmatpush1.msra.mxu0 0.0
        %3897 = vmatprep.subr.mxu0 0.0
        %3898 = vmatpush1.msra.mxu0 0.0
        %3899 = vmatprep.subr.mxu0 0.0
        %3900 = vmatpush1.msra.mxu0 0.0
        %3901 = vmatprep.subr.mxu0 0.0
        %3902 = vmatpush1.msra.mxu0 0.0
        %3903 = vmatprep.mubr.f32.mxu0 0.0
        %3904 = vmatmul.mubr.f32.gmra.mrb[0].mxu0 %v3757
        %v3905 = vpop.f32.mrb[0].mxu0
        %v3906 = vadd.f32 0.0, %v3905
        %v3907 = vpop.f32.mrb[0].mxu0
        %3908 = vmatprep.mubr.f32.mxu0 0.0
        %3909 = vmatmul.mubr.f32.gmra.mrb[0].mxu0 %v3760
        %v3910 = vpop.f32.mrb[0].mxu0
        %v3911 = vadd.f32 0.0, %v3910
        %v3912 = vpop.f32.mrb[0].mxu0
        %3913 = vdwg.mxu0
        %3914 = vmatprep.subr.mxu0 0.0
        %3915 = vmatpush1.msra.mxu0 %v3829
        %3916 = vmatprep.subr.mxu0 0.0
        %3917 = vmatpush1.msra.mxu0 %v3834
        %3918 = vmatprep.subr.mxu0 0.0
        %3919 = vmatpush1.msra.mxu0 0.0
        %3920 = vmatprep.subr.mxu0 0.0
        %3921 = vmatpush1.msra.mxu0 0.0
        %3922 = vmatprep.subr.mxu0 0.0
        %3923 = vmatpush1.msra.mxu0 0.0
        %3924 = vmatprep.subr.mxu0 0.0
        %3925 = vmatpush1.msra.mxu0 0.0
        %3926 = vmatprep.subr.mxu0 0.0
        %3927 = vmatpush1.msra.mxu0 0.0
        %3928 = vmatprep.subr.mxu0 0.0
        %3929 = vmatpush1.msra.mxu0 0.0
        %3930 = vmatprep.subr.mxu0 0.0
        %3931 = vmatpush1.msra.mxu0 0.0
        %3932 = vmatprep.subr.mxu0 0.0
        %3933 = vmatpush1.msra.mxu0 0.0
        %3934 = vmatprep.subr.mxu0 0.0
        %3935 = vmatpush1.msra.mxu0 0.0
        %3936 = vmatprep.subr.mxu0 0.0
        %3937 = vmatpush1.msra.mxu0 0.0
        %3938 = vmatprep.subr.mxu0 0.0
        %3939 = vmatpush1.msra.mxu0 0.0
        %3940 = vmatprep.subr.mxu0 0.0
        %3941 = vmatpush1.msra.mxu0 0.0
        %3942 = vmatprep.subr.mxu0 0.0
        %3943 = vmatpush1.msra.mxu0 0.0
        %3944 = vmatprep.subr.mxu0 0.0
        %3945 = vmatpush1.msra.mxu0 0.0
        %3946 = vmatprep.subr.mxu0 0.0
        %3947 = vmatpush1.msra.mxu0 0.0
        %3948 = vmatprep.subr.mxu0 0.0
        %3949 = vmatpush1.msra.mxu0 0.0
        %3950 = vmatprep.subr.mxu0 0.0
        %3951 = vmatpush1.msra.mxu0 0.0
        %3952 = vmatprep.subr.mxu0 0.0
        %3953 = vmatpush1.msra.mxu0 0.0
        %3954 = vmatprep.subr.mxu0 0.0
        %3955 = vmatpush1.msra.mxu0 0.0
        %3956 = vmatprep.subr.mxu0 0.0
        %3957 = vmatpush1.msra.mxu0 0.0
        %3958 = vmatprep.subr.mxu0 0.0
        %3959 = vmatpush1.msra.mxu0 0.0
        %3960 = vmatprep.subr.mxu0 0.0
        %3961 = vmatpush1.msra.mxu0 0.0
        %3962 = vmatprep.subr.mxu0 0.0
        %3963 = vmatpush1.msra.mxu0 0.0
        %3964 = vmatprep.subr.mxu0 0.0
        %3965 = vmatpush1.msra.mxu0 0.0
        %3966 = vmatprep.subr.mxu0 0.0
        %3967 = vmatpush1.msra.mxu0 0.0
        %3968 = vmatprep.subr.mxu0 0.0
        %3969 = vmatpush1.msra.mxu0 0.0
        %3970 = vmatprep.subr.mxu0 0.0
        %3971 = vmatpush1.msra.mxu0 0.0
        %3972 = vmatprep.subr.mxu0 0.0
        %3973 = vmatpush1.msra.mxu0 0.0
        %3974 = vmatprep.subr.mxu0 0.0
        %3975 = vmatpush1.msra.mxu0 0.0
        %3976 = vmatprep.subr.mxu0 0.0
        %3977 = vmatpush1.msra.mxu0 0.0
        %3978 = vmatprep.mubr.f32.mxu0 0.0
        %3979 = vmatmul.mubr.f32.gmra.mrb[0].mxu0 %v3663
        %v3980 = vpop.f32.mrb[0].mxu0
        %v3981 = vadd.f32 %v3906, %v3980
        %v3982 = vpop.f32.mrb[0].mxu0
        %3983 = vmatprep.mubr.f32.mxu0 0.0
        %3984 = vmatmul.mubr.f32.gmra.mrb[0].mxu0 %v3666
        %v3985 = vpop.f32.mrb[0].mxu0
        %v3986 = vadd.f32 %v3911, %v3985
        %v3987 = vpop.f32.mrb[0].mxu0
        %3988 = vdwg.mxu0
        %v3989 = vld [vmem:[#allocation19] sm:$0x1]
        %v3991 = vlaneseq
        %v3992 = vshrl.u32 %v3991, 7
        %v3993 = vsub.s32 0, %v3992
        %v3994 = vrot.slane %v3989, %v3993
        %v3996 = vadd.f32 %v3981, %v3994
        %v3997 = vadd.f32 %v3986, %v3994
        %v3998 = vmax.f32 %v3996, 0.0
        %v3999 = vmax.f32 %v3997, 0.0
        %v4000 = vsel %vm1949, %v3998, 0.0
        %v4001 = vsel %vm1949, %v3999, 0.0
        %v4002 = vadd.f32 %v4000, %v4001
        %v4003 = vrot.slane %v4002, 4
        %v4004 = vadd.f32 %v4002, %v4003
        %v4005 = vrot.slane %v4004, 2
        %v4006 = vadd.f32 %v4004, %v4005
        %v4007 = vrot.slane %v4006, 1
        %v4008 = vadd.f32 %v4006, %v4007
        %v4009 = vrcp.pop 16.0
        %v4010 = vmul.f32 %v4008, %v4009
        %v4011 = vsub.f32 %v3998, %v4010
        %v4012 = vsub.f32 %v3999, %v4010
        %v4013 = vmul.f32 %v4011, %v4011
        %v4014 = vmul.f32 %v4012, %v4012
        %v4015 = vsel %vm1949, %v4013, 0.0
        %v4016 = vsel %vm1949, %v4014, 0.0
        %v4017 = vadd.f32 %v4015, %v4016
        %v4018 = vrot.slane %v4017, 4
        %v4019 = vadd.f32 %v4017, %v4018
        %v4020 = vrot.slane %v4019, 2
        %v4021 = vadd.f32 %v4019, %v4020
        %v4022 = vrot.slane %v4021, 1
        %v4023 = vadd.f32 %v4021, %v4022
        %v4024 = vmul.f32 %v4023, %v4009
        %v4025 = vadd.f32 %v4024, 1e-05
        %v4026 = vrsqrt.pop %v4025
        %v4027 = vmul.f32 %v4011, %v4026
        %v4028 = vmul.f32 %v4012, %v4026
        %v4029 = vld [vmem:[#allocation5] sm:$0xff]
        %v4031 = vsel %vm1949, %v4029, 0
        %4033 = vmatprep.subr.mxu0 0.0
        %4034 = vmatpush1.msra.mxu0 %v4027
        %4035 = vmatprep.subr.mxu0 0.0
        %4036 = vmatpush1.msra.mxu0 %v4028
        %4037 = vmatprep.subr.mxu0 0.0
        %4038 = vmatpush1.msra.mxu0 0.0
        %4039 = vmatprep.subr.mxu0 0.0
        %4040 = vmatpush1.msra.mxu0 0.0
        %4041 = vmatprep.subr.mxu0 0.0
        %4042 = vmatpush1.msra.mxu0 0.0
        %4043 = vmatprep.subr.mxu0 0.0
        %4044 = vmatpush1.msra.mxu0 0.0
        %4045 = vmatprep.subr.mxu0 0.0
        %4046 = vmatpush1.msra.mxu0 0.0
        %4047 = vmatprep.subr.mxu0 0.0
        %4048 = vmatpush1.msra.mxu0 0.0
        %4049 = vmatprep.subr.mxu0 0.0
        %4050 = vmatpush1.msra.mxu0 0.0
        %4051 = vmatprep.subr.mxu0 0.0
        %4052 = vmatpush1.msra.mxu0 0.0
        %4053 = vmatprep.subr.mxu0 0.0
        %4054 = vmatpush1.msra.mxu0 0.0
        %4055 = vmatprep.subr.mxu0 0.0
        %4056 = vmatpush1.msra.mxu0 0.0
        %4057 = vmatprep.subr.mxu0 0.0
        %4058 = vmatpush1.msra.mxu0 0.0
        %4059 = vmatprep.subr.mxu0 0.0
        %4060 = vmatpush1.msra.mxu0 0.0
        %4061 = vmatprep.subr.mxu0 0.0
        %4062 = vmatpush1.msra.mxu0 0.0
        %4063 = vmatprep.subr.mxu0 0.0
        %4064 = vmatpush1.msra.mxu0 0.0
        %4065 = vmatprep.subr.mxu0 0.0
        %4066 = vmatpush1.msra.mxu0 0.0
        %4067 = vmatprep.subr.mxu0 0.0
        %4068 = vmatpush1.msra.mxu0 0.0
        %4069 = vmatprep.subr.mxu0 0.0
        %4070 = vmatpush1.msra.mxu0 0.0
        %4071 = vmatprep.subr.mxu0 0.0
        %4072 = vmatpush1.msra.mxu0 0.0
        %4073 = vmatprep.subr.mxu0 0.0
        %4074 = vmatpush1.msra.mxu0 0.0
        %4075 = vmatprep.subr.mxu0 0.0
        %4076 = vmatpush1.msra.mxu0 0.0
        %4077 = vmatprep.subr.mxu0 0.0
        %4078 = vmatpush1.msra.mxu0 0.0
        %4079 = vmatprep.subr.mxu0 0.0
        %4080 = vmatpush1.msra.mxu0 0.0
        %4081 = vmatprep.subr.mxu0 0.0
        %4082 = vmatpush1.msra.mxu0 0.0
        %4083 = vmatprep.subr.mxu0 0.0
        %4084 = vmatpush1.msra.mxu0 0.0
        %4085 = vmatprep.subr.mxu0 0.0
        %4086 = vmatpush1.msra.mxu0 0.0
        %4087 = vmatprep.subr.mxu0 0.0
        %4088 = vmatpush1.msra.mxu0 0.0
        %4089 = vmatprep.subr.mxu0 0.0
        %4090 = vmatpush1.msra.mxu0 0.0
        %4091 = vmatprep.subr.mxu0 0.0
        %4092 = vmatpush1.msra.mxu0 0.0
        %4093 = vmatprep.subr.mxu0 0.0
        %4094 = vmatpush1.msra.mxu0 0.0
        %4095 = vmatprep.subr.mxu0 0.0
        %4096 = vmatpush1.msra.mxu0 0.0
        %4097 = vmatprep.mubr.f32.mxu0 0.0
        %4098 = vmatmul.mubr.f32.gmra.mrb[0].mxu0 %v4031
        %v4099 = vpop.f32.mrb[0].mxu0
        %v4100 = vadd.f32 0.0, %v4099
        %v4101 = vpop.f32.mrb[0].mxu0
        %4102 = vdwg.mxu0
        %v4103 = vld [vmem:[#allocation20] sm:$0xff]
        %v4104 = vld [vmem:[#allocation20 + $0x8] sm:$0xff]
        %v4106 = vsel %vm1949, %v4100, 0
        %4108 = vmatprep.subr.mxu0 0.0
        %4109 = vmatpush1.msra.mxu0 %v4103
        %4110 = vmatprep.subr.mxu0 0.0
        %4111 = vmatpush1.msra.mxu0 %v4104
        %4112 = vmatprep.subr.mxu0 0.0
        %4113 = vmatpush1.msra.mxu0 0.0
        %4114 = vmatprep.subr.mxu0 0.0
        %4115 = vmatpush1.msra.mxu0 0.0
        %4116 = vmatprep.subr.mxu0 0.0
        %4117 = vmatpush1.msra.mxu0 0.0
        %4118 = vmatprep.subr.mxu0 0.0
        %4119 = vmatpush1.msra.mxu0 0.0
        %4120 = vmatprep.subr.mxu0 0.0
        %4121 = vmatpush1.msra.mxu0 0.0
        %4122 = vmatprep.subr.mxu0 0.0
        %4123 = vmatpush1.msra.mxu0 0.0
        %4124 = vmatprep.subr.mxu0 0.0
        %4125 = vmatpush1.msra.mxu0 0.0
        %4126 = vmatprep.subr.mxu0 0.0
        %4127 = vmatpush1.msra.mxu0 0.0
        %4128 = vmatprep.subr.mxu0 0.0
        %4129 = vmatpush1.msra.mxu0 0.0
        %4130 = vmatprep.subr.mxu0 0.0
        %4131 = vmatpush1.msra.mxu0 0.0
        %4132 = vmatprep.subr.mxu0 0.0
        %4133 = vmatpush1.msra.mxu0 0.0
        %4134 = vmatprep.subr.mxu0 0.0
        %4135 = vmatpush1.msra.mxu0 0.0
        %4136 = vmatprep.subr.mxu0 0.0
        %4137 = vmatpush1.msra.mxu0 0.0
        %4138 = vmatprep.subr.mxu0 0.0
        %4139 = vmatpush1.msra.mxu0 0.0
        %4140 = vmatprep.subr.mxu0 0.0
        %4141 = vmatpush1.msra.mxu0 0.0
        %4142 = vmatprep.subr.mxu0 0.0
        %4143 = vmatpush1.msra.mxu0 0.0
        %4144 = vmatprep.subr.mxu0 0.0
        %4145 = vmatpush1.msra.mxu0 0.0
        %4146 = vmatprep.subr.mxu0 0.0
        %4147 = vmatpush1.msra.mxu0 0.0
        %4148 = vmatprep.subr.mxu0 0.0
        %4149 = vmatpush1.msra.mxu0 0.0
        %4150 = vmatprep.subr.mxu0 0.0
        %4151 = vmatpush1.msra.mxu0 0.0
        %4152 = vmatprep.subr.mxu0 0.0
        %4153 = vmatpush1.msra.mxu0 0.0
        %4154 = vmatprep.subr.mxu0 0.0
        %4155 = vmatpush1.msra.mxu0 0.0
        %4156 = vmatprep.subr.mxu0 0.0
        %4157 = vmatpush1.msra.mxu0 0.0
        %4158 = vmatprep.subr.mxu0 0.0
        %4159 = vmatpush1.msra.mxu0 0.0
        %4160 = vmatprep.subr.mxu0 0.0
        %4161 = vmatpush1.msra.mxu0 0.0
        %4162 = vmatprep.subr.mxu0 0.0
        %4163 = vmatpush1.msra.mxu0 0.0
        %4164 = vmatprep.subr.mxu0 0.0
        %4165 = vmatpush1.msra.mxu0 0.0
        %4166 = vmatprep.subr.mxu0 0.0
        %4167 = vmatpush1.msra.mxu0 0.0
        %4168 = vmatprep.subr.mxu0 0.0
        %4169 = vmatpush1.msra.mxu0 0.0
        %4170 = vmatprep.subr.mxu0 0.0
        %4171 = vmatpush1.msra.mxu0 0.0
        %4172 = vmatprep.mubr.f32.mxu0 0.0
        %4173 = vmatmul.mubr.f32.gmra.mrb[0].mxu0 %v4106
        %v4174 = vpop.f32.mrb[0].mxu0
        %v4175 = vadd.f32 0.0, %v4174
        %v4176 = vpop.f32.mrb[0].mxu0
        %4177 = vdwg.mxu0
        %v4178 = vld [vmem:[#allocation3] sm:$0xff]
        %v4179 = vld [vmem:[%s63] sm:$0xff]
        %v4180 = vld [vmem:[%s63 + $0x8] sm:$0xff]
        %4181 = vmatprep.subr.mxu0 0.0
        %4182 = vmatpush1.msra.mxu0 %v4179
        %4183 = vmatprep.subr.mxu0 0.0
        %4184 = vmatpush1.msra.mxu0 %v4180
        %4185 = vmatprep.subr.mxu0 0.0
        %4186 = vmatpush1.msra.mxu0 0.0
        %4187 = vmatprep.subr.mxu0 0.0
        %4188 = vmatpush1.msra.mxu0 0.0
        %4189 = vmatprep.subr.mxu0 0.0
        %4190 = vmatpush1.msra.mxu0 0.0
        %4191 = vmatprep.subr.mxu0 0.0
        %4192 = vmatpush1.msra.mxu0 0.0
        %4193 = vmatprep.subr.mxu0 0.0
        %4194 = vmatpush1.msra.mxu0 0.0
        %4195 = vmatprep.subr.mxu0 0.0
        %4196 = vmatpush1.msra.mxu0 0.0
        %4197 = vmatprep.subr.mxu0 0.0
        %4198 = vmatpush1.msra.mxu0 0.0
        %4199 = vmatprep.subr.mxu0 0.0
        %4200 = vmatpush1.msra.mxu0 0.0
        %4201 = vmatprep.subr.mxu0 0.0
        %4202 = vmatpush1.msra.mxu0 0.0
        %4203 = vmatprep.subr.mxu0 0.0
        %4204 = vmatpush1.msra.mxu0 0.0
        %4205 = vmatprep.subr.mxu0 0.0
        %4206 = vmatpush1.msra.mxu0 0.0
        %4207 = vmatprep.subr.mxu0 0.0
        %4208 = vmatpush1.msra.mxu0 0.0
        %4209 = vmatprep.subr.mxu0 0.0
        %4210 = vmatpush1.msra.mxu0 0.0
        %4211 = vmatprep.subr.mxu0 0.0
        %4212 = vmatpush1.msra.mxu0 0.0
        %4213 = vmatprep.subr.mxu0 0.0
        %4214 = vmatpush1.msra.mxu0 0.0
        %4215 = vmatprep.subr.mxu0 0.0
        %4216 = vmatpush1.msra.mxu0 0.0
        %4217 = vmatprep.subr.mxu0 0.0
        %4218 = vmatpush1.msra.mxu0 0.0
        %4219 = vmatprep.subr.mxu0 0.0
        %4220 = vmatpush1.msra.mxu0 0.0
        %4221 = vmatprep.subr.mxu0 0.0
        %4222 = vmatpush1.msra.mxu0 0.0
        %4223 = vmatprep.subr.mxu0 0.0
        %4224 = vmatpush1.msra.mxu0 0.0
        %4225 = vmatprep.subr.mxu0 0.0
        %4226 = vmatpush1.msra.mxu0 0.0
        %4227 = vmatprep.subr.mxu0 0.0
        %4228 = vmatpush1.msra.mxu0 0.0
        %4229 = vmatprep.subr.mxu0 0.0
        %4230 = vmatpush1.msra.mxu0 0.0
        %4231 = vmatprep.subr.mxu0 0.0
        %4232 = vmatpush1.msra.mxu0 0.0
        %4233 = vmatprep.subr.mxu0 0.0
        %4234 = vmatpush1.msra.mxu0 0.0
        %4235 = vmatprep.subr.mxu0 0.0
        %4236 = vmatpush1.msra.mxu0 0.0
        %4237 = vmatprep.subr.mxu0 0.0
        %4238 = vmatpush1.msra.mxu0 0.0
        %4239 = vmatprep.subr.mxu0 0.0
        %4240 = vmatpush1.msra.mxu0 0.0
        %4241 = vmatprep.subr.mxu0 0.0
        %4242 = vmatpush1.msra.mxu0 0.0
        %4243 = vmatprep.subr.mxu0 0.0
        %4244 = vmatpush1.msra.mxu0 0.0
        %4245 = vmatprep.mubr.f32.mxu0 0.0
        %4246 = vmatmul.mubr.f32.gmra.mrb[0].mxu0 %v4106
        %v4247 = vpop.f32.mrb[0].mxu0
        %v4248 = vadd.f32 0.0, %v4247
        %v4249 = vpop.f32.mrb[0].mxu0
        %4250 = vdwg.mxu0
        %vm4251 = vcmask 64512
        %v4253 = vsel %vm4251, %v4178, 0
        %4255 = vmatprep.subr.mxu0 0.0
        %4256 = vmatpush1.msra.mxu0 %v4175
        %4257 = vmatprep.subr.mxu0 0.0
        %4258 = vmatpush1.msra.mxu0 0.0
        %4259 = vmatprep.subr.mxu0 0.0
        %4260 = vmatpush1.msra.mxu0 0.0
        %4261 = vmatprep.subr.mxu0 0.0
        %4262 = vmatpush1.msra.mxu0 0.0
        %4263 = vmatprep.subr.mxu0 0.0
        %4264 = vmatpush1.msra.mxu0 0.0
        %4265 = vmatprep.subr.mxu0 0.0
        %4266 = vmatpush1.msra.mxu0 0.0
        %4267 = vmatprep.subr.mxu0 0.0
        %4268 = vmatpush1.msra.mxu0 0.0
        %4269 = vmatprep.subr.mxu0 0.0
        %4270 = vmatpush1.msra.mxu0 0.0
        %4271 = vmatprep.subr.mxu0 0.0
        %4272 = vmatpush1.msra.mxu0 0.0
        %4273 = vmatprep.subr.mxu0 0.0
        %4274 = vmatpush1.msra.mxu0 0.0
        %4275 = vmatprep.subr.mxu0 0.0
        %4276 = vmatpush1.msra.mxu0 0.0
        %4277 = vmatprep.subr.mxu0 0.0
        %4278 = vmatpush1.msra.mxu0 0.0
        %4279 = vmatprep.subr.mxu0 0.0
        %4280 = vmatpush1.msra.mxu0 0.0
        %4281 = vmatprep.subr.mxu0 0.0
        %4282 = vmatpush1.msra.mxu0 0.0
        %4283 = vmatprep.subr.mxu0 0.0
        %4284 = vmatpush1.msra.mxu0 0.0
        %4285 = vmatprep.subr.mxu0 0.0
        %4286 = vmatpush1.msra.mxu0 0.0
        %4287 = vmatprep.subr.mxu0 0.0
        %4288 = vmatpush1.msra.mxu0 0.0
        %4289 = vmatprep.subr.mxu0 0.0
        %4290 = vmatpush1.msra.mxu0 0.0
        %4291 = vmatprep.subr.mxu0 0.0
        %4292 = vmatpush1.msra.mxu0 0.0
        %4293 = vmatprep.subr.mxu0 0.0
        %4294 = vmatpush1.msra.mxu0 0.0
        %4295 = vmatprep.subr.mxu0 0.0
        %4296 = vmatpush1.msra.mxu0 0.0
        %4297 = vmatprep.subr.mxu0 0.0
        %4298 = vmatpush1.msra.mxu0 0.0
        %4299 = vmatprep.subr.mxu0 0.0
        %4300 = vmatpush1.msra.mxu0 0.0
        %4301 = vmatprep.subr.mxu0 0.0
        %4302 = vmatpush1.msra.mxu0 0.0
        %4303 = vmatprep.subr.mxu0 0.0
        %4304 = vmatpush1.msra.mxu0 0.0
        %4305 = vmatprep.subr.mxu0 0.0
        %4306 = vmatpush1.msra.mxu0 0.0
        %4307 = vmatprep.subr.mxu0 0.0
        %4308 = vmatpush1.msra.mxu0 0.0
        %4309 = vmatprep.subr.mxu0 0.0
        %4310 = vmatpush1.msra.mxu0 0.0
        %4311 = vmatprep.subr.mxu0 0.0
        %4312 = vmatpush1.msra.mxu0 0.0
        %4313 = vmatprep.subr.mxu0 0.0
        %4314 = vmatpush1.msra.mxu0 0.0
        %4315 = vmatprep.subr.mxu0 0.0
        %4316 = vmatpush1.msra.mxu0 0.0
        %4317 = vmatprep.subr.mxu0 0.0
        %4318 = vmatpush1.msra.mxu0 0.0
        %4319 = vmatprep.mubr.f32.mxu0 0.0
        %4320 = vmatmul.mubr.f32.gmra.mrb[0].mxu0 %v4253
        %v4321 = vpop.f32.mrb[0].mxu0
        %v4322 = vadd.f32 %v4248, %v4321
        %v4323 = vpop.f32.mrb[0].mxu0
        %4324 = vdwg.mxu0
        %v4325 = vld [vmem:[#allocation22] sm:$0x1]
        %v4327 = vlaneseq
        %v4328 = vshrl.u32 %v4327, 7
        %v4329 = vsub.s32 0, %v4328
        %v4330 = vrot.slane %v4325, %v4329
        %v4332 = vadd.f32 %v4322, %v4330
        %v4333 = vmax.f32 %v4332, 0.0
        %v4334 = vld [vmem:[%s67] sm:$0xff]
        %v4335 = vld [vmem:[%s67 + $0x8] sm:$0xff]
        %v4336 = vld [vmem:[%s67 + $0x10] sm:$0xff]
        %v4337 = vld [vmem:[%s67 + $0x18] sm:$0xff]
        %v4339 = vsel %vm1796, %v4333, 0
        %4341 = vmatprep.subr.mxu0 0.0
        %4342 = vmatpush1.msra.mxu0 %v4334
        %4343 = vmatprep.subr.mxu0 0.0
        %4344 = vmatpush1.msra.mxu0 %v4335
        %4345 = vmatprep.subr.mxu0 0.0
        %4346 = vmatpush1.msra.mxu0 %v4336
        %4347 = vmatprep.subr.mxu0 0.0
        %4348 = vmatpush1.msra.mxu0 %v4337
        %4349 = vmatprep.subr.mxu0 0.0
        %4350 = vmatpush1.msra.mxu0 0.0
        %4351 = vmatprep.subr.mxu0 0.0
        %4352 = vmatpush1.msra.mxu0 0.0
        %4353 = vmatprep.subr.mxu0 0.0
        %4354 = vmatpush1.msra.mxu0 0.0
        %4355 = vmatprep.subr.mxu0 0.0
        %4356 = vmatpush1.msra.mxu0 0.0
        %4357 = vmatprep.subr.mxu0 0.0
        %4358 = vmatpush1.msra.mxu0 0.0
        %4359 = vmatprep.subr.mxu0 0.0
        %4360 = vmatpush1.msra.mxu0 0.0
        %4361 = vmatprep.subr.mxu0 0.0
        %4362 = vmatpush1.msra.mxu0 0.0
        %4363 = vmatprep.subr.mxu0 0.0
        %4364 = vmatpush1.msra.mxu0 0.0
        %4365 = vmatprep.subr.mxu0 0.0
        %4366 = vmatpush1.msra.mxu0 0.0
        %4367 = vmatprep.subr.mxu0 0.0
        %4368 = vmatpush1.msra.mxu0 0.0
        %4369 = vmatprep.subr.mxu0 0.0
        %4370 = vmatpush1.msra.mxu0 0.0
        %4371 = vmatprep.subr.mxu0 0.0
        %4372 = vmatpush1.msra.mxu0 0.0
        %4373 = vmatprep.subr.mxu0 0.0
        %4374 = vmatpush1.msra.mxu0 0.0
        %4375 = vmatprep.subr.mxu0 0.0
        %4376 = vmatpush1.msra.mxu0 0.0
        %4377 = vmatprep.subr.mxu0 0.0
        %4378 = vmatpush1.msra.mxu0 0.0
        %4379 = vmatprep.subr.mxu0 0.0
        %4380 = vmatpush1.msra.mxu0 0.0
        %4381 = vmatprep.subr.mxu0 0.0
        %4382 = vmatpush1.msra.mxu0 0.0
        %4383 = vmatprep.subr.mxu0 0.0
        %4384 = vmatpush1.msra.mxu0 0.0
        %4385 = vmatprep.subr.mxu0 0.0
        %4386 = vmatpush1.msra.mxu0 0.0
        %4387 = vmatprep.subr.mxu0 0.0
        %4388 = vmatpush1.msra.mxu0 0.0
        %4389 = vmatprep.subr.mxu0 0.0
        %4390 = vmatpush1.msra.mxu0 0.0
        %4391 = vmatprep.subr.mxu0 0.0
        %4392 = vmatpush1.msra.mxu0 0.0
        %4393 = vmatprep.subr.mxu0 0.0
        %4394 = vmatpush1.msra.mxu0 0.0
        %4395 = vmatprep.subr.mxu0 0.0
        %4396 = vmatpush1.msra.mxu0 0.0
        %4397 = vmatprep.subr.mxu0 0.0
        %4398 = vmatpush1.msra.mxu0 0.0
        %4399 = vmatprep.subr.mxu0 0.0
        %4400 = vmatpush1.msra.mxu0 0.0
        %4401 = vmatprep.subr.mxu0 0.0
        %4402 = vmatpush1.msra.mxu0 0.0
        %4403 = vmatprep.subr.mxu0 0.0
        %4404 = vmatpush1.msra.mxu0 0.0
        %4405 = vmatprep.mubr.f32.mxu0 0.0
        %4406 = vmatmul.mubr.f32.gmra.mrb[0].mxu0 %v4339
        %v4407 = vpop.f32.mrb[0].mxu0
        %v4408 = vadd.f32 0.0, %v4407
        %v4409 = vpop.f32.mrb[0].mxu0
        %4410 = vdwg.mxu0
        %v4411 = vld [vmem:[%s69] sm:$0xff]
        %v4412 = vld [vmem:[%s69 + $0x8] sm:$0xff]
        %v4413 = vld [vmem:[%s69 + $0x10] sm:$0xff]
        %v4414 = vld [vmem:[%s69 + $0x18] sm:$0xff]
        %4415 = vmatprep.subr.mxu0 0.0
        %4416 = vmatpush1.msra.mxu0 %v4411
        %4417 = vmatprep.subr.mxu0 0.0
        %4418 = vmatpush1.msra.mxu0 %v4412
        %4419 = vmatprep.subr.mxu0 0.0
        %4420 = vmatpush1.msra.mxu0 %v4413
        %4421 = vmatprep.subr.mxu0 0.0
        %4422 = vmatpush1.msra.mxu0 %v4414
        %4423 = vmatprep.subr.mxu0 0.0
        %4424 = vmatpush1.msra.mxu0 0.0
        %4425 = vmatprep.subr.mxu0 0.0
        %4426 = vmatpush1.msra.mxu0 0.0
        %4427 = vmatprep.subr.mxu0 0.0
        %4428 = vmatpush1.msra.mxu0 0.0
        %4429 = vmatprep.subr.mxu0 0.0
        %4430 = vmatpush1.msra.mxu0 0.0
        %4431 = vmatprep.subr.mxu0 0.0
        %4432 = vmatpush1.msra.mxu0 0.0
        %4433 = vmatprep.subr.mxu0 0.0
        %4434 = vmatpush1.msra.mxu0 0.0
        %4435 = vmatprep.subr.mxu0 0.0
        %4436 = vmatpush1.msra.mxu0 0.0
        %4437 = vmatprep.subr.mxu0 0.0
        %4438 = vmatpush1.msra.mxu0 0.0
        %4439 = vmatprep.subr.mxu0 0.0
        %4440 = vmatpush1.msra.mxu0 0.0
        %4441 = vmatprep.subr.mxu0 0.0
        %4442 = vmatpush1.msra.mxu0 0.0
        %4443 = vmatprep.subr.mxu0 0.0
        %4444 = vmatpush1.msra.mxu0 0.0
        %4445 = vmatprep.subr.mxu0 0.0
        %4446 = vmatpush1.msra.mxu0 0.0
        %4447 = vmatprep.subr.mxu0 0.0
        %4448 = vmatpush1.msra.mxu0 0.0
        %4449 = vmatprep.subr.mxu0 0.0
        %4450 = vmatpush1.msra.mxu0 0.0
        %4451 = vmatprep.subr.mxu0 0.0
        %4452 = vmatpush1.msra.mxu0 0.0
        %4453 = vmatprep.subr.mxu0 0.0
        %4454 = vmatpush1.msra.mxu0 0.0
        %4455 = vmatprep.subr.mxu0 0.0
        %4456 = vmatpush1.msra.mxu0 0.0
        %4457 = vmatprep.subr.mxu0 0.0
        %4458 = vmatpush1.msra.mxu0 0.0
        %4459 = vmatprep.subr.mxu0 0.0
        %4460 = vmatpush1.msra.mxu0 0.0
        %4461 = vmatprep.subr.mxu0 0.0
        %4462 = vmatpush1.msra.mxu0 0.0
        %4463 = vmatprep.subr.mxu0 0.0
        %4464 = vmatpush1.msra.mxu0 0.0
        %4465 = vmatprep.subr.mxu0 0.0
        %4466 = vmatpush1.msra.mxu0 0.0
        %4467 = vmatprep.subr.mxu0 0.0
        %4468 = vmatpush1.msra.mxu0 0.0
        %4469 = vmatprep.subr.mxu0 0.0
        %4470 = vmatpush1.msra.mxu0 0.0
        %4471 = vmatprep.subr.mxu0 0.0
        %4472 = vmatpush1.msra.mxu0 0.0
        %4473 = vmatprep.subr.mxu0 0.0
        %4474 = vmatpush1.msra.mxu0 0.0
        %4475 = vmatprep.subr.mxu0 0.0
        %4476 = vmatpush1.msra.mxu0 0.0
        %4477 = vmatprep.subr.mxu0 0.0
        %4478 = vmatpush1.msra.mxu0 0.0
        %4479 = vmatprep.mubr.f32.mxu0 0.0
        %4480 = vmatmul.mubr.f32.gmra.mrb[0].mxu0 %v4339
        %v4481 = vpop.f32.mrb[0].mxu0
        %v4482 = vadd.f32 0.0, %v4481
        %v4483 = vpop.f32.mrb[0].mxu0
        %4484 = vdwg.mxu0
        %4485 = vmatprep.subr.mxu0 0.0
        %4486 = vmatpush1.msra.mxu0 %v4408
        %4487 = vmatprep.subr.mxu0 0.0
        %4488 = vmatpush1.msra.mxu0 0.0
        %4489 = vmatprep.subr.mxu0 0.0
        %4490 = vmatpush1.msra.mxu0 0.0
        %4491 = vmatprep.subr.mxu0 0.0
        %4492 = vmatpush1.msra.mxu0 0.0
        %4493 = vmatprep.subr.mxu0 0.0
        %4494 = vmatpush1.msra.mxu0 0.0
        %4495 = vmatprep.subr.mxu0 0.0
        %4496 = vmatpush1.msra.mxu0 0.0
        %4497 = vmatprep.subr.mxu0 0.0
        %4498 = vmatpush1.msra.mxu0 0.0
        %4499 = vmatprep.subr.mxu0 0.0
        %4500 = vmatpush1.msra.mxu0 0.0
        %4501 = vmatprep.subr.mxu0 0.0
        %4502 = vmatpush1.msra.mxu0 0.0
        %4503 = vmatprep.subr.mxu0 0.0
        %4504 = vmatpush1.msra.mxu0 0.0
        %4505 = vmatprep.subr.mxu0 0.0
        %4506 = vmatpush1.msra.mxu0 0.0
        %4507 = vmatprep.subr.mxu0 0.0
        %4508 = vmatpush1.msra.mxu0 0.0
        %4509 = vmatprep.subr.mxu0 0.0
        %4510 = vmatpush1.msra.mxu0 0.0
        %4511 = vmatprep.subr.mxu0 0.0
        %4512 = vmatpush1.msra.mxu0 0.0
        %4513 = vmatprep.subr.mxu0 0.0
        %4514 = vmatpush1.msra.mxu0 0.0
        %4515 = vmatprep.subr.mxu0 0.0
        %4516 = vmatpush1.msra.mxu0 0.0
        %4517 = vmatprep.subr.mxu0 0.0
        %4518 = vmatpush1.msra.mxu0 0.0
        %4519 = vmatprep.subr.mxu0 0.0
        %4520 = vmatpush1.msra.mxu0 0.0
        %4521 = vmatprep.subr.mxu0 0.0
        %4522 = vmatpush1.msra.mxu0 0.0
        %4523 = vmatprep.subr.mxu0 0.0
        %4524 = vmatpush1.msra.mxu0 0.0
        %4525 = vmatprep.subr.mxu0 0.0
        %4526 = vmatpush1.msra.mxu0 0.0
        %4527 = vmatprep.subr.mxu0 0.0
        %4528 = vmatpush1.msra.mxu0 0.0
        %4529 = vmatprep.subr.mxu0 0.0
        %4530 = vmatpush1.msra.mxu0 0.0
        %4531 = vmatprep.subr.mxu0 0.0
        %4532 = vmatpush1.msra.mxu0 0.0
        %4533 = vmatprep.subr.mxu0 0.0
        %4534 = vmatpush1.msra.mxu0 0.0
        %4535 = vmatprep.subr.mxu0 0.0
        %4536 = vmatpush1.msra.mxu0 0.0
        %4537 = vmatprep.subr.mxu0 0.0
        %4538 = vmatpush1.msra.mxu0 0.0
        %4539 = vmatprep.subr.mxu0 0.0
        %4540 = vmatpush1.msra.mxu0 0.0
        %4541 = vmatprep.subr.mxu0 0.0
        %4542 = vmatpush1.msra.mxu0 0.0
        %4543 = vmatprep.subr.mxu0 0.0
        %4544 = vmatpush1.msra.mxu0 0.0
        %4545 = vmatprep.subr.mxu0 0.0
        %4546 = vmatpush1.msra.mxu0 0.0
        %4547 = vmatprep.subr.mxu0 0.0
        %4548 = vmatpush1.msra.mxu0 0.0
        %4549 = vmatprep.mubr.f32.mxu0 0.0
        %4550 = vmatmul.mubr.f32.gmra.mrb[0].mxu0 %v4253
        %v4551 = vpop.f32.mrb[0].mxu0
        %v4552 = vadd.f32 %v4482, %v4551
        %v4553 = vpop.f32.mrb[0].mxu0
        %4554 = vdwg.mxu0
        %v4555 = vld [vmem:[#allocation23] sm:$0x1]
        %v4557 = vlaneseq
        %v4558 = vshrl.u32 %v4557, 7
        %v4559 = vsub.s32 0, %v4558
        %v4560 = vrot.slane %v4555, %v4559
        %v4562 = vadd.f32 %v4552, %v4560
        %v4563 = vmax.f32 %v4562, 0.0
        %v4564 = vsel %vm1796, %v4563, 0.0
        %v4565 = vrot.slane %v4564, 4
        %v4566 = vadd.f32 %v4564, %v4565
        %v4567 = vrot.slane %v4566, 2
        %v4568 = vadd.f32 %v4566, %v4567
        %v4569 = vrot.slane %v4568, 1
        %v4570 = vadd.f32 %v4568, %v4569
        %v4571 = vrcp.pop 8.0
        %v4572 = vmul.f32 %v4570, %v4571
        %v4573 = vsub.f32 %v4563, %v4572
        %v4574 = vmul.f32 %v4573, %v4573
        %v4575 = vsel %vm1796, %v4574, 0.0
        %v4576 = vrot.slane %v4575, 4
        %v4577 = vadd.f32 %v4575, %v4576
        %v4578 = vrot.slane %v4577, 2
        %v4579 = vadd.f32 %v4577, %v4578
        %v4580 = vrot.slane %v4579, 1
        %v4581 = vadd.f32 %v4579, %v4580
        %v4582 = vmul.f32 %v4581, %v4571
        %v4583 = vadd.f32 %v4582, 1e-05
        %v4584 = vrsqrt.pop %v4583
        %v4585 = vmul.f32 %v4573, %v4584
        %v4586 = vld [vmem:[%s73] sm:$0xff]
        %v4587 = vld [vmem:[%s73 + $0x8] sm:$0xff]
        %v4588 = vld [vmem:[%s73 + $0x10] sm:$0xff]
        %v4589 = vld [vmem:[%s73 + $0x18] sm:$0xff]
        %v4591 = vsel %vm1796, %v4585, 0
        %4593 = vmatprep.subr.mxu0 0.0
        %4594 = vmatpush1.msra.mxu0 %v4586
        %4595 = vmatprep.subr.mxu0 0.0
        %4596 = vmatpush1.msra.mxu0 %v4587
        %4597 = vmatprep.subr.mxu0 0.0
        %4598 = vmatpush1.msra.mxu0 %v4588
        %4599 = vmatprep.subr.mxu0 0.0
        %4600 = vmatpush1.msra.mxu0 %v4589
        %4601 = vmatprep.subr.mxu0 0.0
        %4602 = vmatpush1.msra.mxu0 0.0
        %4603 = vmatprep.subr.mxu0 0.0
        %4604 = vmatpush1.msra.mxu0 0.0
        %4605 = vmatprep.subr.mxu0 0.0
        %4606 = vmatpush1.msra.mxu0 0.0
        %4607 = vmatprep.subr.mxu0 0.0
        %4608 = vmatpush1.msra.mxu0 0.0
        %4609 = vmatprep.subr.mxu0 0.0
        %4610 = vmatpush1.msra.mxu0 0.0
        %4611 = vmatprep.subr.mxu0 0.0
        %4612 = vmatpush1.msra.mxu0 0.0
        %4613 = vmatprep.subr.mxu0 0.0
        %4614 = vmatpush1.msra.mxu0 0.0
        %4615 = vmatprep.subr.mxu0 0.0
        %4616 = vmatpush1.msra.mxu0 0.0
        %4617 = vmatprep.subr.mxu0 0.0
        %4618 = vmatpush1.msra.mxu0 0.0
        %4619 = vmatprep.subr.mxu0 0.0
        %4620 = vmatpush1.msra.mxu0 0.0
        %4621 = vmatprep.subr.mxu0 0.0
        %4622 = vmatpush1.msra.mxu0 0.0
        %4623 = vmatprep.subr.mxu0 0.0
        %4624 = vmatpush1.msra.mxu0 0.0
        %4625 = vmatprep.subr.mxu0 0.0
        %4626 = vmatpush1.msra.mxu0 0.0
        %4627 = vmatprep.subr.mxu0 0.0
        %4628 = vmatpush1.msra.mxu0 0.0
        %4629 = vmatprep.subr.mxu0 0.0
        %4630 = vmatpush1.msra.mxu0 0.0
        %4631 = vmatprep.subr.mxu0 0.0
        %4632 = vmatpush1.msra.mxu0 0.0
        %4633 = vmatprep.subr.mxu0 0.0
        %4634 = vmatpush1.msra.mxu0 0.0
        %4635 = vmatprep.subr.mxu0 0.0
        %4636 = vmatpush1.msra.mxu0 0.0
        %4637 = vmatprep.subr.mxu0 0.0
        %4638 = vmatpush1.msra.mxu0 0.0
        %4639 = vmatprep.subr.mxu0 0.0
        %4640 = vmatpush1.msra.mxu0 0.0
        %4641 = vmatprep.subr.mxu0 0.0
        %4642 = vmatpush1.msra.mxu0 0.0
        %4643 = vmatprep.subr.mxu0 0.0
        %4644 = vmatpush1.msra.mxu0 0.0
        %4645 = vmatprep.subr.mxu0 0.0
        %4646 = vmatpush1.msra.mxu0 0.0
        %4647 = vmatprep.subr.mxu0 0.0
        %4648 = vmatpush1.msra.mxu0 0.0
        %4649 = vmatprep.subr.mxu0 0.0
        %4650 = vmatpush1.msra.mxu0 0.0
        %4651 = vmatprep.subr.mxu0 0.0
        %4652 = vmatpush1.msra.mxu0 0.0
        %4653 = vmatprep.subr.mxu0 0.0
        %4654 = vmatpush1.msra.mxu0 0.0
        %4655 = vmatprep.subr.mxu0 0.0
        %4656 = vmatpush1.msra.mxu0 0.0
        %4657 = vmatprep.mubr.f32.mxu0 0.0
        %4658 = vmatmul.mubr.f32.gmra.mrb[0].mxu0 %v4591
        %v4659 = vpop.f32.mrb[0].mxu0
        %v4660 = vadd.f32 0.0, %v4659
        %v4661 = vpop.f32.mrb[0].mxu0
        %4662 = vdwg.mxu0
        %v4663 = vld [vmem:[%s75] sm:$0xff]
        %v4664 = vld [vmem:[%s75 + $0x8] sm:$0xff]
        %v4665 = vld [vmem:[%s75 + $0x10] sm:$0xff]
        %v4666 = vld [vmem:[%s75 + $0x18] sm:$0xff]
        %4667 = vmatprep.subr.mxu0 0.0
        %4668 = vmatpush1.msra.mxu0 %v4663
        %4669 = vmatprep.subr.mxu0 0.0
        %4670 = vmatpush1.msra.mxu0 %v4664
        %4671 = vmatprep.subr.mxu0 0.0
        %4672 = vmatpush1.msra.mxu0 %v4665
        %4673 = vmatprep.subr.mxu0 0.0
        %4674 = vmatpush1.msra.mxu0 %v4666
        %4675 = vmatprep.subr.mxu0 0.0
        %4676 = vmatpush1.msra.mxu0 0.0
        %4677 = vmatprep.subr.mxu0 0.0
        %4678 = vmatpush1.msra.mxu0 0.0
        %4679 = vmatprep.subr.mxu0 0.0
        %4680 = vmatpush1.msra.mxu0 0.0
        %4681 = vmatprep.subr.mxu0 0.0
        %4682 = vmatpush1.msra.mxu0 0.0
        %4683 = vmatprep.subr.mxu0 0.0
        %4684 = vmatpush1.msra.mxu0 0.0
        %4685 = vmatprep.subr.mxu0 0.0
        %4686 = vmatpush1.msra.mxu0 0.0
        %4687 = vmatprep.subr.mxu0 0.0
        %4688 = vmatpush1.msra.mxu0 0.0
        %4689 = vmatprep.subr.mxu0 0.0
        %4690 = vmatpush1.msra.mxu0 0.0
        %4691 = vmatprep.subr.mxu0 0.0
        %4692 = vmatpush1.msra.mxu0 0.0
        %4693 = vmatprep.subr.mxu0 0.0
        %4694 = vmatpush1.msra.mxu0 0.0
        %4695 = vmatprep.subr.mxu0 0.0
        %4696 = vmatpush1.msra.mxu0 0.0
        %4697 = vmatprep.subr.mxu0 0.0
        %4698 = vmatpush1.msra.mxu0 0.0
        %4699 = vmatprep.subr.mxu0 0.0
        %4700 = vmatpush1.msra.mxu0 0.0
        %4701 = vmatprep.subr.mxu0 0.0
        %4702 = vmatpush1.msra.mxu0 0.0
        %4703 = vmatprep.subr.mxu0 0.0
        %4704 = vmatpush1.msra.mxu0 0.0
        %4705 = vmatprep.subr.mxu0 0.0
        %4706 = vmatpush1.msra.mxu0 0.0
        %4707 = vmatprep.subr.mxu0 0.0
        %4708 = vmatpush1.msra.mxu0 0.0
        %4709 = vmatprep.subr.mxu0 0.0
        %4710 = vmatpush1.msra.mxu0 0.0
        %4711 = vmatprep.subr.mxu0 0.0
        %4712 = vmatpush1.msra.mxu0 0.0
        %4713 = vmatprep.subr.mxu0 0.0
        %4714 = vmatpush1.msra.mxu0 0.0
        %4715 = vmatprep.subr.mxu0 0.0
        %4716 = vmatpush1.msra.mxu0 0.0
        %4717 = vmatprep.subr.mxu0 0.0
        %4718 = vmatpush1.msra.mxu0 0.0
        %4719 = vmatprep.subr.mxu0 0.0
        %4720 = vmatpush1.msra.mxu0 0.0
        %4721 = vmatprep.subr.mxu0 0.0
        %4722 = vmatpush1.msra.mxu0 0.0
        %4723 = vmatprep.subr.mxu0 0.0
        %4724 = vmatpush1.msra.mxu0 0.0
        %4725 = vmatprep.subr.mxu0 0.0
        %4726 = vmatpush1.msra.mxu0 0.0
        %4727 = vmatprep.subr.mxu0 0.0
        %4728 = vmatpush1.msra.mxu0 0.0
        %4729 = vmatprep.subr.mxu0 0.0
        %4730 = vmatpush1.msra.mxu0 0.0
        %4731 = vmatprep.mubr.f32.mxu0 0.0
        %4732 = vmatmul.mubr.f32.gmra.mrb[0].mxu0 %v4591
        %v4733 = vpop.f32.mrb[0].mxu0
        %v4734 = vadd.f32 0.0, %v4733
        %v4735 = vpop.f32.mrb[0].mxu0
        %4736 = vdwg.mxu0
        %4737 = vmatprep.subr.mxu0 0.0
        %4738 = vmatpush1.msra.mxu0 %v4660
        %4739 = vmatprep.subr.mxu0 0.0
        %4740 = vmatpush1.msra.mxu0 0.0
        %4741 = vmatprep.subr.mxu0 0.0
        %4742 = vmatpush1.msra.mxu0 0.0
        %4743 = vmatprep.subr.mxu0 0.0
        %4744 = vmatpush1.msra.mxu0 0.0
        %4745 = vmatprep.subr.mxu0 0.0
        %4746 = vmatpush1.msra.mxu0 0.0
        %4747 = vmatprep.subr.mxu0 0.0
        %4748 = vmatpush1.msra.mxu0 0.0
        %4749 = vmatprep.subr.mxu0 0.0
        %4750 = vmatpush1.msra.mxu0 0.0
        %4751 = vmatprep.subr.mxu0 0.0
        %4752 = vmatpush1.msra.mxu0 0.0
        %4753 = vmatprep.subr.mxu0 0.0
        %4754 = vmatpush1.msra.mxu0 0.0
        %4755 = vmatprep.subr.mxu0 0.0
        %4756 = vmatpush1.msra.mxu0 0.0
        %4757 = vmatprep.subr.mxu0 0.0
        %4758 = vmatpush1.msra.mxu0 0.0
        %4759 = vmatprep.subr.mxu0 0.0
        %4760 = vmatpush1.msra.mxu0 0.0
        %4761 = vmatprep.subr.mxu0 0.0
        %4762 = vmatpush1.msra.mxu0 0.0
        %4763 = vmatprep.subr.mxu0 0.0
        %4764 = vmatpush1.msra.mxu0 0.0
        %4765 = vmatprep.subr.mxu0 0.0
        %4766 = vmatpush1.msra.mxu0 0.0
        %4767 = vmatprep.subr.mxu0 0.0
        %4768 = vmatpush1.msra.mxu0 0.0
        %4769 = vmatprep.subr.mxu0 0.0
        %4770 = vmatpush1.msra.mxu0 0.0
        %4771 = vmatprep.subr.mxu0 0.0
        %4772 = vmatpush1.msra.mxu0 0.0
        %4773 = vmatprep.subr.mxu0 0.0
        %4774 = vmatpush1.msra.mxu0 0.0
        %4775 = vmatprep.subr.mxu0 0.0
        %4776 = vmatpush1.msra.mxu0 0.0
        %4777 = vmatprep.subr.mxu0 0.0
        %4778 = vmatpush1.msra.mxu0 0.0
        %4779 = vmatprep.subr.mxu0 0.0
        %4780 = vmatpush1.msra.mxu0 0.0
        %4781 = vmatprep.subr.mxu0 0.0
        %4782 = vmatpush1.msra.mxu0 0.0
        %4783 = vmatprep.subr.mxu0 0.0
        %4784 = vmatpush1.msra.mxu0 0.0
        %4785 = vmatprep.subr.mxu0 0.0
        %4786 = vmatpush1.msra.mxu0 0.0
        %4787 = vmatprep.subr.mxu0 0.0
        %4788 = vmatpush1.msra.mxu0 0.0
        %4789 = vmatprep.subr.mxu0 0.0
        %4790 = vmatpush1.msra.mxu0 0.0
        %4791 = vmatprep.subr.mxu0 0.0
        %4792 = vmatpush1.msra.mxu0 0.0
        %4793 = vmatprep.subr.mxu0 0.0
        %4794 = vmatpush1.msra.mxu0 0.0
        %4795 = vmatprep.subr.mxu0 0.0
        %4796 = vmatpush1.msra.mxu0 0.0
        %4797 = vmatprep.subr.mxu0 0.0
        %4798 = vmatpush1.msra.mxu0 0.0
        %4799 = vmatprep.subr.mxu0 0.0
        %4800 = vmatpush1.msra.mxu0 0.0
        %4801 = vmatprep.mubr.f32.mxu0 0.0
        %4802 = vmatmul.mubr.f32.gmra.mrb[0].mxu0 %v4253
        %v4803 = vpop.f32.mrb[0].mxu0
        %v4804 = vadd.f32 %v4734, %v4803
        %v4805 = vpop.f32.mrb[0].mxu0
        %4806 = vdwg.mxu0
        %v4807 = vld [vmem:[#allocation25] sm:$0x1]
        %v4809 = vlaneseq
        %v4810 = vshrl.u32 %v4809, 7
        %v4811 = vsub.s32 0, %v4810
        %v4812 = vrot.slane %v4807, %v4811
        %v4814 = vadd.f32 %v4804, %v4812
        %v4815 = vmax.f32 %v4814, 0.0
        %v4816 = vld [vmem:[%s79] sm:$0xff]
        %v4817 = vld [vmem:[%s79 + $0x8] sm:$0xff]
        %v4818 = vld [vmem:[%s79 + $0x10] sm:$0xff]
        %v4819 = vld [vmem:[%s79 + $0x18] sm:$0xff]
        %v4821 = vsel %vm1796, %v4815, 0
        %4823 = vmatprep.subr.mxu0 0.0
        %4824 = vmatpush1.msra.mxu0 %v4816
        %4825 = vmatprep.subr.mxu0 0.0
        %4826 = vmatpush1.msra.mxu0 %v4817
        %4827 = vmatprep.subr.mxu0 0.0
        %4828 = vmatpush1.msra.mxu0 %v4818
        %4829 = vmatprep.subr.mxu0 0.0
        %4830 = vmatpush1.msra.mxu0 %v4819
        %4831 = vmatprep.subr.mxu0 0.0
        %4832 = vmatpush1.msra.mxu0 0.0
        %4833 = vmatprep.subr.mxu0 0.0
        %4834 = vmatpush1.msra.mxu0 0.0
        %4835 = vmatprep.subr.mxu0 0.0
        %4836 = vmatpush1.msra.mxu0 0.0
        %4837 = vmatprep.subr.mxu0 0.0
        %4838 = vmatpush1.msra.mxu0 0.0
        %4839 = vmatprep.subr.mxu0 0.0
        %4840 = vmatpush1.msra.mxu0 0.0
        %4841 = vmatprep.subr.mxu0 0.0
        %4842 = vmatpush1.msra.mxu0 0.0
        %4843 = vmatprep.subr.mxu0 0.0
        %4844 = vmatpush1.msra.mxu0 0.0
        %4845 = vmatprep.subr.mxu0 0.0
        %4846 = vmatpush1.msra.mxu0 0.0
        %4847 = vmatprep.subr.mxu0 0.0
        %4848 = vmatpush1.msra.mxu0 0.0
        %4849 = vmatprep.subr.mxu0 0.0
        %4850 = vmatpush1.msra.mxu0 0.0
        %4851 = vmatprep.subr.mxu0 0.0
        %4852 = vmatpush1.msra.mxu0 0.0
        %4853 = vmatprep.subr.mxu0 0.0
        %4854 = vmatpush1.msra.mxu0 0.0
        %4855 = vmatprep.subr.mxu0 0.0
        %4856 = vmatpush1.msra.mxu0 0.0
        %4857 = vmatprep.subr.mxu0 0.0
        %4858 = vmatpush1.msra.mxu0 0.0
        %4859 = vmatprep.subr.mxu0 0.0
        %4860 = vmatpush1.msra.mxu0 0.0
        %4861 = vmatprep.subr.mxu0 0.0
        %4862 = vmatpush1.msra.mxu0 0.0
        %4863 = vmatprep.subr.mxu0 0.0
        %4864 = vmatpush1.msra.mxu0 0.0
        %4865 = vmatprep.subr.mxu0 0.0
        %4866 = vmatpush1.msra.mxu0 0.0
        %4867 = vmatprep.subr.mxu0 0.0
        %4868 = vmatpush1.msra.mxu0 0.0
        %4869 = vmatprep.subr.mxu0 0.0
        %4870 = vmatpush1.msra.mxu0 0.0
        %4871 = vmatprep.subr.mxu0 0.0
        %4872 = vmatpush1.msra.mxu0 0.0
        %4873 = vmatprep.subr.mxu0 0.0
        %4874 = vmatpush1.msra.mxu0 0.0
        %4875 = vmatprep.subr.mxu0 0.0
        %4876 = vmatpush1.msra.mxu0 0.0
        %4877 = vmatprep.subr.mxu0 0.0
        %4878 = vmatpush1.msra.mxu0 0.0
        %4879 = vmatprep.subr.mxu0 0.0
        %4880 = vmatpush1.msra.mxu0 0.0
        %4881 = vmatprep.subr.mxu0 0.0
        %4882 = vmatpush1.msra.mxu0 0.0
        %4883 = vmatprep.subr.mxu0 0.0
        %4884 = vmatpush1.msra.mxu0 0.0
        %4885 = vmatprep.subr.mxu0 0.0
        %4886 = vmatpush1.msra.mxu0 0.0
        %4887 = vmatprep.mubr.f32.mxu0 0.0
        %4888 = vmatmul.mubr.f32.gmra.mrb[0].mxu0 %v4821
        %v4889 = vpop.f32.mrb[0].mxu0
        %v4890 = vadd.f32 0.0, %v4889
        %v4891 = vpop.f32.mrb[0].mxu0
        %4892 = vdwg.mxu0
        %v4893 = vld [vmem:[%s81] sm:$0xff]
        %v4894 = vld [vmem:[%s81 + $0x8] sm:$0xff]
        %v4895 = vld [vmem:[%s81 + $0x10] sm:$0xff]
        %v4896 = vld [vmem:[%s81 + $0x18] sm:$0xff]
        %4897 = vmatprep.subr.mxu0 0.0
        %4898 = vmatpush1.msra.mxu0 %v4893
        %4899 = vmatprep.subr.mxu0 0.0
        %4900 = vmatpush1.msra.mxu0 %v4894
        %4901 = vmatprep.subr.mxu0 0.0
        %4902 = vmatpush1.msra.mxu0 %v4895
        %4903 = vmatprep.subr.mxu0 0.0
        %4904 = vmatpush1.msra.mxu0 %v4896
        %4905 = vmatprep.subr.mxu0 0.0
        %4906 = vmatpush1.msra.mxu0 0.0
        %4907 = vmatprep.subr.mxu0 0.0
        %4908 = vmatpush1.msra.mxu0 0.0
        %4909 = vmatprep.subr.mxu0 0.0
        %4910 = vmatpush1.msra.mxu0 0.0
        %4911 = vmatprep.subr.mxu0 0.0
        %4912 = vmatpush1.msra.mxu0 0.0
        %4913 = vmatprep.subr.mxu0 0.0
        %4914 = vmatpush1.msra.mxu0 0.0
        %4915 = vmatprep.subr.mxu0 0.0
        %4916 = vmatpush1.msra.mxu0 0.0
        %4917 = vmatprep.subr.mxu0 0.0
        %4918 = vmatpush1.msra.mxu0 0.0
        %4919 = vmatprep.subr.mxu0 0.0
        %4920 = vmatpush1.msra.mxu0 0.0
        %4921 = vmatprep.subr.mxu0 0.0
        %4922 = vmatpush1.msra.mxu0 0.0
        %4923 = vmatprep.subr.mxu0 0.0
        %4924 = vmatpush1.msra.mxu0 0.0
        %4925 = vmatprep.subr.mxu0 0.0
        %4926 = vmatpush1.msra.mxu0 0.0
        %4927 = vmatprep.subr.mxu0 0.0
        %4928 = vmatpush1.msra.mxu0 0.0
        %4929 = vmatprep.subr.mxu0 0.0
        %4930 = vmatpush1.msra.mxu0 0.0
        %4931 = vmatprep.subr.mxu0 0.0
        %4932 = vmatpush1.msra.mxu0 0.0
        %4933 = vmatprep.subr.mxu0 0.0
        %4934 = vmatpush1.msra.mxu0 0.0
        %4935 = vmatprep.subr.mxu0 0.0
        %4936 = vmatpush1.msra.mxu0 0.0
        %4937 = vmatprep.subr.mxu0 0.0
        %4938 = vmatpush1.msra.mxu0 0.0
        %4939 = vmatprep.subr.mxu0 0.0
        %4940 = vmatpush1.msra.mxu0 0.0
        %4941 = vmatprep.subr.mxu0 0.0
        %4942 = vmatpush1.msra.mxu0 0.0
        %4943 = vmatprep.subr.mxu0 0.0
        %4944 = vmatpush1.msra.mxu0 0.0
        %4945 = vmatprep.subr.mxu0 0.0
        %4946 = vmatpush1.msra.mxu0 0.0
        %4947 = vmatprep.subr.mxu0 0.0
        %4948 = vmatpush1.msra.mxu0 0.0
        %4949 = vmatprep.subr.mxu0 0.0
        %4950 = vmatpush1.msra.mxu0 0.0
        %4951 = vmatprep.subr.mxu0 0.0
        %4952 = vmatpush1.msra.mxu0 0.0
        %4953 = vmatprep.subr.mxu0 0.0
        %4954 = vmatpush1.msra.mxu0 0.0
        %4955 = vmatprep.subr.mxu0 0.0
        %4956 = vmatpush1.msra.mxu0 0.0
        %4957 = vmatprep.subr.mxu0 0.0
        %4958 = vmatpush1.msra.mxu0 0.0
        %4959 = vmatprep.subr.mxu0 0.0
        %4960 = vmatpush1.msra.mxu0 0.0
        %4961 = vmatprep.mubr.f32.mxu0 0.0
        %4962 = vmatmul.mubr.f32.gmra.mrb[0].mxu0 %v4821
        %v4963 = vpop.f32.mrb[0].mxu0
        %v4964 = vadd.f32 0.0, %v4963
        %v4965 = vpop.f32.mrb[0].mxu0
        %4966 = vdwg.mxu0
        %4967 = vmatprep.subr.mxu0 0.0
        %4968 = vmatpush1.msra.mxu0 %v4890
        %4969 = vmatprep.subr.mxu0 0.0
        %4970 = vmatpush1.msra.mxu0 0.0
        %4971 = vmatprep.subr.mxu0 0.0
        %4972 = vmatpush1.msra.mxu0 0.0
        %4973 = vmatprep.subr.mxu0 0.0
        %4974 = vmatpush1.msra.mxu0 0.0
        %4975 = vmatprep.subr.mxu0 0.0
        %4976 = vmatpush1.msra.mxu0 0.0
        %4977 = vmatprep.subr.mxu0 0.0
        %4978 = vmatpush1.msra.mxu0 0.0
        %4979 = vmatprep.subr.mxu0 0.0
        %4980 = vmatpush1.msra.mxu0 0.0
        %4981 = vmatprep.subr.mxu0 0.0
        %4982 = vmatpush1.msra.mxu0 0.0
        %4983 = vmatprep.subr.mxu0 0.0
        %4984 = vmatpush1.msra.mxu0 0.0
        %4985 = vmatprep.subr.mxu0 0.0
        %4986 = vmatpush1.msra.mxu0 0.0
        %4987 = vmatprep.subr.mxu0 0.0
        %4988 = vmatpush1.msra.mxu0 0.0
        %4989 = vmatprep.subr.mxu0 0.0
        %4990 = vmatpush1.msra.mxu0 0.0
        %4991 = vmatprep.subr.mxu0 0.0
        %4992 = vmatpush1.msra.mxu0 0.0
        %4993 = vmatprep.subr.mxu0 0.0
        %4994 = vmatpush1.msra.mxu0 0.0
        %4995 = vmatprep.subr.mxu0 0.0
        %4996 = vmatpush1.msra.mxu0 0.0
        %4997 = vmatprep.subr.mxu0 0.0
        %4998 = vmatpush1.msra.mxu0 0.0
        %4999 = vmatprep.subr.mxu0 0.0
        %5000 = vmatpush1.msra.mxu0 0.0
        %5001 = vmatprep.subr.mxu0 0.0
        %5002 = vmatpush1.msra.mxu0 0.0
        %5003 = vmatprep.subr.mxu0 0.0
        %5004 = vmatpush1.msra.mxu0 0.0
        %5005 = vmatprep.subr.mxu0 0.0
        %5006 = vmatpush1.msra.mxu0 0.0
        %5007 = vmatprep.subr.mxu0 0.0
        %5008 = vmatpush1.msra.mxu0 0.0
        %5009 = vmatprep.subr.mxu0 0.0
        %5010 = vmatpush1.msra.mxu0 0.0
        %5011 = vmatprep.subr.mxu0 0.0
        %5012 = vmatpush1.msra.mxu0 0.0
        %5013 = vmatprep.subr.mxu0 0.0
        %5014 = vmatpush1.msra.mxu0 0.0
        %5015 = vmatprep.subr.mxu0 0.0
        %5016 = vmatpush1.msra.mxu0 0.0
        %5017 = vmatprep.subr.mxu0 0.0
        %5018 = vmatpush1.msra.mxu0 0.0
        %5019 = vmatprep.subr.mxu0 0.0
        %5020 = vmatpush1.msra.mxu0 0.0
        %5021 = vmatprep.subr.mxu0 0.0
        %5022 = vmatpush1.msra.mxu0 0.0
        %5023 = vmatprep.subr.mxu0 0.0
        %5024 = vmatpush1.msra.mxu0 0.0
        %5025 = vmatprep.subr.mxu0 0.0
        %5026 = vmatpush1.msra.mxu0 0.0
        %5027 = vmatprep.subr.mxu0 0.0
        %5028 = vmatpush1.msra.mxu0 0.0
        %5029 = vmatprep.subr.mxu0 0.0
        %5030 = vmatpush1.msra.mxu0 0.0
        %5031 = vmatprep.mubr.f32.mxu0 0.0
        %5032 = vmatmul.mubr.f32.gmra.mrb[0].mxu0 %v4253
        %v5033 = vpop.f32.mrb[0].mxu0
        %v5034 = vadd.f32 %v4964, %v5033
        %v5035 = vpop.f32.mrb[0].mxu0
        %5036 = vdwg.mxu0
        %v5037 = vld [vmem:[#allocation26] sm:$0x1]
        %v5039 = vlaneseq
        %v5040 = vshrl.u32 %v5039, 7
        %v5041 = vsub.s32 0, %v5040
        %v5042 = vrot.slane %v5037, %v5041
        %v5044 = vadd.f32 %v5034, %v5042
        %v5045 = vmax.f32 %v5044, 0.0
        %v5046 = vsel %vm1796, %v5045, 0.0
        %v5047 = vrot.slane %v5046, 4
        %v5048 = vadd.f32 %v5046, %v5047
        %v5049 = vrot.slane %v5048, 2
        %v5050 = vadd.f32 %v5048, %v5049
        %v5051 = vrot.slane %v5050, 1
        %v5052 = vadd.f32 %v5050, %v5051
        %v5053 = vmul.f32 %v5052, %v4571
        %v5054 = vsub.f32 %v5045, %v5053
        %v5055 = vmul.f32 %v5054, %v5054
        %v5056 = vsel %vm1796, %v5055, 0.0
        %v5057 = vrot.slane %v5056, 4
        %v5058 = vadd.f32 %v5056, %v5057
        %v5059 = vrot.slane %v5058, 2
        %v5060 = vadd.f32 %v5058, %v5059
        %v5061 = vrot.slane %v5060, 1
        %v5062 = vadd.f32 %v5060, %v5061
        %v5063 = vmul.f32 %v5062, %v4571
        %v5064 = vadd.f32 %v5063, 1e-05
        %v5065 = vrsqrt.pop %v5064
        %v5066 = vmul.f32 %v5054, %v5065
        %v5067 = vsel %vm1796, %v5066, 0.0
        %v5068 = vrot.slane %v5067, 4
        %v5069 = vadd.f32 %v5067, %v5068
        %v5070 = vrot.slane %v5069, 2
        %v5071 = vadd.f32 %v5069, %v5070
        %v5072 = vrot.slane %v5071, 1
        %v5073 = vadd.f32 %v5071, %v5072
        %v5074 = vmul.f32 %v5073, %v4571
        %v5075 = vsub.f32 %v5066, %v5074
        %v5076 = vmul.f32 %v5075, %v5075
        %v5077 = vsel %vm1796, %v5076, 0.0
        %v5078 = vrot.slane %v5077, 4
        %v5079 = vadd.f32 %v5077, %v5078
        %v5080 = vrot.slane %v5079, 2
        %v5081 = vadd.f32 %v5079, %v5080
        %v5082 = vrot.slane %v5081, 1
        %v5083 = vadd.f32 %v5081, %v5082
        %v5084 = vrcp.pop 7.0
        %v5085 = vmul.f32 %v5083, %v5084
        %v5086 = vrsqrt.pop %v5085
        %v5087 = vmul.f32 %v5085, %v5086
        %vm5088 = vcmp.eq.f32.partialorder %v5085, inf
        %v5089 = vsel %vm5088, %v5085, %v5087
        %vm5090 = vcmp.eq.f32.partialorder %v5085, 0.0
        %v5091 = vand.u32 %v5085, 2147483648
        %v5092 = vsel %vm5090, %v5091, %v5089
        %v5093 = vld [vmem:[%s85] sm:$0xff]
        %v5094 = vld [vmem:[%s85 + $0x8] sm:$0xff]
        %v5095 = vld [vmem:[%s85 + $0x10] sm:$0xff]
        %v5096 = vld [vmem:[%s85 + $0x18] sm:$0xff]
        %v5097 = vld [vmem:[#allocation28] sm:$0x1]
        %v5099 = vsel %vm1796, %v5092, 0
        %5101 = vmatprep.subr.mxu0 0.0
        %5102 = vmatpush1.msra.mxu0 %v5093
        %5103 = vmatprep.subr.mxu0 0.0
        %5104 = vmatpush1.msra.mxu0 %v5094
        %5105 = vmatprep.subr.mxu0 0.0
        %5106 = vmatpush1.msra.mxu0 %v5095
        %5107 = vmatprep.subr.mxu0 0.0
        %5108 = vmatpush1.msra.mxu0 %v5096
        %5109 = vmatprep.subr.mxu0 0.0
        %5110 = vmatpush1.msra.mxu0 0.0
        %5111 = vmatprep.subr.mxu0 0.0
        %5112 = vmatpush1.msra.mxu0 0.0
        %5113 = vmatprep.subr.mxu0 0.0
        %5114 = vmatpush1.msra.mxu0 0.0
        %5115 = vmatprep.subr.mxu0 0.0
        %5116 = vmatpush1.msra.mxu0 0.0
        %5117 = vmatprep.subr.mxu0 0.0
        %5118 = vmatpush1.msra.mxu0 0.0
        %5119 = vmatprep.subr.mxu0 0.0
        %5120 = vmatpush1.msra.mxu0 0.0
        %5121 = vmatprep.subr.mxu0 0.0
        %5122 = vmatpush1.msra.mxu0 0.0
        %5123 = vmatprep.subr.mxu0 0.0
        %5124 = vmatpush1.msra.mxu0 0.0
        %5125 = vmatprep.subr.mxu0 0.0
        %5126 = vmatpush1.msra.mxu0 0.0
        %5127 = vmatprep.subr.mxu0 0.0
        %5128 = vmatpush1.msra.mxu0 0.0
        %5129 = vmatprep.subr.mxu0 0.0
        %5130 = vmatpush1.msra.mxu0 0.0
        %5131 = vmatprep.subr.mxu0 0.0
        %5132 = vmatpush1.msra.mxu0 0.0
        %5133 = vmatprep.subr.mxu0 0.0
        %5134 = vmatpush1.msra.mxu0 0.0
        %5135 = vmatprep.subr.mxu0 0.0
        %5136 = vmatpush1.msra.mxu0 0.0
        %5137 = vmatprep.subr.mxu0 0.0
        %5138 = vmatpush1.msra.mxu0 0.0
        %5139 = vmatprep.subr.mxu0 0.0
        %5140 = vmatpush1.msra.mxu0 0.0
        %5141 = vmatprep.subr.mxu0 0.0
        %5142 = vmatpush1.msra.mxu0 0.0
        %5143 = vmatprep.subr.mxu0 0.0
        %5144 = vmatpush1.msra.mxu0 0.0
        %5145 = vmatprep.subr.mxu0 0.0
        %5146 = vmatpush1.msra.mxu0 0.0
        %5147 = vmatprep.subr.mxu0 0.0
        %5148 = vmatpush1.msra.mxu0 0.0
        %5149 = vmatprep.subr.mxu0 0.0
        %5150 = vmatpush1.msra.mxu0 0.0
        %5151 = vmatprep.subr.mxu0 0.0
        %5152 = vmatpush1.msra.mxu0 0.0
        %5153 = vmatprep.subr.mxu0 0.0
        %5154 = vmatpush1.msra.mxu0 0.0
        %5155 = vmatprep.subr.mxu0 0.0
        %5156 = vmatpush1.msra.mxu0 0.0
        %5157 = vmatprep.subr.mxu0 0.0
        %5158 = vmatpush1.msra.mxu0 0.0
        %5159 = vmatprep.subr.mxu0 0.0
        %5160 = vmatpush1.msra.mxu0 0.0
        %5161 = vmatprep.subr.mxu0 0.0
        %5162 = vmatpush1.msra.mxu0 0.0
        %5163 = vmatprep.subr.mxu0 0.0
        %5164 = vmatpush1.msra.mxu0 0.0
        %5165 = vmatprep.mubr.f32.mxu0 0.0
        %5166 = vmatmul.mubr.f32.gmra.mrb[0].mxu0 %v5099
        %v5167 = vpop.f32.mrb[0].mxu0
        %v5168 = vadd.f32 %v5097, %v5167
        %v5169 = vpop.f32.mrb[0].mxu0
        %5170 = vdwg.mxu0
        %v5171 = vmax.f32 %v5168, 0.0
        %v5172 = vld [vmem:[%s89] sm:$0xff]
        %v5173 = vld [vmem:[%s89 + $0x8] sm:$0xff]
        %v5174 = vld [vmem:[%s89 + $0x10] sm:$0xff]
        %v5175 = vld [vmem:[%s89 + $0x18] sm:$0xff]
        %v5176 = vld [vmem:[%s89 + $0x20] sm:$0xff]
        %v5177 = vld [vmem:[%s89 + $0x28] sm:$0xff]
        %v5178 = vld [vmem:[%s89 + $0x30] sm:$0xff]
        %v5179 = vld [vmem:[%s89 + $0x38] sm:$0xff]
        %v5180 = vld [vmem:[%s89 + $0x40] sm:$0xff]
        %v5181 = vld [vmem:[%s89 + $0x48] sm:$0xff]
        %v5182 = vld [vmem:[%s89 + $0x50] sm:$0xff]
        %v5183 = vld [vmem:[%s89 + $0x58] sm:$0xff]
        %v5184 = vld [vmem:[#allocation2] sm:$0x1]
        %vm5185 = vcmask 785408
        %v5187 = vsel %vm5185, %v5171, 0
        %5189 = vmatprep.subr.mxu0 0.0
        %5190 = vmatpush1.msra.mxu0 %v5172
        %5191 = vmatprep.subr.mxu0 0.0
        %5192 = vmatpush1.msra.mxu0 %v5173
        %5193 = vmatprep.subr.mxu0 0.0
        %5194 = vmatpush1.msra.mxu0 %v5174
        %5195 = vmatprep.subr.mxu0 0.0
        %5196 = vmatpush1.msra.mxu0 %v5175
        %5197 = vmatprep.subr.mxu0 0.0
        %5198 = vmatpush1.msra.mxu0 %v5176
        %5199 = vmatprep.subr.mxu0 0.0
        %5200 = vmatpush1.msra.mxu0 %v5177
        %5201 = vmatprep.subr.mxu0 0.0
        %5202 = vmatpush1.msra.mxu0 %v5178
        %5203 = vmatprep.subr.mxu0 0.0
        %5204 = vmatpush1.msra.mxu0 %v5179
        %5205 = vmatprep.subr.mxu0 0.0
        %5206 = vmatpush1.msra.mxu0 %v5180
        %5207 = vmatprep.subr.mxu0 0.0
        %5208 = vmatpush1.msra.mxu0 %v5181
        %5209 = vmatprep.subr.mxu0 0.0
        %5210 = vmatpush1.msra.mxu0 %v5182
        %5211 = vmatprep.subr.mxu0 0.0
        %5212 = vmatpush1.msra.mxu0 %v5183
        %5213 = vmatprep.subr.mxu0 0.0
        %5214 = vmatpush1.msra.mxu0 0.0
        %5215 = vmatprep.subr.mxu0 0.0
        %5216 = vmatpush1.msra.mxu0 0.0
        %5217 = vmatprep.subr.mxu0 0.0
        %5218 = vmatpush1.msra.mxu0 0.0
        %5219 = vmatprep.subr.mxu0 0.0
        %5220 = vmatpush1.msra.mxu0 0.0
        %5221 = vmatprep.subr.mxu0 0.0
        %5222 = vmatpush1.msra.mxu0 0.0
        %5223 = vmatprep.subr.mxu0 0.0
        %5224 = vmatpush1.msra.mxu0 0.0
        %5225 = vmatprep.subr.mxu0 0.0
        %5226 = vmatpush1.msra.mxu0 0.0
        %5227 = vmatprep.subr.mxu0 0.0
        %5228 = vmatpush1.msra.mxu0 0.0
        %5229 = vmatprep.subr.mxu0 0.0
        %5230 = vmatpush1.msra.mxu0 0.0
        %5231 = vmatprep.subr.mxu0 0.0
        %5232 = vmatpush1.msra.mxu0 0.0
        %5233 = vmatprep.subr.mxu0 0.0
        %5234 = vmatpush1.msra.mxu0 0.0
        %5235 = vmatprep.subr.mxu0 0.0
        %5236 = vmatpush1.msra.mxu0 0.0
        %5237 = vmatprep.subr.mxu0 0.0
        %5238 = vmatpush1.msra.mxu0 0.0
        %5239 = vmatprep.subr.mxu0 0.0
        %5240 = vmatpush1.msra.mxu0 0.0
        %5241 = vmatprep.subr.mxu0 0.0
        %5242 = vmatpush1.msra.mxu0 0.0
        %5243 = vmatprep.subr.mxu0 0.0
        %5244 = vmatpush1.msra.mxu0 0.0
        %5245 = vmatprep.subr.mxu0 0.0
        %5246 = vmatpush1.msra.mxu0 0.0
        %5247 = vmatprep.subr.mxu0 0.0
        %5248 = vmatpush1.msra.mxu0 0.0
        %5249 = vmatprep.subr.mxu0 0.0
        %5250 = vmatpush1.msra.mxu0 0.0
        %5251 = vmatprep.subr.mxu0 0.0
        %5252 = vmatpush1.msra.mxu0 0.0
        %5253 = vmatprep.mubr.f32.mxu0 0.0
        %5254 = vmatmul.mubr.f32.gmra.mrb[0].mxu0 %v5187
        %v5255 = vpop.f32.mrb[0].mxu0
        %v5256 = vadd.f32 %v5184, %v5255
        %v5257 = vpop.f32.mrb[0].mxu0
        %5258 = vdwg.mxu0
        %vm5259 = vcmask 0
        %5260 = vst.msk [vmem:[%s1613] sm:$0x1] %vm5259, %v5256
        %p5261 = scmp.lt.s32.totalorder %s115, 1
        %s5262 = scalar_select %p5261, %s115, 1
        %s5263 = scalar_lea.vmem %s93, %s5262
        // Predicated region
        $region273: #{small_forward.1} parent=203 // pred_check
          %p5264 = pneg %p1109
        $region274: #{small_forward.1} parent=203 // pred_check_branch
          %5266 = sbr.rel (%p5264) target = $region276
        $region275: #{small_forward.1} parent=203 // pred_region
          _
        $region276: #{small_forward.1} parent=203 // pred_fallthru
          _
      $region204: #{small_forward.1} parent=5 // pred_fallthru
        _
      %p5267 = scmp.le.s32.totalorder 2, %s110
      // Predicated region
      $region277: #{small_forward.1} parent=5 // pred_check
        %p5268 = pneg %p5267
      $region278: #{small_forward.1} parent=5 // pred_check_branch
        %5270 = sbr.rel (%p5268) target = $region280
      $region279: #{small_forward.1} parent=5 // pred_region
        %s5271 = ssub.s32 %s110, 2
        // Predicated region
        $region281: #{small_forward.1} parent=279 // pred_check
          %p5272 = pneg %p1115
        $region282: #{small_forward.1} parent=279 // pred_check_branch
          %5274 = sbr.rel (%p5272) target = $region284
        $region283: #{small_forward.1} parent=279 // pred_region
          %p5275 = scmp.lt.s32.totalorder %s116, 1
          %s5276 = scalar_select %p5275, %s116, 1
          %s5277 = scalar_lea.vmem %s93, %s5276
        $region284: #{small_forward.1} parent=279 // pred_fallthru
          _
      $region280: #{small_forward.1} parent=5 // pred_fallthru
        _
    $region6: #{small_forward.1} parent=1 // loop_footer
      %s114 = sadd.s32 1, %s110
    $region7: #{small_forward.1} parent=1 // loop_footer_branch
      %109 = sbr.rel target = $region3
    $region8: #{small_forward.1} parent=1 // loop_exit
      _
    %5278 = vsyncpa [#allocation4], 1
    %s5279 = scalar_lea.sflag [#allocation4], 1
    %5280 = vsyncpa %s5279, 1
    %5281 = vsyncpa [#allocation6], 1
    %5282 = vsyncpa [#allocation9], 1
    %5283 = vsyncpa [#allocation12], 1
    %5284 = vsyncpa [#allocation15], 1
    %5285 = vsyncpa [#allocation18], 1
    %5286 = vsyncpa [#allocation21], 1
    %5287 = vsyncpa [#allocation24], 1
    %5288 = vsyncpa [#allocation27], 1

</llo_original>
